<compile_context>
chip_gen: v7x
topology: tpu7x:2x2x1
jax: 0.10.0
libtpu: 0.0.40
codegen_flags: <defaults>
</compile_context>

<pallas_src>
import jax
import jax.numpy as jnp
from jax import lax
from jax.experimental import pallas as pl
from jax.experimental.pallas import tpu as pltpu


# ----------------------------- Pallas kernel -------------------------------

def _sdfnet_kernel(x_ref,
                   w1_ref, b1_ref,
                   w2_ref, b2_ref,
                   w3_ref, b3_ref,
                   w4_ref, b4_ref,
                   o_ref):
    """SDFNet(layers=4) forward on one (tile_m, 2) batch tile.

    Weight-norm is already folded into w* (w = v * g/||v||) in the wrapper, so
    each layer is a plain affine (+ ReLU), final layer affine + tanh.
    """
    x = x_ref[...]                                                 # (tm, 2) f32

    # ---- Layer 1: in=2.  Two broadcast FMAs on the VPU (skip the MXU). ----
    h = (x[:, 0:1] * w1_ref[0:1, :]
         + x[:, 1:2] * w1_ref[1:2, :]
         + b1_ref[...])                                            # (tm, 512)
    h = jnp.maximum(h, 0.0)                                        # ReLU

    # ---- Layers 2, 3: 512x512 bf16 operands on the MXU, f32 accumulation. ----
    h = jnp.maximum(
        jnp.dot(h.astype(w2_ref.dtype), w2_ref[...],
                preferred_element_type=jnp.float32) + b2_ref[...], 0.0)
    h = jnp.maximum(
        jnp.dot(h.astype(w3_ref.dtype), w3_ref[...],
                preferred_element_type=jnp.float32) + b3_ref[...], 0.0)

    # ---- Layer 4: 512 -> 1.  Plain h @ w4 -> (tm, 1); no activation
    # transpose, masked stores of the 1-wide output are negligible here. ----
    z = jnp.dot(h.astype(w4_ref.dtype), w4_ref[...],
                preferred_element_type=jnp.float32)                # (tm, 1)
    o_ref[...] = jnp.tanh(z + b4_ref[0, 0])                        # Tanh (b4 from SMEM)


# ------------------------------ wrapper -------------------------------------

def _const_spec(arr):
    """Whole-array block with a constant index map -> DMA'd once, VMEM-resident.

    Single-buffered when supported: the block index never changes, so a second
    pipeline buffer is pure VMEM waste.
    """
    idx = lambda i: (0, 0)
    if hasattr(pl, "Buffered"):
        try:
            return pl.BlockSpec(arr.shape, idx, pipeline_mode=pl.Buffered(1))
        except (TypeError, ValueError):
            pass
    return pl.BlockSpec(arr.shape, idx)


def sdfnet_forward(x, params, *, tile_m=None, use_bf16=True):
    """x: (N, 2) float32. params: dict of transposed v (in,out), g (1,out), b (1,out)."""
    N, Din = x.shape
    assert Din == 2

    # ---- Adaptive batch tile ------------------------------------------------
    # Multiple of 128 (lane/MXU friendly), capped at 512 rows. When N >= 256,
    # pick the tile so the grid has at least two steps -> the "parallel" batch
    # axis shards across both TensorCores on v7x.
    if tile_m is None:
        if N >= 256:
            half = pl.cdiv(pl.cdiv(N, 2), 128) * 128
            tile_m = int(max(128, min(512, half)))
        else:
            tile_m = int(max(128, min(256, pl.cdiv(N, 128) * 128)))
    assert tile_m % 128 == 0, "tile_m must be a multiple of 128"
    n_tiles = pl.cdiv(N, tile_m)
    n_pad = n_tiles * tile_m
    x = x.astype(jnp.float32)
    if n_pad != N:
        x = jnp.pad(x, ((0, n_pad - N), (0, 0)))

    # ---- Fold weight-norm into the weights (once, in f32, in the wrapper) ----
    def folded(v, g):
        scale = g * lax.rsqrt(jnp.sum(v * v, axis=0, keepdims=True))
        return (v * scale).astype(jnp.float32)

    mm_dtype = jnp.bfloat16 if use_bf16 else jnp.float32
    w1 = folded(params["v1"], params["g1"])                     # (2, 512)   f32 (VPU path)
    w2 = folded(params["v2"], params["g2"]).astype(mm_dtype)    # (512, 512) MXU operand
    w3 = folded(params["v3"], params["g3"]).astype(mm_dtype)    # (512, 512) MXU operand
    w4 = folded(params["v4"], params["g4"]).astype(mm_dtype)    # (512, 1)   MXU operand
    b1 = params["b1"].astype(jnp.float32)                       # (1, 512)
    b2 = params["b2"].astype(jnp.float32)                       # (1, 512)
    b3 = params["b3"].astype(jnp.float32)                       # (1, 512)
    b4 = params["b4"].astype(jnp.float32)                       # (1, 1) -> SMEM scalar

    in_specs = [
        pl.BlockSpec((tile_m, Din), lambda i: (i, 0)),          # x batch tile
        _const_spec(w1), _const_spec(b1),
        _const_spec(w2), _const_spec(b2),
        _const_spec(w3), _const_spec(b3),
        _const_spec(w4),
        pl.BlockSpec(memory_space=pltpu.MemorySpace.SMEM),      # b4 scalar in SMEM
    ]
    out_specs = pl.BlockSpec((tile_m, 1), lambda i: (i, 0))

    out = pl.pallas_call(
        _sdfnet_kernel,
        out_shape=jax.ShapeDtypeStruct((n_pad, 1), jnp.float32),
        grid_spec=pltpu.PrefetchScalarGridSpec(
            num_scalar_prefetch=0,
            grid=(n_tiles,),
            in_specs=in_specs,
            out_specs=out_specs,
        ),
        compiler_params=pltpu.CompilerParams(
            dimension_semantics=("parallel",),
            vmem_limit_bytes=32 * 1024 * 1024),
    )(x,
      w1, b1,
      w2, b2,
      w3, b3,
      w4, b4)

    return out[:N]                                               # (N, 1)


# --------------------- deterministic parameter init -------------------------

def init_params(key, hidden=512):
    """Shapes follow SDFNet(layers=4): 2 -> 512 -> 512 -> 512 -> 1."""
    dims = [(2, hidden), (hidden, hidden), (hidden, hidden), (hidden, 1)]
    params = {}
    keys = jax.random.split(key, 3 * len(dims))
    for idx, (din, dout) in enumerate(dims):
        kv, kg, kb = keys[3 * idx], keys[3 * idx + 1], keys[3 * idx + 2]
        v_t = jax.random.normal(kv, (din, dout), jnp.float32) * 0.1   # v transposed: (in, out)
        g = jax.random.uniform(kg, (1, dout), jnp.float32, 0.5, 1.5)
        b = jax.random.normal(kb, (1, dout), jnp.float32) * 0.01
        params[f"v{idx+1}"] = v_t
        params[f"g{idx+1}"] = g
        params[f"b{idx+1}"] = b
    return params


def sdfnet_reference(x, params):
    """Pure-JAX reference in PyTorch weight_norm form (W = g*v/||v||, then h@W+b)."""
    h = x
    for i in range(1, 5):
        v, g, b = params[f"v{i}"], params[f"g{i}"], params[f"b{i}"]
        w = v * (g / jnp.sqrt(jnp.sum(v * v, axis=0, keepdims=True)))
        h = h @ w + b
        if i < 4:
            h = jnp.maximum(h, 0.0)
    return jnp.tanh(h)


# --------------------------------- main --------------------------------------

if __name__ == "__main__":
    key = jax.random.PRNGKey(0)
    kx, kp = jax.random.split(key)

    params = init_params(kp, hidden=512)

    # Small batch of 2-D query points (padded up to one 128-row tile inside).
    N = 16
    x = jax.random.uniform(kx, (N, 2), jnp.float32, -1.0, 1.0)
    ref = sdfnet_reference(x, params)

    # Default bf16 MXU path (looser tolerance vs. the f32 reference).
    out = jax.block_until_ready(sdfnet_forward(x, params))
    assert out.shape == (N, 1)
    assert jnp.allclose(out, ref, atol=5e-2, rtol=5e-2)

    # f32 MXU path keeps the tight reference tolerance.
    out_f32 = jax.block_until_ready(sdfnet_forward(x, params, use_bf16=False))
    assert jnp.allclose(out_f32, ref, atol=1e-4, rtol=1e-4)

    # Ragged batch exercising cdiv/padding and the >=2-tile (megacore) path.
    N2 = 384
    x2 = jax.random.uniform(jax.random.PRNGKey(1), (N2, 2), jnp.float32, -1.0, 1.0)
    out2 = jax.block_until_ready(sdfnet_forward(x2, params))
    ref2 = sdfnet_reference(x2, params)
    assert out2.shape == (N2, 1)
    assert jnp.allclose(out2, ref2, atol=5e-2, rtol=5e-2)

    print("KERNEL_OK")
</pallas_src>

<mosaic_0001>
module attributes {stable_mosaic.version = 11 : i64} {
  func.func @_sdfnet_kernel(%arg0: i32, %arg1: memref<128x2xf32, #tpu.memory_space<vmem>>, %arg2: memref<2x512xf32, #tpu.memory_space<vmem>>, %arg3: memref<1x512xf32, #tpu.memory_space<vmem>>, %arg4: memref<512x512xbf16, #tpu.memory_space<vmem>>, %arg5: memref<1x512xf32, #tpu.memory_space<vmem>>, %arg6: memref<512x512xbf16, #tpu.memory_space<vmem>>, %arg7: memref<1x512xf32, #tpu.memory_space<vmem>>, %arg8: memref<512x1xbf16, #tpu.memory_space<vmem>>, %arg9: memref<1x1xf32, #tpu.memory_space<smem>>, %arg10: memref<128x1xf32, #tpu.memory_space<vmem>>) attributes {dimension_semantics = [#tpu.dimension_semantics<parallel>], iteration_bounds = array<i64: 1>, scalar_prefetch = 0 : i64, scratch_operands = 0 : i64, tpu.core_type = #tpu.core_type<tc>, window_params = [{transform_indices = @transform_0, window_bounds = array<i64: 128, 2>}, {pipeline_mode = #tpu.pipeline_mode<synchronous>, transform_indices = @transform_1, window_bounds = array<i64: 2, 512>}, {pipeline_mode = #tpu.pipeline_mode<synchronous>, transform_indices = @transform_2, window_bounds = array<i64: 1, 512>}, {pipeline_mode = #tpu.pipeline_mode<synchronous>, transform_indices = @transform_3, window_bounds = array<i64: 512, 512>}, {pipeline_mode = #tpu.pipeline_mode<synchronous>, transform_indices = @transform_4, window_bounds = array<i64: 1, 512>}, {pipeline_mode = #tpu.pipeline_mode<synchronous>, transform_indices = @transform_5, window_bounds = array<i64: 512, 512>}, {pipeline_mode = #tpu.pipeline_mode<synchronous>, transform_indices = @transform_6, window_bounds = array<i64: 1, 512>}, {pipeline_mode = #tpu.pipeline_mode<synchronous>, transform_indices = @transform_7, window_bounds = array<i64: 512, 1>}, {transform_indices = @transform_8, window_bounds = array<i64: 1, 1>}, {transform_indices = @transform_9, window_bounds = array<i64: 128, 1>}]} {
    %c0 = arith.constant 0 : index
    %c0_0 = arith.constant 0 : index
    %0 = vector.load %arg1[%c0, %c0_0] : memref<128x2xf32, #tpu.memory_space<vmem>>, vector<128x2xf32>
    %1 = vector.extract_strided_slice %0 {offsets = [0, 0], sizes = [128, 1], strides = [1, 1]} : vector<128x2xf32> to vector<128x1xf32>
    %c0_1 = arith.constant 0 : index
    %c0_2 = arith.constant 0 : index
    %2 = vector.load %arg2[%c0_1, %c0_2] : memref<2x512xf32, #tpu.memory_space<vmem>>, vector<1x512xf32>
    %3 = vector.broadcast %1 : vector<128x1xf32> to vector<128x512xf32>
    %4 = vector.broadcast %2 : vector<1x512xf32> to vector<128x512xf32>
    %5 = arith.mulf %3, %4 : vector<128x512xf32>
    %6 = vector.extract_strided_slice %0 {offsets = [0, 1], sizes = [128, 1], strides = [1, 1]} : vector<128x2xf32> to vector<128x1xf32>
    %c1 = arith.constant 1 : index
    %c0_3 = arith.constant 0 : index
    %7 = vector.load %arg2[%c1, %c0_3] : memref<2x512xf32, #tpu.memory_space<vmem>>, vector<1x512xf32>
    %8 = vector.broadcast %6 : vector<128x1xf32> to vector<128x512xf32>
    %9 = vector.broadcast %7 : vector<1x512xf32> to vector<128x512xf32>
    %10 = arith.mulf %8, %9 : vector<128x512xf32>
    %11 = arith.addf %5, %10 : vector<128x512xf32>
    %c0_4 = arith.constant 0 : index
    %c0_5 = arith.constant 0 : index
    %12 = vector.load %arg3[%c0_4, %c0_5] : memref<1x512xf32, #tpu.memory_space<vmem>>, vector<1x512xf32>
    %13 = vector.broadcast %12 : vector<1x512xf32> to vector<128x512xf32>
    %14 = arith.addf %11, %13 : vector<128x512xf32>
    %cst = arith.constant 0.000000e+00 : f32
    %15 = vector.broadcast %cst : f32 to vector<128x512xf32>
    %16 = arith.maximumf %14, %15 : vector<128x512xf32>
    %17 = arith.truncf %16 : vector<128x512xf32> to vector<128x512xbf16>
    %c0_6 = arith.constant 0 : index
    %c0_7 = arith.constant 0 : index
    %18 = vector.load %arg4[%c0_6, %c0_7] : memref<512x512xbf16, #tpu.memory_space<vmem>>, vector<512x512xbf16>
    %cst_8 = arith.constant dense<0.000000e+00> : vector<128x512xf32>
    %19 = tpu.matmul %17, %18, %cst_8 {dimension_numbers = #tpu.dot_dimension_numbers<[1], [0], [0], [1], [0, 0, 1, 1], [], []>} : vector<128x512xbf16>, vector<512x512xbf16>, vector<128x512xf32> -> vector<128x512xf32>
    %c0_9 = arith.constant 0 : index
    %c0_10 = arith.constant 0 : index
    %20 = vector.load %arg5[%c0_9, %c0_10] : memref<1x512xf32, #tpu.memory_space<vmem>>, vector<1x512xf32>
    %21 = vector.broadcast %20 : vector<1x512xf32> to vector<128x512xf32>
    %22 = arith.addf %19, %21 : vector<128x512xf32>
    %cst_11 = arith.constant 0.000000e+00 : f32
    %23 = vector.broadcast %cst_11 : f32 to vector<128x512xf32>
    %24 = arith.maximumf %22, %23 : vector<128x512xf32>
    %25 = arith.truncf %24 : vector<128x512xf32> to vector<128x512xbf16>
    %c0_12 = arith.constant 0 : index
    %c0_13 = arith.constant 0 : index
    %26 = vector.load %arg6[%c0_12, %c0_13] : memref<512x512xbf16, #tpu.memory_space<vmem>>, vector<512x512xbf16>
    %cst_14 = arith.constant dense<0.000000e+00> : vector<128x512xf32>
    %27 = tpu.matmul %25, %26, %cst_14 {dimension_numbers = #tpu.dot_dimension_numbers<[1], [0], [0], [1], [0, 0, 1, 1], [], []>} : vector<128x512xbf16>, vector<512x512xbf16>, vector<128x512xf32> -> vector<128x512xf32>
    %c0_15 = arith.constant 0 : index
    %c0_16 = arith.constant 0 : index
    %28 = vector.load %arg7[%c0_15, %c0_16] : memref<1x512xf32, #tpu.memory_space<vmem>>, vector<1x512xf32>
    %29 = vector.broadcast %28 : vector<1x512xf32> to vector<128x512xf32>
    %30 = arith.addf %27, %29 : vector<128x512xf32>
    %cst_17 = arith.constant 0.000000e+00 : f32
    %31 = vector.broadcast %cst_17 : f32 to vector<128x512xf32>
    %32 = arith.maximumf %30, %31 : vector<128x512xf32>
    %33 = arith.truncf %32 : vector<128x512xf32> to vector<128x512xbf16>
    %c0_18 = arith.constant 0 : index
    %c0_19 = arith.constant 0 : index
    %34 = vector.load %arg8[%c0_18, %c0_19] : memref<512x1xbf16, #tpu.memory_space<vmem>>, vector<512x1xbf16>
    %cst_20 = arith.constant dense<0.000000e+00> : vector<128x1xf32>
    %35 = tpu.matmul %33, %34, %cst_20 {dimension_numbers = #tpu.dot_dimension_numbers<[1], [0], [0], [1], [0, 0, 1, 1], [], []>} : vector<128x512xbf16>, vector<512x1xbf16>, vector<128x1xf32> -> vector<128x1xf32>
    %c0_21 = arith.constant 0 : index
    %c0_22 = arith.constant 0 : index
    %36 = memref.load %arg9[%c0_21, %c0_22] : memref<1x1xf32, #tpu.memory_space<smem>>
    %37 = vector.broadcast %36 : f32 to vector<128x1xf32>
    %38 = arith.addf %35, %37 : vector<128x1xf32>
    %39 = math.tanh %38 : vector<128x1xf32>
    %c0_23 = arith.constant 0 : index
    %c0_24 = arith.constant 0 : index
    %40 = vector.load %arg10[%c0_23, %c0_24] : memref<128x1xf32, #tpu.memory_space<vmem>>, vector<128x1xf32>
    tpu.vector_store %arg10[%c0_23, %c0_24], %39 {strides = array<i32>} : memref<128x1xf32, #tpu.memory_space<vmem>>, vector<128x1xf32>,
    return
  }
  func.func @transform_0(%arg0: i32) -> (i32, i32) {
    %c0_i32 = arith.constant 0 : i32
    %c0_i32_0 = arith.constant 0 : i32
    return %arg0, %c0_i32 : i32, i32
  }
  func.func @transform_1(%arg0: i32) -> (i32, i32) {
    %c0_i32 = arith.constant 0 : i32
    %c0_i32_0 = arith.constant 0 : i32
    %c0_i32_1 = arith.constant 0 : i32
    return %c0_i32, %c0_i32_0 : i32, i32
  }
  func.func @transform_2(%arg0: i32) -> (i32, i32) {
    %c0_i32 = arith.constant 0 : i32
    %c0_i32_0 = arith.constant 0 : i32
    %c0_i32_1 = arith.constant 0 : i32
    return %c0_i32, %c0_i32_0 : i32, i32
  }
  func.func @transform_3(%arg0: i32) -> (i32, i32) {
    %c0_i32 = arith.constant 0 : i32
    %c0_i32_0 = arith.constant 0 : i32
    %c0_i32_1 = arith.constant 0 : i32
    return %c0_i32, %c0_i32_0 : i32, i32
  }
  func.func @transform_4(%arg0: i32) -> (i32, i32) {
    %c0_i32 = arith.constant 0 : i32
    %c0_i32_0 = arith.constant 0 : i32
    %c0_i32_1 = arith.constant 0 : i32
    return %c0_i32, %c0_i32_0 : i32, i32
  }
  func.func @transform_5(%arg0: i32) -> (i32, i32) {
    %c0_i32 = arith.constant 0 : i32
    %c0_i32_0 = arith.constant 0 : i32
    %c0_i32_1 = arith.constant 0 : i32
    return %c0_i32, %c0_i32_0 : i32, i32
  }
  func.func @transform_6(%arg0: i32) -> (i32, i32) {
    %c0_i32 = arith.constant 0 : i32
    %c0_i32_0 = arith.constant 0 : i32
    %c0_i32_1 = arith.constant 0 : i32
    return %c0_i32, %c0_i32_0 : i32, i32
  }
  func.func @transform_7(%arg0: i32) -> (i32, i32) {
    %c0_i32 = arith.constant 0 : i32
    %c0_i32_0 = arith.constant 0 : i32
    %c0_i32_1 = arith.constant 0 : i32
    return %c0_i32, %c0_i32_0 : i32, i32
  }
  func.func @transform_8(%arg0: i32) -> (i32, i32) {
    %c0_i32 = arith.constant 0 : i32
    %c0_i32_0 = arith.constant 0 : i32
    %c0_i32_1 = arith.constant 0 : i32
    return %c0_i32, %c0_i32_0 : i32, i32
  }
  func.func @transform_9(%arg0: i32) -> (i32, i32) {
    %c0_i32 = arith.constant 0 : i32
    %c0_i32_0 = arith.constant 0 : i32
    return %arg0, %c0_i32 : i32, i32
  }
}

</mosaic_0001>

<llo_original>
// kernel: tpu_custom_call.1
$region0: #{tpu_custom_call.1}
  #allocation0 [shape = 'u32[]', space=smem, size = 0x4, offset = 0x4, fixed_abs, tag = 'smem constant byte address 0x4 - core index']
  #allocation1 [shape = 'u32[144,128]{1,0:T(1,128)}', space=vmem, size = 0x12000, scoped, tag = 'internal scratch']
  #allocation2 [shape = 'f32[1,1]{1,0:T(1,128)S(6)}', space=smem, size = 0x200, scoped, tag = 'scoped memory for tpu_custom_call.1']
  %s0 = inlined_call_operand.vmem [shape: f32[128,2], index: 0, kind: input, shape index: {}]
  %s1 = inlined_call_operand.vmem [shape: f32[2,512], index: 1, kind: input, shape index: {}]
  %s2 = inlined_call_operand.vmem [shape: f32[1,512], index: 2, kind: input, shape index: {}]
  %s3 = inlined_call_operand.hbm [shape: bf16[512,512], index: 3, kind: input, shape index: {}]
  %s4 = inlined_call_operand.vmem [shape: f32[1,512], index: 4, kind: input, shape index: {}]
  %s5 = inlined_call_operand.hbm [shape: bf16[512,512], index: 5, kind: input, shape index: {}]
  %s6 = inlined_call_operand.vmem [shape: f32[1,512], index: 6, kind: input, shape index: {}]
  %s7 = inlined_call_operand.vmem [shape: bf16[512,1], index: 7, kind: input, shape index: {}]
  %s8 = inlined_call_operand.<no memory space> [shape: f32[1,1], index: 8, kind: input, shape index: {}]
  %s9 = inlined_call_operand.vmem [shape: f32[128,1], index: 9, kind: output, shape index: {}]
  %s10 = sld [smem:[#allocation0]]
  $region54: #{tpu_custom_call.1} parent=0
    _
  %s12 = ssub.s32 1, %s10
  %s13 = scalar_select 0, %s12, %s10
  %14 = sst [smem:[#allocation2]] %s8
  $region1: #{tpu_custom_call.1} parent=0
    #allocation3 [shape = 'u8[524288]{0}', space=vmem, size = 0x80000, scoped, tag = 'input window, operand 3, single buffered']
    #allocation4 [shape = 's32[1]{0}', space=sflag, size = 0x4, scoped, tag = 'scoped memory for tpu_custom_call.1']
    #allocation5 [shape = 'u8[524288]{0}', space=vmem, size = 0x80000, scoped, tag = 'input window, operand 5, single buffered']
    #allocation6 [shape = 's32[1]{0}', space=sflag, size = 0x4, scoped, tag = 'scoped memory for tpu_custom_call.1']
    %15 = vsyncpa [#allocation4], 0
    %16 = vsyncpa [#allocation6], 0
    // Predicated region
    $region2: #{tpu_custom_call.1} parent=1 // pred_check
      _
    $region3: #{tpu_custom_call.1} parent=1 // pred_check_branch
      %18 = sbr.rel (0) target = $region5
    $region4: #{tpu_custom_call.1} parent=1 // pred_region
      _
    $region5: #{tpu_custom_call.1} parent=1 // pred_fallthru
      _
    // Predicated region
    $region6: #{tpu_custom_call.1} parent=1 // pred_check
      _
    $region7: #{tpu_custom_call.1} parent=1 // pred_check_branch
      %20 = sbr.rel (0) target = $region9
    $region8: #{tpu_custom_call.1} parent=1 // pred_region
      _
    $region9: #{tpu_custom_call.1} parent=1 // pred_fallthru
      _
    // Predicated region
    $region10: #{tpu_custom_call.1} parent=1 // pred_check
      _
    $region11: #{tpu_custom_call.1} parent=1 // pred_check_branch
      %22 = sbr.rel (0) target = $region13
    $region12: #{tpu_custom_call.1} parent=1 // pred_region
      _
    $region13: #{tpu_custom_call.1} parent=1 // pred_fallthru
      _
    // Predicated region
    $region14: #{tpu_custom_call.1} parent=1 // pred_check
      _
    $region15: #{tpu_custom_call.1} parent=1 // pred_check_branch
      %24 = sbr.rel (0) target = $region17
    $region16: #{tpu_custom_call.1} parent=1 // pred_region
      %s26 = ssub.s32 16384, 16384
      %27 = vsyncadd [#allocation4], %s26
      %s28 = sshll.u32 [#allocation3], 4
      %s29 = int_to_ptr.vmem [resolvable:$true] %s28
      %34 = dma.hbm_to_vmem [thread:$0]  %s3, 16384, %s29, [#allocation4], 256, 256, 16
    $region17: #{tpu_custom_call.1} parent=1 // pred_fallthru
      _
    // Predicated region
    $region18: #{tpu_custom_call.1} parent=1 // pred_check
      _
    $region19: #{tpu_custom_call.1} parent=1 // pred_check_branch
      %36 = sbr.rel (0) target = $region21
    $region20: #{tpu_custom_call.1} parent=1 // pred_region
      _
    $region21: #{tpu_custom_call.1} parent=1 // pred_fallthru
      _
    // Predicated region
    $region22: #{tpu_custom_call.1} parent=1 // pred_check
      _
    $region23: #{tpu_custom_call.1} parent=1 // pred_check_branch
      %38 = sbr.rel (0) target = $region25
    $region24: #{tpu_custom_call.1} parent=1 // pred_region
      %s40 = ssub.s32 16384, 16384
      %41 = vsyncadd [#allocation6], %s40
      %s42 = sshll.u32 [#allocation5], 4
      %s43 = int_to_ptr.vmem [resolvable:$true] %s42
      %48 = dma.hbm_to_vmem [thread:$0]  %s5, 16384, %s43, [#allocation6], 256, 256, 16
    $region25: #{tpu_custom_call.1} parent=1 // pred_fallthru
      _
    // Predicated region
    $region26: #{tpu_custom_call.1} parent=1 // pred_check
      _
    $region27: #{tpu_custom_call.1} parent=1 // pred_check_branch
      %50 = sbr.rel (0) target = $region29
    $region28: #{tpu_custom_call.1} parent=1 // pred_region
      _
    $region29: #{tpu_custom_call.1} parent=1 // pred_fallthru
      _
    // Predicated region
    $region30: #{tpu_custom_call.1} parent=1 // pred_check
      _
    $region31: #{tpu_custom_call.1} parent=1 // pred_check_branch
      %52 = sbr.rel (0) target = $region33
    $region32: #{tpu_custom_call.1} parent=1 // pred_region
      _
    $region33: #{tpu_custom_call.1} parent=1 // pred_fallthru
      _
    // Predicated region
    $region34: #{tpu_custom_call.1} parent=1 // pred_check
      _
    $region35: #{tpu_custom_call.1} parent=1 // pred_check_branch
      %54 = sbr.rel (0) target = $region37
    $region36: #{tpu_custom_call.1} parent=1 // pred_region
      _
    $region37: #{tpu_custom_call.1} parent=1 // pred_fallthru
      _
    // Predicated region
    $region38: #{tpu_custom_call.1} parent=1 // pred_check
      _
    $region39: #{tpu_custom_call.1} parent=1 // pred_check_branch
      %56 = sbr.rel (0) target = $region41
    $region40: #{tpu_custom_call.1} parent=1 // pred_region
      %57 = dma.done [#allocation4], 16384
    $region41: #{tpu_custom_call.1} parent=1 // pred_fallthru
      _
    // Predicated region
    $region42: #{tpu_custom_call.1} parent=1 // pred_check
      _
    $region43: #{tpu_custom_call.1} parent=1 // pred_check_branch
      %59 = sbr.rel (0) target = $region45
    $region44: #{tpu_custom_call.1} parent=1 // pred_region
      %60 = dma.done [#allocation6], 16384
    $region45: #{tpu_custom_call.1} parent=1 // pred_fallthru
      _
    %v62 = vld [vmem:[%s0] sm:$0xff]
    %v63 = vld [vmem:[%s0 + $0x8] sm:$0xff]
    %v64 = vld [vmem:[%s0 + $0x10] sm:$0xff]
    %v65 = vld [vmem:[%s0 + $0x18] sm:$0xff]
    %v66 = vld [vmem:[%s0 + $0x20] sm:$0xff]
    %v67 = vld [vmem:[%s0 + $0x28] sm:$0xff]
    %v68 = vld [vmem:[%s0 + $0x30] sm:$0xff]
    %v69 = vld [vmem:[%s0 + $0x38] sm:$0xff]
    %v70 = vld [vmem:[%s0 + $0x40] sm:$0xff]
    %v71 = vld [vmem:[%s0 + $0x48] sm:$0xff]
    %v72 = vld [vmem:[%s0 + $0x50] sm:$0xff]
    %v73 = vld [vmem:[%s0 + $0x58] sm:$0xff]
    %v74 = vld [vmem:[%s0 + $0x60] sm:$0xff]
    %v75 = vld [vmem:[%s0 + $0x68] sm:$0xff]
    %v76 = vld [vmem:[%s0 + $0x70] sm:$0xff]
    %v77 = vld [vmem:[%s0 + $0x78] sm:$0xff]
    %v78 = vld [vmem:[%s1] ss:$2 sm:$0xf]
    %80 = vset.pattern.permute.xlu0 0
    %81 = vperm.xlu0 %80, %v62
    %v82 = vpop.permute.xlu0 %81
    %85 = vset.pattern.permute.xlu0 0
    %86 = vperm.xlu0 %85, %v63
    %v87 = vpop.permute.xlu0 %86
    %90 = vset.pattern.permute.xlu0 0
    %91 = vperm.xlu0 %90, %v64
    %v92 = vpop.permute.xlu0 %91
    %95 = vset.pattern.permute.xlu0 0
    %96 = vperm.xlu0 %95, %v65
    %v97 = vpop.permute.xlu0 %96
    %100 = vset.pattern.permute.xlu0 0
    %101 = vperm.xlu0 %100, %v66
    %v102 = vpop.permute.xlu0 %101
    %105 = vset.pattern.permute.xlu0 0
    %106 = vperm.xlu0 %105, %v67
    %v107 = vpop.permute.xlu0 %106
    %110 = vset.pattern.permute.xlu0 0
    %111 = vperm.xlu0 %110, %v68
    %v112 = vpop.permute.xlu0 %111
    %115 = vset.pattern.permute.xlu0 0
    %116 = vperm.xlu0 %115, %v69
    %v117 = vpop.permute.xlu0 %116
    %120 = vset.pattern.permute.xlu0 0
    %121 = vperm.xlu0 %120, %v70
    %v122 = vpop.permute.xlu0 %121
    %125 = vset.pattern.permute.xlu0 0
    %126 = vperm.xlu0 %125, %v71
    %v127 = vpop.permute.xlu0 %126
    %130 = vset.pattern.permute.xlu0 0
    %131 = vperm.xlu0 %130, %v72
    %v132 = vpop.permute.xlu0 %131
    %135 = vset.pattern.permute.xlu0 0
    %136 = vperm.xlu0 %135, %v73
    %v137 = vpop.permute.xlu0 %136
    %140 = vset.pattern.permute.xlu0 0
    %141 = vperm.xlu0 %140, %v74
    %v142 = vpop.permute.xlu0 %141
    %145 = vset.pattern.permute.xlu0 0
    %146 = vperm.xlu0 %145, %v75
    %v147 = vpop.permute.xlu0 %146
    %150 = vset.pattern.permute.xlu0 0
    %151 = vperm.xlu0 %150, %v76
    %v152 = vpop.permute.xlu0 %151
    %155 = vset.pattern.permute.xlu0 0
    %156 = vperm.xlu0 %155, %v77
    %v157 = vpop.permute.xlu0 %156
    %v160 = vlaneseq
    %v161 = vshrl.u32 %v160, 7
    %v162 = vsub.s32 0, %v161
    %v163 = vrot.slane %v78, %v162
    %v164 = vlaneseq
    %v165 = vshrl.u32 %v164, 7
    %v166 = vsub.s32 1, %v165
    %v167 = vrot.slane %v78, %v166
    %v168 = vlaneseq
    %v169 = vshrl.u32 %v168, 7
    %v170 = vsub.s32 2, %v169
    %v171 = vrot.slane %v78, %v170
    %v172 = vlaneseq
    %v173 = vshrl.u32 %v172, 7
    %v174 = vsub.s32 3, %v173
    %v175 = vrot.slane %v78, %v174
    %v180 = vmul.f32 %v82, %v163
    %v181 = vmul.f32 %v82, %v167
    %v182 = vmul.f32 %v82, %v171
    %v183 = vmul.f32 %v82, %v175
    %v184 = vmul.f32 %v87, %v163
    %v185 = vmul.f32 %v87, %v167
    %v186 = vmul.f32 %v87, %v171
    %v187 = vmul.f32 %v87, %v175
    %v188 = vmul.f32 %v92, %v163
    %v189 = vmul.f32 %v92, %v167
    %v190 = vmul.f32 %v92, %v171
    %v191 = vmul.f32 %v92, %v175
    %v192 = vmul.f32 %v97, %v163
    %v193 = vmul.f32 %v97, %v167
    %v194 = vmul.f32 %v97, %v171
    %v195 = vmul.f32 %v97, %v175
    %v196 = vmul.f32 %v102, %v163
    %v197 = vmul.f32 %v102, %v167
    %v198 = vmul.f32 %v102, %v171
    %v199 = vmul.f32 %v102, %v175
    %v200 = vmul.f32 %v107, %v163
    %v201 = vmul.f32 %v107, %v167
    %v202 = vmul.f32 %v107, %v171
    %v203 = vmul.f32 %v107, %v175
    %v204 = vmul.f32 %v112, %v163
    %v205 = vmul.f32 %v112, %v167
    %v206 = vmul.f32 %v112, %v171
    %v207 = vmul.f32 %v112, %v175
    %v208 = vmul.f32 %v117, %v163
    %v209 = vmul.f32 %v117, %v167
    %v210 = vmul.f32 %v117, %v171
    %v211 = vmul.f32 %v117, %v175
    %v212 = vmul.f32 %v122, %v163
    %v213 = vmul.f32 %v122, %v167
    %v214 = vmul.f32 %v122, %v171
    %v215 = vmul.f32 %v122, %v175
    %v216 = vmul.f32 %v127, %v163
    %v217 = vmul.f32 %v127, %v167
    %v218 = vmul.f32 %v127, %v171
    %v219 = vmul.f32 %v127, %v175
    %v220 = vmul.f32 %v132, %v163
    %v221 = vmul.f32 %v132, %v167
    %v222 = vmul.f32 %v132, %v171
    %v223 = vmul.f32 %v132, %v175
    %v224 = vmul.f32 %v137, %v163
    %v225 = vmul.f32 %v137, %v167
    %v226 = vmul.f32 %v137, %v171
    %v227 = vmul.f32 %v137, %v175
    %v228 = vmul.f32 %v142, %v163
    %v229 = vmul.f32 %v142, %v167
    %v230 = vmul.f32 %v142, %v171
    %v231 = vmul.f32 %v142, %v175
    %v232 = vmul.f32 %v147, %v163
    %v233 = vmul.f32 %v147, %v167
    %v234 = vmul.f32 %v147, %v171
    %v235 = vmul.f32 %v147, %v175
    %v236 = vmul.f32 %v152, %v163
    %v237 = vmul.f32 %v152, %v167
    %v238 = vmul.f32 %v152, %v171
    %v239 = vmul.f32 %v152, %v175
    %v240 = vmul.f32 %v157, %v163
    %v241 = vmul.f32 %v157, %v167
    %v242 = vmul.f32 %v157, %v171
    %v243 = vmul.f32 %v157, %v175
    %s244 = scalar_lea.vmem %s1, 1
    %v245 = vld [vmem:[%s244] ss:$2 sm:$0xf]
    %246 = vset.pattern.permute.xlu0 1
    %247 = vperm.xlu0 %246, %v62
    %v248 = vpop.permute.xlu0 %247
    %250 = vset.pattern.permute.xlu0 1
    %251 = vperm.xlu0 %250, %v63
    %v252 = vpop.permute.xlu0 %251
    %254 = vset.pattern.permute.xlu0 1
    %255 = vperm.xlu0 %254, %v64
    %v256 = vpop.permute.xlu0 %255
    %258 = vset.pattern.permute.xlu0 1
    %259 = vperm.xlu0 %258, %v65
    %v260 = vpop.permute.xlu0 %259
    %262 = vset.pattern.permute.xlu0 1
    %263 = vperm.xlu0 %262, %v66
    %v264 = vpop.permute.xlu0 %263
    %266 = vset.pattern.permute.xlu0 1
    %267 = vperm.xlu0 %266, %v67
    %v268 = vpop.permute.xlu0 %267
    %270 = vset.pattern.permute.xlu0 1
    %271 = vperm.xlu0 %270, %v68
    %v272 = vpop.permute.xlu0 %271
    %274 = vset.pattern.permute.xlu0 1
    %275 = vperm.xlu0 %274, %v69
    %v276 = vpop.permute.xlu0 %275
    %278 = vset.pattern.permute.xlu0 1
    %279 = vperm.xlu0 %278, %v70
    %v280 = vpop.permute.xlu0 %279
    %282 = vset.pattern.permute.xlu0 1
    %283 = vperm.xlu0 %282, %v71
    %v284 = vpop.permute.xlu0 %283
    %286 = vset.pattern.permute.xlu0 1
    %287 = vperm.xlu0 %286, %v72
    %v288 = vpop.permute.xlu0 %287
    %290 = vset.pattern.permute.xlu0 1
    %291 = vperm.xlu0 %290, %v73
    %v292 = vpop.permute.xlu0 %291
    %294 = vset.pattern.permute.xlu0 1
    %295 = vperm.xlu0 %294, %v74
    %v296 = vpop.permute.xlu0 %295
    %298 = vset.pattern.permute.xlu0 1
    %299 = vperm.xlu0 %298, %v75
    %v300 = vpop.permute.xlu0 %299
    %302 = vset.pattern.permute.xlu0 1
    %303 = vperm.xlu0 %302, %v76
    %v304 = vpop.permute.xlu0 %303
    %306 = vset.pattern.permute.xlu0 1
    %307 = vperm.xlu0 %306, %v77
    %v308 = vpop.permute.xlu0 %307
    %v311 = vlaneseq
    %v312 = vshrl.u32 %v311, 7
    %v313 = vsub.s32 0, %v312
    %v314 = vrot.slane %v245, %v313
    %v315 = vlaneseq
    %v316 = vshrl.u32 %v315, 7
    %v317 = vsub.s32 1, %v316
    %v318 = vrot.slane %v245, %v317
    %v319 = vlaneseq
    %v320 = vshrl.u32 %v319, 7
    %v321 = vsub.s32 2, %v320
    %v322 = vrot.slane %v245, %v321
    %v323 = vlaneseq
    %v324 = vshrl.u32 %v323, 7
    %v325 = vsub.s32 3, %v324
    %v326 = vrot.slane %v245, %v325
    %v331 = vmul.f32 %v248, %v314
    %v332 = vmul.f32 %v248, %v318
    %v333 = vmul.f32 %v248, %v322
    %v334 = vmul.f32 %v248, %v326
    %v335 = vmul.f32 %v252, %v314
    %v336 = vmul.f32 %v252, %v318
    %v337 = vmul.f32 %v252, %v322
    %v338 = vmul.f32 %v252, %v326
    %v339 = vmul.f32 %v256, %v314
    %v340 = vmul.f32 %v256, %v318
    %v341 = vmul.f32 %v256, %v322
    %v342 = vmul.f32 %v256, %v326
    %v343 = vmul.f32 %v260, %v314
    %v344 = vmul.f32 %v260, %v318
    %v345 = vmul.f32 %v260, %v322
    %v346 = vmul.f32 %v260, %v326
    %v347 = vmul.f32 %v264, %v314
    %v348 = vmul.f32 %v264, %v318
    %v349 = vmul.f32 %v264, %v322
    %v350 = vmul.f32 %v264, %v326
    %v351 = vmul.f32 %v268, %v314
    %v352 = vmul.f32 %v268, %v318
    %v353 = vmul.f32 %v268, %v322
    %v354 = vmul.f32 %v268, %v326
    %v355 = vmul.f32 %v272, %v314
    %v356 = vmul.f32 %v272, %v318
    %v357 = vmul.f32 %v272, %v322
    %v358 = vmul.f32 %v272, %v326
    %v359 = vmul.f32 %v276, %v314
    %v360 = vmul.f32 %v276, %v318
    %v361 = vmul.f32 %v276, %v322
    %v362 = vmul.f32 %v276, %v326
    %v363 = vmul.f32 %v280, %v314
    %v364 = vmul.f32 %v280, %v318
    %v365 = vmul.f32 %v280, %v322
    %v366 = vmul.f32 %v280, %v326
    %v367 = vmul.f32 %v284, %v314
    %v368 = vmul.f32 %v284, %v318
    %v369 = vmul.f32 %v284, %v322
    %v370 = vmul.f32 %v284, %v326
    %v371 = vmul.f32 %v288, %v314
    %v372 = vmul.f32 %v288, %v318
    %v373 = vmul.f32 %v288, %v322
    %v374 = vmul.f32 %v288, %v326
    %v375 = vmul.f32 %v292, %v314
    %v376 = vmul.f32 %v292, %v318
    %v377 = vmul.f32 %v292, %v322
    %v378 = vmul.f32 %v292, %v326
    %v379 = vmul.f32 %v296, %v314
    %v380 = vmul.f32 %v296, %v318
    %v381 = vmul.f32 %v296, %v322
    %v382 = vmul.f32 %v296, %v326
    %v383 = vmul.f32 %v300, %v314
    %v384 = vmul.f32 %v300, %v318
    %v385 = vmul.f32 %v300, %v322
    %v386 = vmul.f32 %v300, %v326
    %v387 = vmul.f32 %v304, %v314
    %v388 = vmul.f32 %v304, %v318
    %v389 = vmul.f32 %v304, %v322
    %v390 = vmul.f32 %v304, %v326
    %v391 = vmul.f32 %v308, %v314
    %v392 = vmul.f32 %v308, %v318
    %v393 = vmul.f32 %v308, %v322
    %v394 = vmul.f32 %v308, %v326
    %v395 = vadd.f32 %v180, %v331
    %v396 = vadd.f32 %v181, %v332
    %v397 = vadd.f32 %v182, %v333
    %v398 = vadd.f32 %v183, %v334
    %v399 = vadd.f32 %v184, %v335
    %v400 = vadd.f32 %v185, %v336
    %v401 = vadd.f32 %v186, %v337
    %v402 = vadd.f32 %v187, %v338
    %v403 = vadd.f32 %v188, %v339
    %v404 = vadd.f32 %v189, %v340
    %v405 = vadd.f32 %v190, %v341
    %v406 = vadd.f32 %v191, %v342
    %v407 = vadd.f32 %v192, %v343
    %v408 = vadd.f32 %v193, %v344
    %v409 = vadd.f32 %v194, %v345
    %v410 = vadd.f32 %v195, %v346
    %v411 = vadd.f32 %v196, %v347
    %v412 = vadd.f32 %v197, %v348
    %v413 = vadd.f32 %v198, %v349
    %v414 = vadd.f32 %v199, %v350
    %v415 = vadd.f32 %v200, %v351
    %v416 = vadd.f32 %v201, %v352
    %v417 = vadd.f32 %v202, %v353
    %v418 = vadd.f32 %v203, %v354
    %v419 = vadd.f32 %v204, %v355
    %v420 = vadd.f32 %v205, %v356
    %v421 = vadd.f32 %v206, %v357
    %v422 = vadd.f32 %v207, %v358
    %v423 = vadd.f32 %v208, %v359
    %v424 = vadd.f32 %v209, %v360
    %v425 = vadd.f32 %v210, %v361
    %v426 = vadd.f32 %v211, %v362
    %v427 = vadd.f32 %v212, %v363
    %v428 = vadd.f32 %v213, %v364
    %v429 = vadd.f32 %v214, %v365
    %v430 = vadd.f32 %v215, %v366
    %v431 = vadd.f32 %v216, %v367
    %v432 = vadd.f32 %v217, %v368
    %v433 = vadd.f32 %v218, %v369
    %v434 = vadd.f32 %v219, %v370
    %v435 = vadd.f32 %v220, %v371
    %v436 = vadd.f32 %v221, %v372
    %v437 = vadd.f32 %v222, %v373
    %v438 = vadd.f32 %v223, %v374
    %v439 = vadd.f32 %v224, %v375
    %v440 = vadd.f32 %v225, %v376
    %v441 = vadd.f32 %v226, %v377
    %v442 = vadd.f32 %v227, %v378
    %v443 = vadd.f32 %v228, %v379
    %v444 = vadd.f32 %v229, %v380
    %v445 = vadd.f32 %v230, %v381
    %v446 = vadd.f32 %v231, %v382
    %v447 = vadd.f32 %v232, %v383
    %v448 = vadd.f32 %v233, %v384
    %v449 = vadd.f32 %v234, %v385
    %v450 = vadd.f32 %v235, %v386
    %v451 = vadd.f32 %v236, %v387
    %v452 = vadd.f32 %v237, %v388
    %v453 = vadd.f32 %v238, %v389
    %v454 = vadd.f32 %v239, %v390
    %v455 = vadd.f32 %v240, %v391
    %v456 = vadd.f32 %v241, %v392
    %v457 = vadd.f32 %v242, %v393
    %v458 = vadd.f32 %v243, %v394
    %v459 = vld [vmem:[%s2] sm:$0xf]
    %v461 = vlaneseq
    %v462 = vshrl.u32 %v461, 7
    %v463 = vsub.s32 0, %v462
    %v464 = vrot.slane %v459, %v463
    %v465 = vlaneseq
    %v466 = vshrl.u32 %v465, 7
    %v467 = vsub.s32 1, %v466
    %v468 = vrot.slane %v459, %v467
    %v469 = vlaneseq
    %v470 = vshrl.u32 %v469, 7
    %v471 = vsub.s32 2, %v470
    %v472 = vrot.slane %v459, %v471
    %v473 = vlaneseq
    %v474 = vshrl.u32 %v473, 7
    %v475 = vsub.s32 3, %v474
    %v476 = vrot.slane %v459, %v475
    %v481 = vadd.f32 %v395, %v464
    %v482 = vadd.f32 %v396, %v468
    %v483 = vadd.f32 %v397, %v472
    %v484 = vadd.f32 %v398, %v476
    %v485 = vadd.f32 %v399, %v464
    %v486 = vadd.f32 %v400, %v468
    %v487 = vadd.f32 %v401, %v472
    %v488 = vadd.f32 %v402, %v476
    %v489 = vadd.f32 %v403, %v464
    %v490 = vadd.f32 %v404, %v468
    %v491 = vadd.f32 %v405, %v472
    %v492 = vadd.f32 %v406, %v476
    %v493 = vadd.f32 %v407, %v464
    %v494 = vadd.f32 %v408, %v468
    %v495 = vadd.f32 %v409, %v472
    %v496 = vadd.f32 %v410, %v476
    %v497 = vadd.f32 %v411, %v464
    %v498 = vadd.f32 %v412, %v468
    %v499 = vadd.f32 %v413, %v472
    %v500 = vadd.f32 %v414, %v476
    %v501 = vadd.f32 %v415, %v464
    %v502 = vadd.f32 %v416, %v468
    %v503 = vadd.f32 %v417, %v472
    %v504 = vadd.f32 %v418, %v476
    %v505 = vadd.f32 %v419, %v464
    %v506 = vadd.f32 %v420, %v468
    %v507 = vadd.f32 %v421, %v472
    %v508 = vadd.f32 %v422, %v476
    %v509 = vadd.f32 %v423, %v464
    %v510 = vadd.f32 %v424, %v468
    %v511 = vadd.f32 %v425, %v472
    %v512 = vadd.f32 %v426, %v476
    %v513 = vadd.f32 %v427, %v464
    %v514 = vadd.f32 %v428, %v468
    %v515 = vadd.f32 %v429, %v472
    %v516 = vadd.f32 %v430, %v476
    %v517 = vadd.f32 %v431, %v464
    %v518 = vadd.f32 %v432, %v468
    %v519 = vadd.f32 %v433, %v472
    %v520 = vadd.f32 %v434, %v476
    %v521 = vadd.f32 %v435, %v464
    %v522 = vadd.f32 %v436, %v468
    %v523 = vadd.f32 %v437, %v472
    %v524 = vadd.f32 %v438, %v476
    %v525 = vadd.f32 %v439, %v464
    %v526 = vadd.f32 %v440, %v468
    %v527 = vadd.f32 %v441, %v472
    %v528 = vadd.f32 %v442, %v476
    %v529 = vadd.f32 %v443, %v464
    %v530 = vadd.f32 %v444, %v468
    %v531 = vadd.f32 %v445, %v472
    %v532 = vadd.f32 %v446, %v476
    %v533 = vadd.f32 %v447, %v464
    %v534 = vadd.f32 %v448, %v468
    %v535 = vadd.f32 %v449, %v472
    %v536 = vadd.f32 %v450, %v476
    %v537 = vadd.f32 %v451, %v464
    %v538 = vadd.f32 %v452, %v468
    %v539 = vadd.f32 %v453, %v472
    %v540 = vadd.f32 %v454, %v476
    %v541 = vadd.f32 %v455, %v464
    %v542 = vadd.f32 %v456, %v468
    %v543 = vadd.f32 %v457, %v472
    %v544 = vadd.f32 %v458, %v476
    %v545 = vmax.f32 %v481, 0.0
    %v546 = vmax.f32 %v482, 0.0
    %v547 = vmax.f32 %v483, 0.0
    %v548 = vmax.f32 %v484, 0.0
    %v549 = vmax.f32 %v485, 0.0
    %v550 = vmax.f32 %v486, 0.0
    %v551 = vmax.f32 %v487, 0.0
    %v552 = vmax.f32 %v488, 0.0
    %v553 = vmax.f32 %v489, 0.0
    %v554 = vmax.f32 %v490, 0.0
    %v555 = vmax.f32 %v491, 0.0
    %v556 = vmax.f32 %v492, 0.0
    %v557 = vmax.f32 %v493, 0.0
    %v558 = vmax.f32 %v494, 0.0
    %v559 = vmax.f32 %v495, 0.0
    %v560 = vmax.f32 %v496, 0.0
    %v561 = vmax.f32 %v497, 0.0
    %v562 = vmax.f32 %v498, 0.0
    %v563 = vmax.f32 %v499, 0.0
    %v564 = vmax.f32 %v500, 0.0
    %v565 = vmax.f32 %v501, 0.0
    %v566 = vmax.f32 %v502, 0.0
    %v567 = vmax.f32 %v503, 0.0
    %v568 = vmax.f32 %v504, 0.0
    %v569 = vmax.f32 %v505, 0.0
    %v570 = vmax.f32 %v506, 0.0
    %v571 = vmax.f32 %v507, 0.0
    %v572 = vmax.f32 %v508, 0.0
    %v573 = vmax.f32 %v509, 0.0
    %v574 = vmax.f32 %v510, 0.0
    %v575 = vmax.f32 %v511, 0.0
    %v576 = vmax.f32 %v512, 0.0
    %v577 = vmax.f32 %v513, 0.0
    %v578 = vmax.f32 %v514, 0.0
    %v579 = vmax.f32 %v515, 0.0
    %v580 = vmax.f32 %v516, 0.0
    %v581 = vmax.f32 %v517, 0.0
    %v582 = vmax.f32 %v518, 0.0
    %v583 = vmax.f32 %v519, 0.0
    %v584 = vmax.f32 %v520, 0.0
    %v585 = vmax.f32 %v521, 0.0
    %v586 = vmax.f32 %v522, 0.0
    %v587 = vmax.f32 %v523, 0.0
    %v588 = vmax.f32 %v524, 0.0
    %v589 = vmax.f32 %v525, 0.0
    %v590 = vmax.f32 %v526, 0.0
    %v591 = vmax.f32 %v527, 0.0
    %v592 = vmax.f32 %v528, 0.0
    %v593 = vmax.f32 %v529, 0.0
    %v594 = vmax.f32 %v530, 0.0
    %v595 = vmax.f32 %v531, 0.0
    %v596 = vmax.f32 %v532, 0.0
    %v597 = vmax.f32 %v533, 0.0
    %v598 = vmax.f32 %v534, 0.0
    %v599 = vmax.f32 %v535, 0.0
    %v600 = vmax.f32 %v536, 0.0
    %v601 = vmax.f32 %v537, 0.0
    %v602 = vmax.f32 %v538, 0.0
    %v603 = vmax.f32 %v539, 0.0
    %v604 = vmax.f32 %v540, 0.0
    %v605 = vmax.f32 %v541, 0.0
    %v606 = vmax.f32 %v542, 0.0
    %v607 = vmax.f32 %v543, 0.0
    %v608 = vmax.f32 %v544, 0.0
    %v609 = vpack.c.bf16 %v549, %v545
    %v610 = vpack.c.bf16 %v550, %v546
    %v611 = vpack.c.bf16 %v551, %v547
    %v612 = vpack.c.bf16 %v552, %v548
    %v613 = vpack.c.bf16 %v557, %v553
    %v614 = vpack.c.bf16 %v558, %v554
    %v615 = vpack.c.bf16 %v559, %v555
    %v616 = vpack.c.bf16 %v560, %v556
    %v617 = vpack.c.bf16 %v565, %v561
    %v618 = vpack.c.bf16 %v566, %v562
    %v619 = vpack.c.bf16 %v567, %v563
    %v620 = vpack.c.bf16 %v568, %v564
    %v621 = vpack.c.bf16 %v573, %v569
    %v622 = vpack.c.bf16 %v574, %v570
    %v623 = vpack.c.bf16 %v575, %v571
    %v624 = vpack.c.bf16 %v576, %v572
    %v625 = vpack.c.bf16 %v581, %v577
    %v626 = vpack.c.bf16 %v582, %v578
    %v627 = vpack.c.bf16 %v583, %v579
    %v628 = vpack.c.bf16 %v584, %v580
    %v629 = vpack.c.bf16 %v589, %v585
    %v630 = vpack.c.bf16 %v590, %v586
    %v631 = vpack.c.bf16 %v591, %v587
    %v632 = vpack.c.bf16 %v592, %v588
    %v633 = vpack.c.bf16 %v597, %v593
    %v634 = vpack.c.bf16 %v598, %v594
    %v635 = vpack.c.bf16 %v599, %v595
    %v636 = vpack.c.bf16 %v600, %v596
    %v637 = vpack.c.bf16 %v605, %v601
    %v638 = vpack.c.bf16 %v606, %v602
    %v639 = vpack.c.bf16 %v607, %v603
    %v640 = vpack.c.bf16 %v608, %v604
    %v641 = vld [vmem:[#allocation3] sm:$0xff]
    %v642 = vld [vmem:[#allocation3 + $0x8] sm:$0xff]
    %v643 = vld [vmem:[#allocation3 + $0x10] sm:$0xff]
    %v644 = vld [vmem:[#allocation3 + $0x18] sm:$0xff]
    %v645 = vld [vmem:[#allocation3 + $0x20] sm:$0xff]
    %v646 = vld [vmem:[#allocation3 + $0x28] sm:$0xff]
    %v647 = vld [vmem:[#allocation3 + $0x30] sm:$0xff]
    %v648 = vld [vmem:[#allocation3 + $0x38] sm:$0xff]
    %v649 = vld [vmem:[#allocation3 + $0x40] sm:$0xff]
    %v650 = vld [vmem:[#allocation3 + $0x48] sm:$0xff]
    %v651 = vld [vmem:[#allocation3 + $0x50] sm:$0xff]
    %v652 = vld [vmem:[#allocation3 + $0x58] sm:$0xff]
    %v653 = vld [vmem:[#allocation3 + $0x60] sm:$0xff]
    %v654 = vld [vmem:[#allocation3 + $0x68] sm:$0xff]
    %v655 = vld [vmem:[#allocation3 + $0x70] sm:$0xff]
    %v656 = vld [vmem:[#allocation3 + $0x78] sm:$0xff]
    %v657 = vld [vmem:[#allocation3 + $0x80] sm:$0xff]
    %v658 = vld [vmem:[#allocation3 + $0x88] sm:$0xff]
    %v659 = vld [vmem:[#allocation3 + $0x90] sm:$0xff]
    %v660 = vld [vmem:[#allocation3 + $0x98] sm:$0xff]
    %v661 = vld [vmem:[#allocation3 + $0xa0] sm:$0xff]
    %v662 = vld [vmem:[#allocation3 + $0xa8] sm:$0xff]
    %v663 = vld [vmem:[#allocation3 + $0xb0] sm:$0xff]
    %v664 = vld [vmem:[#allocation3 + $0xb8] sm:$0xff]
    %v665 = vld [vmem:[#allocation3 + $0xc0] sm:$0xff]
    %v666 = vld [vmem:[#allocation3 + $0xc8] sm:$0xff]
    %v667 = vld [vmem:[#allocation3 + $0xd0] sm:$0xff]
    %v668 = vld [vmem:[#allocation3 + $0xd8] sm:$0xff]
    %v669 = vld [vmem:[#allocation3 + $0xe0] sm:$0xff]
    %v670 = vld [vmem:[#allocation3 + $0xe8] sm:$0xff]
    %v671 = vld [vmem:[#allocation3 + $0xf0] sm:$0xff]
    %v672 = vld [vmem:[#allocation3 + $0xf8] sm:$0xff]
    %v673 = vld [vmem:[#allocation3 + $0x100] sm:$0xff]
    %v674 = vld [vmem:[#allocation3 + $0x108] sm:$0xff]
    %v675 = vld [vmem:[#allocation3 + $0x110] sm:$0xff]
    %v676 = vld [vmem:[#allocation3 + $0x118] sm:$0xff]
    %v677 = vld [vmem:[#allocation3 + $0x120] sm:$0xff]
    %v678 = vld [vmem:[#allocation3 + $0x128] sm:$0xff]
    %v679 = vld [vmem:[#allocation3 + $0x130] sm:$0xff]
    %v680 = vld [vmem:[#allocation3 + $0x138] sm:$0xff]
    %v681 = vld [vmem:[#allocation3 + $0x140] sm:$0xff]
    %v682 = vld [vmem:[#allocation3 + $0x148] sm:$0xff]
    %v683 = vld [vmem:[#allocation3 + $0x150] sm:$0xff]
    %v684 = vld [vmem:[#allocation3 + $0x158] sm:$0xff]
    %v685 = vld [vmem:[#allocation3 + $0x160] sm:$0xff]
    %v686 = vld [vmem:[#allocation3 + $0x168] sm:$0xff]
    %v687 = vld [vmem:[#allocation3 + $0x170] sm:$0xff]
    %v688 = vld [vmem:[#allocation3 + $0x178] sm:$0xff]
    %v689 = vld [vmem:[#allocation3 + $0x180] sm:$0xff]
    %v690 = vld [vmem:[#allocation3 + $0x188] sm:$0xff]
    %v691 = vld [vmem:[#allocation3 + $0x190] sm:$0xff]
    %v692 = vld [vmem:[#allocation3 + $0x198] sm:$0xff]
    %v693 = vld [vmem:[#allocation3 + $0x1a0] sm:$0xff]
    %v694 = vld [vmem:[#allocation3 + $0x1a8] sm:$0xff]
    %v695 = vld [vmem:[#allocation3 + $0x1b0] sm:$0xff]
    %v696 = vld [vmem:[#allocation3 + $0x1b8] sm:$0xff]
    %v697 = vld [vmem:[#allocation3 + $0x1c0] sm:$0xff]
    %v698 = vld [vmem:[#allocation3 + $0x1c8] sm:$0xff]
    %v699 = vld [vmem:[#allocation3 + $0x1d0] sm:$0xff]
    %v700 = vld [vmem:[#allocation3 + $0x1d8] sm:$0xff]
    %v701 = vld [vmem:[#allocation3 + $0x1e0] sm:$0xff]
    %v702 = vld [vmem:[#allocation3 + $0x1e8] sm:$0xff]
    %v703 = vld [vmem:[#allocation3 + $0x1f0] sm:$0xff]
    %v704 = vld [vmem:[#allocation3 + $0x1f8] sm:$0xff]
    %v705 = vld [vmem:[#allocation3 + $0x200] sm:$0xff]
    %v706 = vld [vmem:[#allocation3 + $0x208] sm:$0xff]
    %v707 = vld [vmem:[#allocation3 + $0x210] sm:$0xff]
    %v708 = vld [vmem:[#allocation3 + $0x218] sm:$0xff]
    %v709 = vld [vmem:[#allocation3 + $0x220] sm:$0xff]
    %v710 = vld [vmem:[#allocation3 + $0x228] sm:$0xff]
    %v711 = vld [vmem:[#allocation3 + $0x230] sm:$0xff]
    %v712 = vld [vmem:[#allocation3 + $0x238] sm:$0xff]
    %v713 = vld [vmem:[#allocation3 + $0x240] sm:$0xff]
    %v714 = vld [vmem:[#allocation3 + $0x248] sm:$0xff]
    %v715 = vld [vmem:[#allocation3 + $0x250] sm:$0xff]
    %v716 = vld [vmem:[#allocation3 + $0x258] sm:$0xff]
    %v717 = vld [vmem:[#allocation3 + $0x260] sm:$0xff]
    %v718 = vld [vmem:[#allocation3 + $0x268] sm:$0xff]
    %v719 = vld [vmem:[#allocation3 + $0x270] sm:$0xff]
    %v720 = vld [vmem:[#allocation3 + $0x278] sm:$0xff]
    %v721 = vld [vmem:[#allocation3 + $0x280] sm:$0xff]
    %v722 = vld [vmem:[#allocation3 + $0x288] sm:$0xff]
    %v723 = vld [vmem:[#allocation3 + $0x290] sm:$0xff]
    %v724 = vld [vmem:[#allocation3 + $0x298] sm:$0xff]
    %v725 = vld [vmem:[#allocation3 + $0x2a0] sm:$0xff]
    %v726 = vld [vmem:[#allocation3 + $0x2a8] sm:$0xff]
    %v727 = vld [vmem:[#allocation3 + $0x2b0] sm:$0xff]
    %v728 = vld [vmem:[#allocation3 + $0x2b8] sm:$0xff]
    %v729 = vld [vmem:[#allocation3 + $0x2c0] sm:$0xff]
    %v730 = vld [vmem:[#allocation3 + $0x2c8] sm:$0xff]
    %v731 = vld [vmem:[#allocation3 + $0x2d0] sm:$0xff]
    %v732 = vld [vmem:[#allocation3 + $0x2d8] sm:$0xff]
    %v733 = vld [vmem:[#allocation3 + $0x2e0] sm:$0xff]
    %v734 = vld [vmem:[#allocation3 + $0x2e8] sm:$0xff]
    %v735 = vld [vmem:[#allocation3 + $0x2f0] sm:$0xff]
    %v736 = vld [vmem:[#allocation3 + $0x2f8] sm:$0xff]
    %v737 = vld [vmem:[#allocation3 + $0x300] sm:$0xff]
    %v738 = vld [vmem:[#allocation3 + $0x308] sm:$0xff]
    %v739 = vld [vmem:[#allocation3 + $0x310] sm:$0xff]
    %v740 = vld [vmem:[#allocation3 + $0x318] sm:$0xff]
    %v741 = vld [vmem:[#allocation3 + $0x320] sm:$0xff]
    %v742 = vld [vmem:[#allocation3 + $0x328] sm:$0xff]
    %v743 = vld [vmem:[#allocation3 + $0x330] sm:$0xff]
    %v744 = vld [vmem:[#allocation3 + $0x338] sm:$0xff]
    %v745 = vld [vmem:[#allocation3 + $0x340] sm:$0xff]
    %v746 = vld [vmem:[#allocation3 + $0x348] sm:$0xff]
    %v747 = vld [vmem:[#allocation3 + $0x350] sm:$0xff]
    %v748 = vld [vmem:[#allocation3 + $0x358] sm:$0xff]
    %v749 = vld [vmem:[#allocation3 + $0x360] sm:$0xff]
    %v750 = vld [vmem:[#allocation3 + $0x368] sm:$0xff]
    %v751 = vld [vmem:[#allocation3 + $0x370] sm:$0xff]
    %v752 = vld [vmem:[#allocation3 + $0x378] sm:$0xff]
    %v753 = vld [vmem:[#allocation3 + $0x380] sm:$0xff]
    %v754 = vld [vmem:[#allocation3 + $0x388] sm:$0xff]
    %v755 = vld [vmem:[#allocation3 + $0x390] sm:$0xff]
    %v756 = vld [vmem:[#allocation3 + $0x398] sm:$0xff]
    %v757 = vld [vmem:[#allocation3 + $0x3a0] sm:$0xff]
    %v758 = vld [vmem:[#allocation3 + $0x3a8] sm:$0xff]
    %v759 = vld [vmem:[#allocation3 + $0x3b0] sm:$0xff]
    %v760 = vld [vmem:[#allocation3 + $0x3b8] sm:$0xff]
    %v761 = vld [vmem:[#allocation3 + $0x3c0] sm:$0xff]
    %v762 = vld [vmem:[#allocation3 + $0x3c8] sm:$0xff]
    %v763 = vld [vmem:[#allocation3 + $0x3d0] sm:$0xff]
    %v764 = vld [vmem:[#allocation3 + $0x3d8] sm:$0xff]
    %v765 = vld [vmem:[#allocation3 + $0x3e0] sm:$0xff]
    %v766 = vld [vmem:[#allocation3 + $0x3e8] sm:$0xff]
    %v767 = vld [vmem:[#allocation3 + $0x3f0] sm:$0xff]
    %v768 = vld [vmem:[#allocation3 + $0x3f8] sm:$0xff]
    %v769 = vld [vmem:[%s4] sm:$0xf]
    %v771 = vlaneseq
    %v772 = vshrl.u32 %v771, 7
    %v773 = vsub.s32 0, %v772
    %v774 = vrot.slane %v769, %v773
    %v775 = vlaneseq
    %v776 = vshrl.u32 %v775, 7
    %v777 = vsub.s32 1, %v776
    %v778 = vrot.slane %v769, %v777
    %v779 = vlaneseq
    %v780 = vshrl.u32 %v779, 7
    %v781 = vsub.s32 2, %v780
    %v782 = vrot.slane %v769, %v781
    %v783 = vlaneseq
    %v784 = vshrl.u32 %v783, 7
    %v785 = vsub.s32 3, %v784
    %v786 = vrot.slane %v769, %v785
    %v919 = vunpack.c.l.b16 %v641
    %v920 = vunpack.c.h.b16 %v641
    %v921 = vunpack.c.l.b16 %v642
    %v922 = vunpack.c.h.b16 %v642
    %v923 = vunpack.c.l.b16 %v643
    %v924 = vunpack.c.h.b16 %v643
    %v925 = vunpack.c.l.b16 %v644
    %v926 = vunpack.c.h.b16 %v644
    %v927 = vunpack.c.l.b16 %v645
    %v928 = vunpack.c.h.b16 %v645
    %v929 = vunpack.c.l.b16 %v646
    %v930 = vunpack.c.h.b16 %v646
    %v931 = vunpack.c.l.b16 %v647
    %v932 = vunpack.c.h.b16 %v647
    %v933 = vunpack.c.l.b16 %v648
    %v934 = vunpack.c.h.b16 %v648
    %v935 = vunpack.c.l.b16 %v649
    %v936 = vunpack.c.h.b16 %v649
    %v937 = vunpack.c.l.b16 %v650
    %v938 = vunpack.c.h.b16 %v650
    %v939 = vunpack.c.l.b16 %v651
    %v940 = vunpack.c.h.b16 %v651
    %v941 = vunpack.c.l.b16 %v652
    %v942 = vunpack.c.h.b16 %v652
    %v943 = vunpack.c.l.b16 %v653
    %v944 = vunpack.c.h.b16 %v653
    %v945 = vunpack.c.l.b16 %v654
    %v946 = vunpack.c.h.b16 %v654
    %v947 = vunpack.c.l.b16 %v655
    %v948 = vunpack.c.h.b16 %v655
    %v949 = vunpack.c.l.b16 %v656
    %v950 = vunpack.c.h.b16 %v656
    %v951 = vunpack.c.l.b16 %v657
    %v952 = vunpack.c.h.b16 %v657
    %v953 = vunpack.c.l.b16 %v658
    %v954 = vunpack.c.h.b16 %v658
    %v955 = vunpack.c.l.b16 %v659
    %v956 = vunpack.c.h.b16 %v659
    %v957 = vunpack.c.l.b16 %v660
    %v958 = vunpack.c.h.b16 %v660
    %v959 = vunpack.c.l.b16 %v661
    %v960 = vunpack.c.h.b16 %v661
    %v961 = vunpack.c.l.b16 %v662
    %v962 = vunpack.c.h.b16 %v662
    %v963 = vunpack.c.l.b16 %v663
    %v964 = vunpack.c.h.b16 %v663
    %v965 = vunpack.c.l.b16 %v664
    %v966 = vunpack.c.h.b16 %v664
    %v967 = vunpack.c.l.b16 %v665
    %v968 = vunpack.c.h.b16 %v665
    %v969 = vunpack.c.l.b16 %v666
    %v970 = vunpack.c.h.b16 %v666
    %v971 = vunpack.c.l.b16 %v667
    %v972 = vunpack.c.h.b16 %v667
    %v973 = vunpack.c.l.b16 %v668
    %v974 = vunpack.c.h.b16 %v668
    %v975 = vunpack.c.l.b16 %v669
    %v976 = vunpack.c.h.b16 %v669
    %v977 = vunpack.c.l.b16 %v670
    %v978 = vunpack.c.h.b16 %v670
    %v979 = vunpack.c.l.b16 %v671
    %v980 = vunpack.c.h.b16 %v671
    %v981 = vunpack.c.l.b16 %v672
    %v982 = vunpack.c.h.b16 %v672
    %v983 = vunpack.c.l.b16 %v673
    %v984 = vunpack.c.h.b16 %v673
    %v985 = vunpack.c.l.b16 %v674
    %v986 = vunpack.c.h.b16 %v674
    %v987 = vunpack.c.l.b16 %v675
    %v988 = vunpack.c.h.b16 %v675
    %v989 = vunpack.c.l.b16 %v676
    %v990 = vunpack.c.h.b16 %v676
    %v991 = vunpack.c.l.b16 %v677
    %v992 = vunpack.c.h.b16 %v677
    %v993 = vunpack.c.l.b16 %v678
    %v994 = vunpack.c.h.b16 %v678
    %v995 = vunpack.c.l.b16 %v679
    %v996 = vunpack.c.h.b16 %v679
    %v997 = vunpack.c.l.b16 %v680
    %v998 = vunpack.c.h.b16 %v680
    %v999 = vunpack.c.l.b16 %v681
    %v1000 = vunpack.c.h.b16 %v681
    %v1001 = vunpack.c.l.b16 %v682
    %v1002 = vunpack.c.h.b16 %v682
    %v1003 = vunpack.c.l.b16 %v683
    %v1004 = vunpack.c.h.b16 %v683
    %v1005 = vunpack.c.l.b16 %v684
    %v1006 = vunpack.c.h.b16 %v684
    %v1007 = vunpack.c.l.b16 %v685
    %v1008 = vunpack.c.h.b16 %v685
    %v1009 = vunpack.c.l.b16 %v686
    %v1010 = vunpack.c.h.b16 %v686
    %v1011 = vunpack.c.l.b16 %v687
    %v1012 = vunpack.c.h.b16 %v687
    %v1013 = vunpack.c.l.b16 %v688
    %v1014 = vunpack.c.h.b16 %v688
    %v1015 = vunpack.c.l.b16 %v689
    %v1016 = vunpack.c.h.b16 %v689
    %v1017 = vunpack.c.l.b16 %v690
    %v1018 = vunpack.c.h.b16 %v690
    %v1019 = vunpack.c.l.b16 %v691
    %v1020 = vunpack.c.h.b16 %v691
    %v1021 = vunpack.c.l.b16 %v692
    %v1022 = vunpack.c.h.b16 %v692
    %v1023 = vunpack.c.l.b16 %v693
    %v1024 = vunpack.c.h.b16 %v693
    %v1025 = vunpack.c.l.b16 %v694
    %v1026 = vunpack.c.h.b16 %v694
    %v1027 = vunpack.c.l.b16 %v695
    %v1028 = vunpack.c.h.b16 %v695
    %v1029 = vunpack.c.l.b16 %v696
    %v1030 = vunpack.c.h.b16 %v696
    %v1031 = vunpack.c.l.b16 %v697
    %v1032 = vunpack.c.h.b16 %v697
    %v1033 = vunpack.c.l.b16 %v698
    %v1034 = vunpack.c.h.b16 %v698
    %v1035 = vunpack.c.l.b16 %v699
    %v1036 = vunpack.c.h.b16 %v699
    %v1037 = vunpack.c.l.b16 %v700
    %v1038 = vunpack.c.h.b16 %v700
    %v1039 = vunpack.c.l.b16 %v701
    %v1040 = vunpack.c.h.b16 %v701
    %v1041 = vunpack.c.l.b16 %v702
    %v1042 = vunpack.c.h.b16 %v702
    %v1043 = vunpack.c.l.b16 %v703
    %v1044 = vunpack.c.h.b16 %v703
    %v1045 = vunpack.c.l.b16 %v704
    %v1046 = vunpack.c.h.b16 %v704
    %v1047 = vunpack.c.l.b16 %v705
    %v1048 = vunpack.c.h.b16 %v705
    %v1049 = vunpack.c.l.b16 %v706
    %v1050 = vunpack.c.h.b16 %v706
    %v1051 = vunpack.c.l.b16 %v707
    %v1052 = vunpack.c.h.b16 %v707
    %v1053 = vunpack.c.l.b16 %v708
    %v1054 = vunpack.c.h.b16 %v708
    %v1055 = vunpack.c.l.b16 %v709
    %v1056 = vunpack.c.h.b16 %v709
    %v1057 = vunpack.c.l.b16 %v710
    %v1058 = vunpack.c.h.b16 %v710
    %v1059 = vunpack.c.l.b16 %v711
    %v1060 = vunpack.c.h.b16 %v711
    %v1061 = vunpack.c.l.b16 %v712
    %v1062 = vunpack.c.h.b16 %v712
    %v1063 = vunpack.c.l.b16 %v713
    %v1064 = vunpack.c.h.b16 %v713
    %v1065 = vunpack.c.l.b16 %v714
    %v1066 = vunpack.c.h.b16 %v714
    %v1067 = vunpack.c.l.b16 %v715
    %v1068 = vunpack.c.h.b16 %v715
    %v1069 = vunpack.c.l.b16 %v716
    %v1070 = vunpack.c.h.b16 %v716
    %v1071 = vunpack.c.l.b16 %v717
    %v1072 = vunpack.c.h.b16 %v717
    %v1073 = vunpack.c.l.b16 %v718
    %v1074 = vunpack.c.h.b16 %v718
    %v1075 = vunpack.c.l.b16 %v719
    %v1076 = vunpack.c.h.b16 %v719
    %v1077 = vunpack.c.l.b16 %v720
    %v1078 = vunpack.c.h.b16 %v720
    %v1079 = vunpack.c.l.b16 %v721
    %v1080 = vunpack.c.h.b16 %v721
    %v1081 = vunpack.c.l.b16 %v722
    %v1082 = vunpack.c.h.b16 %v722
    %v1083 = vunpack.c.l.b16 %v723
    %v1084 = vunpack.c.h.b16 %v723
    %v1085 = vunpack.c.l.b16 %v724
    %v1086 = vunpack.c.h.b16 %v724
    %v1087 = vunpack.c.l.b16 %v725
    %v1088 = vunpack.c.h.b16 %v725
    %v1089 = vunpack.c.l.b16 %v726
    %v1090 = vunpack.c.h.b16 %v726
    %v1091 = vunpack.c.l.b16 %v727
    %v1092 = vunpack.c.h.b16 %v727
    %v1093 = vunpack.c.l.b16 %v728
    %v1094 = vunpack.c.h.b16 %v728
    %v1095 = vunpack.c.l.b16 %v729
    %v1096 = vunpack.c.h.b16 %v729
    %v1097 = vunpack.c.l.b16 %v730
    %v1098 = vunpack.c.h.b16 %v730
    %v1099 = vunpack.c.l.b16 %v731
    %v1100 = vunpack.c.h.b16 %v731
    %v1101 = vunpack.c.l.b16 %v732
    %v1102 = vunpack.c.h.b16 %v732
    %v1103 = vunpack.c.l.b16 %v733
    %v1104 = vunpack.c.h.b16 %v733
    %v1105 = vunpack.c.l.b16 %v734
    %v1106 = vunpack.c.h.b16 %v734
    %v1107 = vunpack.c.l.b16 %v735
    %v1108 = vunpack.c.h.b16 %v735
    %v1109 = vunpack.c.l.b16 %v736
    %v1110 = vunpack.c.h.b16 %v736
    %v1111 = vunpack.c.l.b16 %v737
    %v1112 = vunpack.c.h.b16 %v737
    %v1113 = vunpack.c.l.b16 %v738
    %v1114 = vunpack.c.h.b16 %v738
    %v1115 = vunpack.c.l.b16 %v739
    %v1116 = vunpack.c.h.b16 %v739
    %v1117 = vunpack.c.l.b16 %v740
    %v1118 = vunpack.c.h.b16 %v740
    %v1119 = vunpack.c.l.b16 %v741
    %v1120 = vunpack.c.h.b16 %v741
    %v1121 = vunpack.c.l.b16 %v742
    %v1122 = vunpack.c.h.b16 %v742
    %v1123 = vunpack.c.l.b16 %v743
    %v1124 = vunpack.c.h.b16 %v743
    %v1125 = vunpack.c.l.b16 %v744
    %v1126 = vunpack.c.h.b16 %v744
    %v1127 = vunpack.c.l.b16 %v745
    %v1128 = vunpack.c.h.b16 %v745
    %v1129 = vunpack.c.l.b16 %v746
    %v1130 = vunpack.c.h.b16 %v746
    %v1131 = vunpack.c.l.b16 %v747
    %v1132 = vunpack.c.h.b16 %v747
    %v1133 = vunpack.c.l.b16 %v748
    %v1134 = vunpack.c.h.b16 %v748
    %v1135 = vunpack.c.l.b16 %v749
    %v1136 = vunpack.c.h.b16 %v749
    %v1137 = vunpack.c.l.b16 %v750
    %v1138 = vunpack.c.h.b16 %v750
    %v1139 = vunpack.c.l.b16 %v751
    %v1140 = vunpack.c.h.b16 %v751
    %v1141 = vunpack.c.l.b16 %v752
    %v1142 = vunpack.c.h.b16 %v752
    %v1143 = vunpack.c.l.b16 %v753
    %v1144 = vunpack.c.h.b16 %v753
    %v1145 = vunpack.c.l.b16 %v754
    %v1146 = vunpack.c.h.b16 %v754
    %v1147 = vunpack.c.l.b16 %v755
    %v1148 = vunpack.c.h.b16 %v755
    %v1149 = vunpack.c.l.b16 %v756
    %v1150 = vunpack.c.h.b16 %v756
    %v1151 = vunpack.c.l.b16 %v757
    %v1152 = vunpack.c.h.b16 %v757
    %v1153 = vunpack.c.l.b16 %v758
    %v1154 = vunpack.c.h.b16 %v758
    %v1155 = vunpack.c.l.b16 %v759
    %v1156 = vunpack.c.h.b16 %v759
    %v1157 = vunpack.c.l.b16 %v760
    %v1158 = vunpack.c.h.b16 %v760
    %v1159 = vunpack.c.l.b16 %v761
    %v1160 = vunpack.c.h.b16 %v761
    %v1161 = vunpack.c.l.b16 %v762
    %v1162 = vunpack.c.h.b16 %v762
    %v1163 = vunpack.c.l.b16 %v763
    %v1164 = vunpack.c.h.b16 %v763
    %v1165 = vunpack.c.l.b16 %v764
    %v1166 = vunpack.c.h.b16 %v764
    %v1167 = vunpack.c.l.b16 %v765
    %v1168 = vunpack.c.h.b16 %v765
    %v1169 = vunpack.c.l.b16 %v766
    %v1170 = vunpack.c.h.b16 %v766
    %v1171 = vunpack.c.l.b16 %v767
    %v1172 = vunpack.c.h.b16 %v767
    %v1173 = vunpack.c.l.b16 %v768
    %v1174 = vunpack.c.h.b16 %v768
    %v1175 = vpack.c.b16 %v923, %v919
    %v1176 = vpack.c.b16 %v924, %v920
    %v1177 = vpack.c.b16 %v925, %v921
    %v1178 = vpack.c.b16 %v926, %v922
    %v1179 = vpack.c.b16 %v931, %v927
    %v1180 = vpack.c.b16 %v932, %v928
    %v1181 = vpack.c.b16 %v933, %v929
    %v1182 = vpack.c.b16 %v934, %v930
    %v1183 = vpack.c.b16 %v939, %v935
    %v1184 = vpack.c.b16 %v940, %v936
    %v1185 = vpack.c.b16 %v941, %v937
    %v1186 = vpack.c.b16 %v942, %v938
    %v1187 = vpack.c.b16 %v947, %v943
    %v1188 = vpack.c.b16 %v948, %v944
    %v1189 = vpack.c.b16 %v949, %v945
    %v1190 = vpack.c.b16 %v950, %v946
    %v1191 = vpack.c.b16 %v955, %v951
    %v1192 = vpack.c.b16 %v956, %v952
    %v1193 = vpack.c.b16 %v957, %v953
    %v1194 = vpack.c.b16 %v958, %v954
    %v1195 = vpack.c.b16 %v963, %v959
    %v1196 = vpack.c.b16 %v964, %v960
    %v1197 = vpack.c.b16 %v965, %v961
    %v1198 = vpack.c.b16 %v966, %v962
    %v1199 = vpack.c.b16 %v971, %v967
    %v1200 = vpack.c.b16 %v972, %v968
    %v1201 = vpack.c.b16 %v973, %v969
    %v1202 = vpack.c.b16 %v974, %v970
    %v1203 = vpack.c.b16 %v979, %v975
    %v1204 = vpack.c.b16 %v980, %v976
    %v1205 = vpack.c.b16 %v981, %v977
    %v1206 = vpack.c.b16 %v982, %v978
    %v1207 = vpack.c.b16 %v987, %v983
    %v1208 = vpack.c.b16 %v988, %v984
    %v1209 = vpack.c.b16 %v989, %v985
    %v1210 = vpack.c.b16 %v990, %v986
    %v1211 = vpack.c.b16 %v995, %v991
    %v1212 = vpack.c.b16 %v996, %v992
    %v1213 = vpack.c.b16 %v997, %v993
    %v1214 = vpack.c.b16 %v998, %v994
    %v1215 = vpack.c.b16 %v1003, %v999
    %v1216 = vpack.c.b16 %v1004, %v1000
    %v1217 = vpack.c.b16 %v1005, %v1001
    %v1218 = vpack.c.b16 %v1006, %v1002
    %v1219 = vpack.c.b16 %v1011, %v1007
    %v1220 = vpack.c.b16 %v1012, %v1008
    %v1221 = vpack.c.b16 %v1013, %v1009
    %v1222 = vpack.c.b16 %v1014, %v1010
    %v1223 = vpack.c.b16 %v1019, %v1015
    %v1224 = vpack.c.b16 %v1020, %v1016
    %v1225 = vpack.c.b16 %v1021, %v1017
    %v1226 = vpack.c.b16 %v1022, %v1018
    %v1227 = vpack.c.b16 %v1027, %v1023
    %v1228 = vpack.c.b16 %v1028, %v1024
    %v1229 = vpack.c.b16 %v1029, %v1025
    %v1230 = vpack.c.b16 %v1030, %v1026
    %v1231 = vpack.c.b16 %v1035, %v1031
    %v1232 = vpack.c.b16 %v1036, %v1032
    %v1233 = vpack.c.b16 %v1037, %v1033
    %v1234 = vpack.c.b16 %v1038, %v1034
    %v1235 = vpack.c.b16 %v1043, %v1039
    %v1236 = vpack.c.b16 %v1044, %v1040
    %v1237 = vpack.c.b16 %v1045, %v1041
    %v1238 = vpack.c.b16 %v1046, %v1042
    %v1239 = vpack.c.b16 %v1051, %v1047
    %v1240 = vpack.c.b16 %v1052, %v1048
    %v1241 = vpack.c.b16 %v1053, %v1049
    %v1242 = vpack.c.b16 %v1054, %v1050
    %v1243 = vpack.c.b16 %v1059, %v1055
    %v1244 = vpack.c.b16 %v1060, %v1056
    %v1245 = vpack.c.b16 %v1061, %v1057
    %v1246 = vpack.c.b16 %v1062, %v1058
    %v1247 = vpack.c.b16 %v1067, %v1063
    %v1248 = vpack.c.b16 %v1068, %v1064
    %v1249 = vpack.c.b16 %v1069, %v1065
    %v1250 = vpack.c.b16 %v1070, %v1066
    %v1251 = vpack.c.b16 %v1075, %v1071
    %v1252 = vpack.c.b16 %v1076, %v1072
    %v1253 = vpack.c.b16 %v1077, %v1073
    %v1254 = vpack.c.b16 %v1078, %v1074
    %v1255 = vpack.c.b16 %v1083, %v1079
    %v1256 = vpack.c.b16 %v1084, %v1080
    %v1257 = vpack.c.b16 %v1085, %v1081
    %v1258 = vpack.c.b16 %v1086, %v1082
    %v1259 = vpack.c.b16 %v1091, %v1087
    %v1260 = vpack.c.b16 %v1092, %v1088
    %v1261 = vpack.c.b16 %v1093, %v1089
    %v1262 = vpack.c.b16 %v1094, %v1090
    %v1263 = vpack.c.b16 %v1099, %v1095
    %v1264 = vpack.c.b16 %v1100, %v1096
    %v1265 = vpack.c.b16 %v1101, %v1097
    %v1266 = vpack.c.b16 %v1102, %v1098
    %v1267 = vpack.c.b16 %v1107, %v1103
    %v1268 = vpack.c.b16 %v1108, %v1104
    %v1269 = vpack.c.b16 %v1109, %v1105
    %v1270 = vpack.c.b16 %v1110, %v1106
    %v1271 = vpack.c.b16 %v1115, %v1111
    %v1272 = vpack.c.b16 %v1116, %v1112
    %v1273 = vpack.c.b16 %v1117, %v1113
    %v1274 = vpack.c.b16 %v1118, %v1114
    %v1275 = vpack.c.b16 %v1123, %v1119
    %v1276 = vpack.c.b16 %v1124, %v1120
    %v1277 = vpack.c.b16 %v1125, %v1121
    %v1278 = vpack.c.b16 %v1126, %v1122
    %v1279 = vpack.c.b16 %v1131, %v1127
    %v1280 = vpack.c.b16 %v1132, %v1128
    %v1281 = vpack.c.b16 %v1133, %v1129
    %v1282 = vpack.c.b16 %v1134, %v1130
    %v1283 = vpack.c.b16 %v1139, %v1135
    %v1284 = vpack.c.b16 %v1140, %v1136
    %v1285 = vpack.c.b16 %v1141, %v1137
    %v1286 = vpack.c.b16 %v1142, %v1138
    %v1287 = vpack.c.b16 %v1147, %v1143
    %v1288 = vpack.c.b16 %v1148, %v1144
    %v1289 = vpack.c.b16 %v1149, %v1145
    %v1290 = vpack.c.b16 %v1150, %v1146
    %v1291 = vpack.c.b16 %v1155, %v1151
    %v1292 = vpack.c.b16 %v1156, %v1152
    %v1293 = vpack.c.b16 %v1157, %v1153
    %v1294 = vpack.c.b16 %v1158, %v1154
    %v1295 = vpack.c.b16 %v1163, %v1159
    %v1296 = vpack.c.b16 %v1164, %v1160
    %v1297 = vpack.c.b16 %v1165, %v1161
    %v1298 = vpack.c.b16 %v1166, %v1162
    %v1299 = vpack.c.b16 %v1171, %v1167
    %v1300 = vpack.c.b16 %v1172, %v1168
    %v1301 = vpack.c.b16 %v1173, %v1169
    %v1302 = vpack.c.b16 %v1174, %v1170
    %1431 = vmatprep.subr.bf16.mxu0 %v1176
    %1432 = vmatpush1.bf16.msra.mxu0 %v1175
    %1433 = vmatprep.subr.bf16.mxu0 %v1180
    %1434 = vmatpush1.bf16.msra.mxu0 %v1179
    %1435 = vmatprep.subr.bf16.mxu0 %v1184
    %1436 = vmatpush1.bf16.msra.mxu0 %v1183
    %1437 = vmatprep.subr.bf16.mxu0 %v1188
    %1438 = vmatpush1.bf16.msra.mxu0 %v1187
    %1439 = vmatprep.subr.bf16.mxu0 %v1192
    %1440 = vmatpush1.bf16.msra.mxu0 %v1191
    %1441 = vmatprep.subr.bf16.mxu0 %v1196
    %1442 = vmatpush1.bf16.msra.mxu0 %v1195
    %1443 = vmatprep.subr.bf16.mxu0 %v1200
    %1444 = vmatpush1.bf16.msra.mxu0 %v1199
    %1445 = vmatprep.subr.bf16.mxu0 %v1204
    %1446 = vmatpush1.bf16.msra.mxu0 %v1203
    %1447 = vmatprep.subr.bf16.mxu0 %v1208
    %1448 = vmatpush1.bf16.msra.mxu0 %v1207
    %1449 = vmatprep.subr.bf16.mxu0 %v1212
    %1450 = vmatpush1.bf16.msra.mxu0 %v1211
    %1451 = vmatprep.subr.bf16.mxu0 %v1216
    %1452 = vmatpush1.bf16.msra.mxu0 %v1215
    %1453 = vmatprep.subr.bf16.mxu0 %v1220
    %1454 = vmatpush1.bf16.msra.mxu0 %v1219
    %1455 = vmatprep.subr.bf16.mxu0 %v1224
    %1456 = vmatpush1.bf16.msra.mxu0 %v1223
    %1457 = vmatprep.subr.bf16.mxu0 %v1228
    %1458 = vmatpush1.bf16.msra.mxu0 %v1227
    %1459 = vmatprep.subr.bf16.mxu0 %v1232
    %1460 = vmatpush1.bf16.msra.mxu0 %v1231
    %1461 = vmatprep.subr.bf16.mxu0 %v1236
    %1462 = vmatpush1.bf16.msra.mxu0 %v1235
    %1463 = vmatprep.mubr.bf16.mxu0 %v610
    %1464 = vmatmul.mubr.bf16.gmra.mrb[0].mxu0 %v609
    %v1465 = vpop.f32.mrb[0].mxu0
    %v1466 = vadd.f32 %v774, %v1465
    %v1467 = vpop.f32.mrb[0].mxu0
    %v1468 = vadd.f32 %v778, %v1467
    %v1469 = vpop.f32.mrb[0].mxu0
    %v1470 = vadd.f32 %v774, %v1469
    %v1471 = vpop.f32.mrb[0].mxu0
    %v1472 = vadd.f32 %v778, %v1471
    %1473 = vmatprep.mubr.bf16.mxu0 %v614
    %1474 = vmatmul.mubr.bf16.gmra.mrb[0].mxu0 %v613
    %v1475 = vpop.f32.mrb[0].mxu0
    %v1476 = vadd.f32 %v774, %v1475
    %v1477 = vpop.f32.mrb[0].mxu0
    %v1478 = vadd.f32 %v778, %v1477
    %v1479 = vpop.f32.mrb[0].mxu0
    %v1480 = vadd.f32 %v774, %v1479
    %v1481 = vpop.f32.mrb[0].mxu0
    %v1482 = vadd.f32 %v778, %v1481
    %1483 = vmatprep.mubr.bf16.mxu0 %v618
    %1484 = vmatmul.mubr.bf16.gmra.mrb[0].mxu0 %v617
    %v1485 = vpop.f32.mrb[0].mxu0
    %v1486 = vadd.f32 %v774, %v1485
    %v1487 = vpop.f32.mrb[0].mxu0
    %v1488 = vadd.f32 %v778, %v1487
    %v1489 = vpop.f32.mrb[0].mxu0
    %v1490 = vadd.f32 %v774, %v1489
    %v1491 = vpop.f32.mrb[0].mxu0
    %v1492 = vadd.f32 %v778, %v1491
    %1493 = vmatprep.mubr.bf16.mxu0 %v622
    %1494 = vmatmul.mubr.bf16.gmra.mrb[0].mxu0 %v621
    %v1495 = vpop.f32.mrb[0].mxu0
    %v1496 = vadd.f32 %v774, %v1495
    %v1497 = vpop.f32.mrb[0].mxu0
    %v1498 = vadd.f32 %v778, %v1497
    %v1499 = vpop.f32.mrb[0].mxu0
    %v1500 = vadd.f32 %v774, %v1499
    %v1501 = vpop.f32.mrb[0].mxu0
    %v1502 = vadd.f32 %v778, %v1501
    %1503 = vmatprep.mubr.bf16.mxu0 %v626
    %1504 = vmatmul.mubr.bf16.gmra.mrb[0].mxu0 %v625
    %v1505 = vpop.f32.mrb[0].mxu0
    %v1506 = vadd.f32 %v774, %v1505
    %v1507 = vpop.f32.mrb[0].mxu0
    %v1508 = vadd.f32 %v778, %v1507
    %v1509 = vpop.f32.mrb[0].mxu0
    %v1510 = vadd.f32 %v774, %v1509
    %v1511 = vpop.f32.mrb[0].mxu0
    %v1512 = vadd.f32 %v778, %v1511
    %1513 = vmatprep.mubr.bf16.mxu0 %v630
    %1514 = vmatmul.mubr.bf16.gmra.mrb[0].mxu0 %v629
    %v1515 = vpop.f32.mrb[0].mxu0
    %v1516 = vadd.f32 %v774, %v1515
    %v1517 = vpop.f32.mrb[0].mxu0
    %v1518 = vadd.f32 %v778, %v1517
    %v1519 = vpop.f32.mrb[0].mxu0
    %v1520 = vadd.f32 %v774, %v1519
    %v1521 = vpop.f32.mrb[0].mxu0
    %v1522 = vadd.f32 %v778, %v1521
    %1523 = vmatprep.mubr.bf16.mxu0 %v634
    %1524 = vmatmul.mubr.bf16.gmra.mrb[0].mxu0 %v633
    %v1525 = vpop.f32.mrb[0].mxu0
    %v1526 = vadd.f32 %v774, %v1525
    %v1527 = vpop.f32.mrb[0].mxu0
    %v1528 = vadd.f32 %v778, %v1527
    %v1529 = vpop.f32.mrb[0].mxu0
    %v1530 = vadd.f32 %v774, %v1529
    %v1531 = vpop.f32.mrb[0].mxu0
    %v1532 = vadd.f32 %v778, %v1531
    %1533 = vmatprep.mubr.bf16.mxu0 %v638
    %1534 = vmatmul.mubr.bf16.gmra.mrb[0].mxu0 %v637
    %v1535 = vpop.f32.mrb[0].mxu0
    %v1536 = vadd.f32 %v774, %v1535
    %v1537 = vpop.f32.mrb[0].mxu0
    %v1538 = vadd.f32 %v778, %v1537
    %v1539 = vpop.f32.mrb[0].mxu0
    %v1540 = vadd.f32 %v774, %v1539
    %v1541 = vpop.f32.mrb[0].mxu0
    %v1542 = vadd.f32 %v778, %v1541
    %1543 = vdwg.mxu0
    %1544 = vmatprep.subr.bf16.mxu0 %v1240
    %1545 = vmatpush1.bf16.msra.mxu0 %v1239
    %1546 = vmatprep.subr.bf16.mxu0 %v1244
    %1547 = vmatpush1.bf16.msra.mxu0 %v1243
    %1548 = vmatprep.subr.bf16.mxu0 %v1248
    %1549 = vmatpush1.bf16.msra.mxu0 %v1247
    %1550 = vmatprep.subr.bf16.mxu0 %v1252
    %1551 = vmatpush1.bf16.msra.mxu0 %v1251
    %1552 = vmatprep.subr.bf16.mxu0 %v1256
    %1553 = vmatpush1.bf16.msra.mxu0 %v1255
    %1554 = vmatprep.subr.bf16.mxu0 %v1260
    %1555 = vmatpush1.bf16.msra.mxu0 %v1259
    %1556 = vmatprep.subr.bf16.mxu0 %v1264
    %1557 = vmatpush1.bf16.msra.mxu0 %v1263
    %1558 = vmatprep.subr.bf16.mxu0 %v1268
    %1559 = vmatpush1.bf16.msra.mxu0 %v1267
    %1560 = vmatprep.subr.bf16.mxu0 %v1272
    %1561 = vmatpush1.bf16.msra.mxu0 %v1271
    %1562 = vmatprep.subr.bf16.mxu0 %v1276
    %1563 = vmatpush1.bf16.msra.mxu0 %v1275
    %1564 = vmatprep.subr.bf16.mxu0 %v1280
    %1565 = vmatpush1.bf16.msra.mxu0 %v1279
    %1566 = vmatprep.subr.bf16.mxu0 %v1284
    %1567 = vmatpush1.bf16.msra.mxu0 %v1283
    %1568 = vmatprep.subr.bf16.mxu0 %v1288
    %1569 = vmatpush1.bf16.msra.mxu0 %v1287
    %1570 = vmatprep.subr.bf16.mxu0 %v1292
    %1571 = vmatpush1.bf16.msra.mxu0 %v1291
    %1572 = vmatprep.subr.bf16.mxu0 %v1296
    %1573 = vmatpush1.bf16.msra.mxu0 %v1295
    %1574 = vmatprep.subr.bf16.mxu0 %v1300
    %1575 = vmatpush1.bf16.msra.mxu0 %v1299
    %1576 = vmatprep.mubr.bf16.mxu0 %v612
    %1577 = vmatmul.mubr.bf16.gmra.mrb[0].mxu0 %v611
    %v1578 = vpop.f32.mrb[0].mxu0
    %v1579 = vadd.f32 %v1466, %v1578
    %v1580 = vpop.f32.mrb[0].mxu0
    %v1581 = vadd.f32 %v1468, %v1580
    %v1582 = vpop.f32.mrb[0].mxu0
    %v1583 = vadd.f32 %v1470, %v1582
    %v1584 = vpop.f32.mrb[0].mxu0
    %v1585 = vadd.f32 %v1472, %v1584
    %1586 = vmatprep.mubr.bf16.mxu0 %v616
    %1587 = vmatmul.mubr.bf16.gmra.mrb[0].mxu0 %v615
    %v1588 = vpop.f32.mrb[0].mxu0
    %v1589 = vadd.f32 %v1476, %v1588
    %v1590 = vpop.f32.mrb[0].mxu0
    %v1591 = vadd.f32 %v1478, %v1590
    %v1592 = vpop.f32.mrb[0].mxu0
    %v1593 = vadd.f32 %v1480, %v1592
    %v1594 = vpop.f32.mrb[0].mxu0
    %v1595 = vadd.f32 %v1482, %v1594
    %1596 = vmatprep.mubr.bf16.mxu0 %v620
    %1597 = vmatmul.mubr.bf16.gmra.mrb[0].mxu0 %v619
    %v1598 = vpop.f32.mrb[0].mxu0
    %v1599 = vadd.f32 %v1486, %v1598
    %v1600 = vpop.f32.mrb[0].mxu0
    %v1601 = vadd.f32 %v1488, %v1600
    %v1602 = vpop.f32.mrb[0].mxu0
    %v1603 = vadd.f32 %v1490, %v1602
    %v1604 = vpop.f32.mrb[0].mxu0
    %v1605 = vadd.f32 %v1492, %v1604
    %1606 = vmatprep.mubr.bf16.mxu0 %v624
    %1607 = vmatmul.mubr.bf16.gmra.mrb[0].mxu0 %v623
    %v1608 = vpop.f32.mrb[0].mxu0
    %v1609 = vadd.f32 %v1496, %v1608
    %v1610 = vpop.f32.mrb[0].mxu0
    %v1611 = vadd.f32 %v1498, %v1610
    %v1612 = vpop.f32.mrb[0].mxu0
    %v1613 = vadd.f32 %v1500, %v1612
    %v1614 = vpop.f32.mrb[0].mxu0
    %v1615 = vadd.f32 %v1502, %v1614
    %1616 = vmatprep.mubr.bf16.mxu0 %v628
    %1617 = vmatmul.mubr.bf16.gmra.mrb[0].mxu0 %v627
    %v1618 = vpop.f32.mrb[0].mxu0
    %v1619 = vadd.f32 %v1506, %v1618
    %v1620 = vpop.f32.mrb[0].mxu0
    %v1621 = vadd.f32 %v1508, %v1620
    %v1622 = vpop.f32.mrb[0].mxu0
    %v1623 = vadd.f32 %v1510, %v1622
    %v1624 = vpop.f32.mrb[0].mxu0
    %v1625 = vadd.f32 %v1512, %v1624
    %1626 = vmatprep.mubr.bf16.mxu0 %v632
    %1627 = vmatmul.mubr.bf16.gmra.mrb[0].mxu0 %v631
    %v1628 = vpop.f32.mrb[0].mxu0
    %v1629 = vadd.f32 %v1516, %v1628
    %v1630 = vpop.f32.mrb[0].mxu0
    %v1631 = vadd.f32 %v1518, %v1630
    %v1632 = vpop.f32.mrb[0].mxu0
    %v1633 = vadd.f32 %v1520, %v1632
    %v1634 = vpop.f32.mrb[0].mxu0
    %v1635 = vadd.f32 %v1522, %v1634
    %1636 = vmatprep.mubr.bf16.mxu0 %v636
    %1637 = vmatmul.mubr.bf16.gmra.mrb[0].mxu0 %v635
    %v1638 = vpop.f32.mrb[0].mxu0
    %v1639 = vadd.f32 %v1526, %v1638
    %v1640 = vpop.f32.mrb[0].mxu0
    %v1641 = vadd.f32 %v1528, %v1640
    %v1642 = vpop.f32.mrb[0].mxu0
    %v1643 = vadd.f32 %v1530, %v1642
    %v1644 = vpop.f32.mrb[0].mxu0
    %v1645 = vadd.f32 %v1532, %v1644
    %1646 = vmatprep.mubr.bf16.mxu0 %v640
    %1647 = vmatmul.mubr.bf16.gmra.mrb[0].mxu0 %v639
    %v1648 = vpop.f32.mrb[0].mxu0
    %v1649 = vadd.f32 %v1536, %v1648
    %v1650 = vpop.f32.mrb[0].mxu0
    %v1651 = vadd.f32 %v1538, %v1650
    %v1652 = vpop.f32.mrb[0].mxu0
    %v1653 = vadd.f32 %v1540, %v1652
    %v1654 = vpop.f32.mrb[0].mxu0
    %v1655 = vadd.f32 %v1542, %v1654
    %1656 = vdwg.mxu0
    %1657 = vmatprep.subr.bf16.mxu0 %v1178
    %1658 = vmatpush1.bf16.msra.mxu0 %v1177
    %1659 = vmatprep.subr.bf16.mxu0 %v1182
    %1660 = vmatpush1.bf16.msra.mxu0 %v1181
    %1661 = vmatprep.subr.bf16.mxu0 %v1186
    %1662 = vmatpush1.bf16.msra.mxu0 %v1185
    %1663 = vmatprep.subr.bf16.mxu0 %v1190
    %1664 = vmatpush1.bf16.msra.mxu0 %v1189
    %1665 = vmatprep.subr.bf16.mxu0 %v1194
    %1666 = vmatpush1.bf16.msra.mxu0 %v1193
    %1667 = vmatprep.subr.bf16.mxu0 %v1198
    %1668 = vmatpush1.bf16.msra.mxu0 %v1197
    %1669 = vmatprep.subr.bf16.mxu0 %v1202
    %1670 = vmatpush1.bf16.msra.mxu0 %v1201
    %1671 = vmatprep.subr.bf16.mxu0 %v1206
    %1672 = vmatpush1.bf16.msra.mxu0 %v1205
    %1673 = vmatprep.subr.bf16.mxu0 %v1210
    %1674 = vmatpush1.bf16.msra.mxu0 %v1209
    %1675 = vmatprep.subr.bf16.mxu0 %v1214
    %1676 = vmatpush1.bf16.msra.mxu0 %v1213
    %1677 = vmatprep.subr.bf16.mxu0 %v1218
    %1678 = vmatpush1.bf16.msra.mxu0 %v1217
    %1679 = vmatprep.subr.bf16.mxu0 %v1222
    %1680 = vmatpush1.bf16.msra.mxu0 %v1221
    %1681 = vmatprep.subr.bf16.mxu0 %v1226
    %1682 = vmatpush1.bf16.msra.mxu0 %v1225
    %1683 = vmatprep.subr.bf16.mxu0 %v1230
    %1684 = vmatpush1.bf16.msra.mxu0 %v1229
    %1685 = vmatprep.subr.bf16.mxu0 %v1234
    %1686 = vmatpush1.bf16.msra.mxu0 %v1233
    %1687 = vmatprep.subr.bf16.mxu0 %v1238
    %1688 = vmatpush1.bf16.msra.mxu0 %v1237
    %1689 = vmatprep.mubr.bf16.mxu0 %v610
    %1690 = vmatmul.mubr.bf16.gmra.mrb[0].mxu0 %v609
    %v1691 = vpop.f32.mrb[0].mxu0
    %v1692 = vadd.f32 %v782, %v1691
    %v1693 = vpop.f32.mrb[0].mxu0
    %v1694 = vadd.f32 %v786, %v1693
    %v1695 = vpop.f32.mrb[0].mxu0
    %v1696 = vadd.f32 %v782, %v1695
    %v1697 = vpop.f32.mrb[0].mxu0
    %v1698 = vadd.f32 %v786, %v1697
    %1699 = vmatprep.mubr.bf16.mxu0 %v614
    %1700 = vmatmul.mubr.bf16.gmra.mrb[0].mxu0 %v613
    %v1701 = vpop.f32.mrb[0].mxu0
    %v1702 = vadd.f32 %v782, %v1701
    %v1703 = vpop.f32.mrb[0].mxu0
    %v1704 = vadd.f32 %v786, %v1703
    %v1705 = vpop.f32.mrb[0].mxu0
    %v1706 = vadd.f32 %v782, %v1705
    %v1707 = vpop.f32.mrb[0].mxu0
    %v1708 = vadd.f32 %v786, %v1707
    %1709 = vmatprep.mubr.bf16.mxu0 %v618
    %1710 = vmatmul.mubr.bf16.gmra.mrb[0].mxu0 %v617
    %v1711 = vpop.f32.mrb[0].mxu0
    %v1712 = vadd.f32 %v782, %v1711
    %v1713 = vpop.f32.mrb[0].mxu0
    %v1714 = vadd.f32 %v786, %v1713
    %v1715 = vpop.f32.mrb[0].mxu0
    %v1716 = vadd.f32 %v782, %v1715
    %v1717 = vpop.f32.mrb[0].mxu0
    %v1718 = vadd.f32 %v786, %v1717
    %1719 = vmatprep.mubr.bf16.mxu0 %v622
    %1720 = vmatmul.mubr.bf16.gmra.mrb[0].mxu0 %v621
    %v1721 = vpop.f32.mrb[0].mxu0
    %v1722 = vadd.f32 %v782, %v1721
    %v1723 = vpop.f32.mrb[0].mxu0
    %v1724 = vadd.f32 %v786, %v1723
    %v1725 = vpop.f32.mrb[0].mxu0
    %v1726 = vadd.f32 %v782, %v1725
    %v1727 = vpop.f32.mrb[0].mxu0
    %v1728 = vadd.f32 %v786, %v1727
    %1729 = vmatprep.mubr.bf16.mxu0 %v626
    %1730 = vmatmul.mubr.bf16.gmra.mrb[0].mxu0 %v625
    %v1731 = vpop.f32.mrb[0].mxu0
    %v1732 = vadd.f32 %v782, %v1731
    %v1733 = vpop.f32.mrb[0].mxu0
    %v1734 = vadd.f32 %v786, %v1733
    %v1735 = vpop.f32.mrb[0].mxu0
    %v1736 = vadd.f32 %v782, %v1735
    %v1737 = vpop.f32.mrb[0].mxu0
    %v1738 = vadd.f32 %v786, %v1737
    %1739 = vmatprep.mubr.bf16.mxu0 %v630
    %1740 = vmatmul.mubr.bf16.gmra.mrb[0].mxu0 %v629
    %v1741 = vpop.f32.mrb[0].mxu0
    %v1742 = vadd.f32 %v782, %v1741
    %v1743 = vpop.f32.mrb[0].mxu0
    %v1744 = vadd.f32 %v786, %v1743
    %v1745 = vpop.f32.mrb[0].mxu0
    %v1746 = vadd.f32 %v782, %v1745
    %v1747 = vpop.f32.mrb[0].mxu0
    %v1748 = vadd.f32 %v786, %v1747
    %1749 = vmatprep.mubr.bf16.mxu0 %v634
    %1750 = vmatmul.mubr.bf16.gmra.mrb[0].mxu0 %v633
    %v1751 = vpop.f32.mrb[0].mxu0
    %v1752 = vadd.f32 %v782, %v1751
    %v1753 = vpop.f32.mrb[0].mxu0
    %v1754 = vadd.f32 %v786, %v1753
    %v1755 = vpop.f32.mrb[0].mxu0
    %v1756 = vadd.f32 %v782, %v1755
    %v1757 = vpop.f32.mrb[0].mxu0
    %v1758 = vadd.f32 %v786, %v1757
    %1759 = vmatprep.mubr.bf16.mxu0 %v638
    %1760 = vmatmul.mubr.bf16.gmra.mrb[0].mxu0 %v637
    %v1761 = vpop.f32.mrb[0].mxu0
    %v1762 = vadd.f32 %v782, %v1761
    %v1763 = vpop.f32.mrb[0].mxu0
    %v1764 = vadd.f32 %v786, %v1763
    %v1765 = vpop.f32.mrb[0].mxu0
    %v1766 = vadd.f32 %v782, %v1765
    %v1767 = vpop.f32.mrb[0].mxu0
    %v1768 = vadd.f32 %v786, %v1767
    %1769 = vdwg.mxu0
    %1770 = vmatprep.subr.bf16.mxu0 %v1242
    %1771 = vmatpush1.bf16.msra.mxu0 %v1241
    %1772 = vmatprep.subr.bf16.mxu0 %v1246
    %1773 = vmatpush1.bf16.msra.mxu0 %v1245
    %1774 = vmatprep.subr.bf16.mxu0 %v1250
    %1775 = vmatpush1.bf16.msra.mxu0 %v1249
    %1776 = vmatprep.subr.bf16.mxu0 %v1254
    %1777 = vmatpush1.bf16.msra.mxu0 %v1253
    %1778 = vmatprep.subr.bf16.mxu0 %v1258
    %1779 = vmatpush1.bf16.msra.mxu0 %v1257
    %1780 = vmatprep.subr.bf16.mxu0 %v1262
    %1781 = vmatpush1.bf16.msra.mxu0 %v1261
    %1782 = vmatprep.subr.bf16.mxu0 %v1266
    %1783 = vmatpush1.bf16.msra.mxu0 %v1265
    %1784 = vmatprep.subr.bf16.mxu0 %v1270
    %1785 = vmatpush1.bf16.msra.mxu0 %v1269
    %1786 = vmatprep.subr.bf16.mxu0 %v1274
    %1787 = vmatpush1.bf16.msra.mxu0 %v1273
    %1788 = vmatprep.subr.bf16.mxu0 %v1278
    %1789 = vmatpush1.bf16.msra.mxu0 %v1277
    %1790 = vmatprep.subr.bf16.mxu0 %v1282
    %1791 = vmatpush1.bf16.msra.mxu0 %v1281
    %1792 = vmatprep.subr.bf16.mxu0 %v1286
    %1793 = vmatpush1.bf16.msra.mxu0 %v1285
    %1794 = vmatprep.subr.bf16.mxu0 %v1290
    %1795 = vmatpush1.bf16.msra.mxu0 %v1289
    %1796 = vmatprep.subr.bf16.mxu0 %v1294
    %1797 = vmatpush1.bf16.msra.mxu0 %v1293
    %1798 = vmatprep.subr.bf16.mxu0 %v1298
    %1799 = vmatpush1.bf16.msra.mxu0 %v1297
    %1800 = vmatprep.subr.bf16.mxu0 %v1302
    %1801 = vmatpush1.bf16.msra.mxu0 %v1301
    %1802 = vmatprep.mubr.bf16.mxu0 %v612
    %1803 = vmatmul.mubr.bf16.gmra.mrb[0].mxu0 %v611
    %v1804 = vpop.f32.mrb[0].mxu0
    %v1805 = vadd.f32 %v1692, %v1804
    %v1806 = vpop.f32.mrb[0].mxu0
    %v1807 = vadd.f32 %v1694, %v1806
    %v1808 = vpop.f32.mrb[0].mxu0
    %v1809 = vadd.f32 %v1696, %v1808
    %v1810 = vpop.f32.mrb[0].mxu0
    %v1811 = vadd.f32 %v1698, %v1810
    %1812 = vmatprep.mubr.bf16.mxu0 %v616
    %1813 = vmatmul.mubr.bf16.gmra.mrb[0].mxu0 %v615
    %v1814 = vpop.f32.mrb[0].mxu0
    %v1815 = vadd.f32 %v1702, %v1814
    %v1816 = vpop.f32.mrb[0].mxu0
    %v1817 = vadd.f32 %v1704, %v1816
    %v1818 = vpop.f32.mrb[0].mxu0
    %v1819 = vadd.f32 %v1706, %v1818
    %v1820 = vpop.f32.mrb[0].mxu0
    %v1821 = vadd.f32 %v1708, %v1820
    %1822 = vmatprep.mubr.bf16.mxu0 %v620
    %1823 = vmatmul.mubr.bf16.gmra.mrb[0].mxu0 %v619
    %v1824 = vpop.f32.mrb[0].mxu0
    %v1825 = vadd.f32 %v1712, %v1824
    %v1826 = vpop.f32.mrb[0].mxu0
    %v1827 = vadd.f32 %v1714, %v1826
    %v1828 = vpop.f32.mrb[0].mxu0
    %v1829 = vadd.f32 %v1716, %v1828
    %v1830 = vpop.f32.mrb[0].mxu0
    %v1831 = vadd.f32 %v1718, %v1830
    %1832 = vmatprep.mubr.bf16.mxu0 %v624
    %1833 = vmatmul.mubr.bf16.gmra.mrb[0].mxu0 %v623
    %v1834 = vpop.f32.mrb[0].mxu0
    %v1835 = vadd.f32 %v1722, %v1834
    %v1836 = vpop.f32.mrb[0].mxu0
    %v1837 = vadd.f32 %v1724, %v1836
    %v1838 = vpop.f32.mrb[0].mxu0
    %v1839 = vadd.f32 %v1726, %v1838
    %v1840 = vpop.f32.mrb[0].mxu0
    %v1841 = vadd.f32 %v1728, %v1840
    %1842 = vmatprep.mubr.bf16.mxu0 %v628
    %1843 = vmatmul.mubr.bf16.gmra.mrb[0].mxu0 %v627
    %v1844 = vpop.f32.mrb[0].mxu0
    %v1845 = vadd.f32 %v1732, %v1844
    %v1846 = vpop.f32.mrb[0].mxu0
    %v1847 = vadd.f32 %v1734, %v1846
    %v1848 = vpop.f32.mrb[0].mxu0
    %v1849 = vadd.f32 %v1736, %v1848
    %v1850 = vpop.f32.mrb[0].mxu0
    %v1851 = vadd.f32 %v1738, %v1850
    %1852 = vmatprep.mubr.bf16.mxu0 %v632
    %1853 = vmatmul.mubr.bf16.gmra.mrb[0].mxu0 %v631
    %v1854 = vpop.f32.mrb[0].mxu0
    %v1855 = vadd.f32 %v1742, %v1854
    %v1856 = vpop.f32.mrb[0].mxu0
    %v1857 = vadd.f32 %v1744, %v1856
    %v1858 = vpop.f32.mrb[0].mxu0
    %v1859 = vadd.f32 %v1746, %v1858
    %v1860 = vpop.f32.mrb[0].mxu0
    %v1861 = vadd.f32 %v1748, %v1860
    %1862 = vmatprep.mubr.bf16.mxu0 %v636
    %1863 = vmatmul.mubr.bf16.gmra.mrb[0].mxu0 %v635
    %v1864 = vpop.f32.mrb[0].mxu0
    %v1865 = vadd.f32 %v1752, %v1864
    %v1866 = vpop.f32.mrb[0].mxu0
    %v1867 = vadd.f32 %v1754, %v1866
    %v1868 = vpop.f32.mrb[0].mxu0
    %v1869 = vadd.f32 %v1756, %v1868
    %v1870 = vpop.f32.mrb[0].mxu0
    %v1871 = vadd.f32 %v1758, %v1870
    %1872 = vmatprep.mubr.bf16.mxu0 %v640
    %1873 = vmatmul.mubr.bf16.gmra.mrb[0].mxu0 %v639
    %v1874 = vpop.f32.mrb[0].mxu0
    %v1875 = vadd.f32 %v1762, %v1874
    %v1876 = vpop.f32.mrb[0].mxu0
    %v1877 = vadd.f32 %v1764, %v1876
    %v1878 = vpop.f32.mrb[0].mxu0
    %v1879 = vadd.f32 %v1766, %v1878
    %v1880 = vpop.f32.mrb[0].mxu0
    %v1881 = vadd.f32 %v1768, %v1880
    %1882 = vdwg.mxu0
    %v1883 = vmax.f32 %v1579, 0.0
    %v1884 = vmax.f32 %v1581, 0.0
    %v1885 = vmax.f32 %v1805, 0.0
    %v1886 = vmax.f32 %v1807, 0.0
    %v1887 = vmax.f32 %v1583, 0.0
    %v1888 = vmax.f32 %v1585, 0.0
    %v1889 = vmax.f32 %v1809, 0.0
    %v1890 = vmax.f32 %v1811, 0.0
    %v1891 = vmax.f32 %v1589, 0.0
    %v1892 = vmax.f32 %v1591, 0.0
    %v1893 = vmax.f32 %v1815, 0.0
    %v1894 = vmax.f32 %v1817, 0.0
    %v1895 = vmax.f32 %v1593, 0.0
    %v1896 = vmax.f32 %v1595, 0.0
    %v1897 = vmax.f32 %v1819, 0.0
    %v1898 = vmax.f32 %v1821, 0.0
    %v1899 = vmax.f32 %v1599, 0.0
    %v1900 = vmax.f32 %v1601, 0.0
    %v1901 = vmax.f32 %v1825, 0.0
    %v1902 = vmax.f32 %v1827, 0.0
    %v1903 = vmax.f32 %v1603, 0.0
    %v1904 = vmax.f32 %v1605, 0.0
    %v1905 = vmax.f32 %v1829, 0.0
    %v1906 = vmax.f32 %v1831, 0.0
    %v1907 = vmax.f32 %v1609, 0.0
    %v1908 = vmax.f32 %v1611, 0.0
    %v1909 = vmax.f32 %v1835, 0.0
    %v1910 = vmax.f32 %v1837, 0.0
    %v1911 = vmax.f32 %v1613, 0.0
    %v1912 = vmax.f32 %v1615, 0.0
    %v1913 = vmax.f32 %v1839, 0.0
    %v1914 = vmax.f32 %v1841, 0.0
    %v1915 = vmax.f32 %v1619, 0.0
    %v1916 = vmax.f32 %v1621, 0.0
    %v1917 = vmax.f32 %v1845, 0.0
    %v1918 = vmax.f32 %v1847, 0.0
    %v1919 = vmax.f32 %v1623, 0.0
    %v1920 = vmax.f32 %v1625, 0.0
    %v1921 = vmax.f32 %v1849, 0.0
    %v1922 = vmax.f32 %v1851, 0.0
    %v1923 = vmax.f32 %v1629, 0.0
    %v1924 = vmax.f32 %v1631, 0.0
    %v1925 = vmax.f32 %v1855, 0.0
    %v1926 = vmax.f32 %v1857, 0.0
    %v1927 = vmax.f32 %v1633, 0.0
    %v1928 = vmax.f32 %v1635, 0.0
    %v1929 = vmax.f32 %v1859, 0.0
    %v1930 = vmax.f32 %v1861, 0.0
    %v1931 = vmax.f32 %v1639, 0.0
    %v1932 = vmax.f32 %v1641, 0.0
    %v1933 = vmax.f32 %v1865, 0.0
    %v1934 = vmax.f32 %v1867, 0.0
    %v1935 = vmax.f32 %v1643, 0.0
    %v1936 = vmax.f32 %v1645, 0.0
    %v1937 = vmax.f32 %v1869, 0.0
    %v1938 = vmax.f32 %v1871, 0.0
    %v1939 = vmax.f32 %v1649, 0.0
    %v1940 = vmax.f32 %v1651, 0.0
    %v1941 = vmax.f32 %v1875, 0.0
    %v1942 = vmax.f32 %v1877, 0.0
    %v1943 = vmax.f32 %v1653, 0.0
    %v1944 = vmax.f32 %v1655, 0.0
    %v1945 = vmax.f32 %v1879, 0.0
    %v1946 = vmax.f32 %v1881, 0.0
    %v1947 = vpack.c.bf16 %v1887, %v1883
    %v1948 = vpack.c.bf16 %v1888, %v1884
    %v1949 = vpack.c.bf16 %v1889, %v1885
    %v1950 = vpack.c.bf16 %v1890, %v1886
    %v1951 = vpack.c.bf16 %v1895, %v1891
    %v1952 = vpack.c.bf16 %v1896, %v1892
    %v1953 = vpack.c.bf16 %v1897, %v1893
    %v1954 = vpack.c.bf16 %v1898, %v1894
    %v1955 = vpack.c.bf16 %v1903, %v1899
    %v1956 = vpack.c.bf16 %v1904, %v1900
    %v1957 = vpack.c.bf16 %v1905, %v1901
    %v1958 = vpack.c.bf16 %v1906, %v1902
    %v1959 = vpack.c.bf16 %v1911, %v1907
    %v1960 = vpack.c.bf16 %v1912, %v1908
    %v1961 = vpack.c.bf16 %v1913, %v1909
    %v1962 = vpack.c.bf16 %v1914, %v1910
    %v1963 = vpack.c.bf16 %v1919, %v1915
    %v1964 = vpack.c.bf16 %v1920, %v1916
    %v1965 = vpack.c.bf16 %v1921, %v1917
    %v1966 = vpack.c.bf16 %v1922, %v1918
    %v1967 = vpack.c.bf16 %v1927, %v1923
    %v1968 = vpack.c.bf16 %v1928, %v1924
    %v1969 = vpack.c.bf16 %v1929, %v1925
    %v1970 = vpack.c.bf16 %v1930, %v1926
    %v1971 = vpack.c.bf16 %v1935, %v1931
    %v1972 = vpack.c.bf16 %v1936, %v1932
    %v1973 = vpack.c.bf16 %v1937, %v1933
    %v1974 = vpack.c.bf16 %v1938, %v1934
    %v1975 = vpack.c.bf16 %v1943, %v1939
    %v1976 = vpack.c.bf16 %v1944, %v1940
    %v1977 = vpack.c.bf16 %v1945, %v1941
    %v1978 = vpack.c.bf16 %v1946, %v1942
    %v1979 = vld [vmem:[#allocation5] sm:$0xff]
    %v1980 = vld [vmem:[#allocation5 + $0x8] sm:$0xff]
    %v1981 = vld [vmem:[#allocation5 + $0x10] sm:$0xff]
    %v1982 = vld [vmem:[#allocation5 + $0x18] sm:$0xff]
    %v1983 = vld [vmem:[#allocation5 + $0x20] sm:$0xff]
    %v1984 = vld [vmem:[#allocation5 + $0x28] sm:$0xff]
    %v1985 = vld [vmem:[#allocation5 + $0x30] sm:$0xff]
    %v1986 = vld [vmem:[#allocation5 + $0x38] sm:$0xff]
    %v1987 = vld [vmem:[#allocation5 + $0x40] sm:$0xff]
    %v1988 = vld [vmem:[#allocation5 + $0x48] sm:$0xff]
    %v1989 = vld [vmem:[#allocation5 + $0x50] sm:$0xff]
    %v1990 = vld [vmem:[#allocation5 + $0x58] sm:$0xff]
    %v1991 = vld [vmem:[#allocation5 + $0x60] sm:$0xff]
    %v1992 = vld [vmem:[#allocation5 + $0x68] sm:$0xff]
    %v1993 = vld [vmem:[#allocation5 + $0x70] sm:$0xff]
    %v1994 = vld [vmem:[#allocation5 + $0x78] sm:$0xff]
    %v1995 = vld [vmem:[#allocation5 + $0x80] sm:$0xff]
    %v1996 = vld [vmem:[#allocation5 + $0x88] sm:$0xff]
    %v1997 = vld [vmem:[#allocation5 + $0x90] sm:$0xff]
    %v1998 = vld [vmem:[#allocation5 + $0x98] sm:$0xff]
    %v1999 = vld [vmem:[#allocation5 + $0xa0] sm:$0xff]
    %v2000 = vld [vmem:[#allocation5 + $0xa8] sm:$0xff]
    %v2001 = vld [vmem:[#allocation5 + $0xb0] sm:$0xff]
    %v2002 = vld [vmem:[#allocation5 + $0xb8] sm:$0xff]
    %v2003 = vld [vmem:[#allocation5 + $0xc0] sm:$0xff]
    %v2004 = vld [vmem:[#allocation5 + $0xc8] sm:$0xff]
    %v2005 = vld [vmem:[#allocation5 + $0xd0] sm:$0xff]
    %v2006 = vld [vmem:[#allocation5 + $0xd8] sm:$0xff]
    %v2007 = vld [vmem:[#allocation5 + $0xe0] sm:$0xff]
    %v2008 = vld [vmem:[#allocation5 + $0xe8] sm:$0xff]
    %v2009 = vld [vmem:[#allocation5 + $0xf0] sm:$0xff]
    %v2010 = vld [vmem:[#allocation5 + $0xf8] sm:$0xff]
    %v2011 = vld [vmem:[#allocation5 + $0x100] sm:$0xff]
    %v2012 = vld [vmem:[#allocation5 + $0x108] sm:$0xff]
    %v2013 = vld [vmem:[#allocation5 + $0x110] sm:$0xff]
    %v2014 = vld [vmem:[#allocation5 + $0x118] sm:$0xff]
    %v2015 = vld [vmem:[#allocation5 + $0x120] sm:$0xff]
    %v2016 = vld [vmem:[#allocation5 + $0x128] sm:$0xff]
    %v2017 = vld [vmem:[#allocation5 + $0x130] sm:$0xff]
    %v2018 = vld [vmem:[#allocation5 + $0x138] sm:$0xff]
    %v2019 = vld [vmem:[#allocation5 + $0x140] sm:$0xff]
    %v2020 = vld [vmem:[#allocation5 + $0x148] sm:$0xff]
    %v2021 = vld [vmem:[#allocation5 + $0x150] sm:$0xff]
    %v2022 = vld [vmem:[#allocation5 + $0x158] sm:$0xff]
    %v2023 = vld [vmem:[#allocation5 + $0x160] sm:$0xff]
    %v2024 = vld [vmem:[#allocation5 + $0x168] sm:$0xff]
    %v2025 = vld [vmem:[#allocation5 + $0x170] sm:$0xff]
    %v2026 = vld [vmem:[#allocation5 + $0x178] sm:$0xff]
    %v2027 = vld [vmem:[#allocation5 + $0x180] sm:$0xff]
    %v2028 = vld [vmem:[#allocation5 + $0x188] sm:$0xff]
    %v2029 = vld [vmem:[#allocation5 + $0x190] sm:$0xff]
    %v2030 = vld [vmem:[#allocation5 + $0x198] sm:$0xff]
    %v2031 = vld [vmem:[#allocation5 + $0x1a0] sm:$0xff]
    %v2032 = vld [vmem:[#allocation5 + $0x1a8] sm:$0xff]
    %v2033 = vld [vmem:[#allocation5 + $0x1b0] sm:$0xff]
    %v2034 = vld [vmem:[#allocation5 + $0x1b8] sm:$0xff]
    %v2035 = vld [vmem:[#allocation5 + $0x1c0] sm:$0xff]
    %v2036 = vld [vmem:[#allocation5 + $0x1c8] sm:$0xff]
    %v2037 = vld [vmem:[#allocation5 + $0x1d0] sm:$0xff]
    %v2038 = vld [vmem:[#allocation5 + $0x1d8] sm:$0xff]
    %v2039 = vld [vmem:[#allocation5 + $0x1e0] sm:$0xff]
    %v2040 = vld [vmem:[#allocation5 + $0x1e8] sm:$0xff]
    %v2041 = vld [vmem:[#allocation5 + $0x1f0] sm:$0xff]
    %v2042 = vld [vmem:[#allocation5 + $0x1f8] sm:$0xff]
    %v2043 = vld [vmem:[#allocation5 + $0x200] sm:$0xff]
    %v2044 = vld [vmem:[#allocation5 + $0x208] sm:$0xff]
    %v2045 = vld [vmem:[#allocation5 + $0x210] sm:$0xff]
    %v2046 = vld [vmem:[#allocation5 + $0x218] sm:$0xff]
    %v2047 = vld [vmem:[#allocation5 + $0x220] sm:$0xff]
    %v2048 = vld [vmem:[#allocation5 + $0x228] sm:$0xff]
    %v2049 = vld [vmem:[#allocation5 + $0x230] sm:$0xff]
    %v2050 = vld [vmem:[#allocation5 + $0x238] sm:$0xff]
    %v2051 = vld [vmem:[#allocation5 + $0x240] sm:$0xff]
    %v2052 = vld [vmem:[#allocation5 + $0x248] sm:$0xff]
    %v2053 = vld [vmem:[#allocation5 + $0x250] sm:$0xff]
    %v2054 = vld [vmem:[#allocation5 + $0x258] sm:$0xff]
    %v2055 = vld [vmem:[#allocation5 + $0x260] sm:$0xff]
    %v2056 = vld [vmem:[#allocation5 + $0x268] sm:$0xff]
    %v2057 = vld [vmem:[#allocation5 + $0x270] sm:$0xff]
    %v2058 = vld [vmem:[#allocation5 + $0x278] sm:$0xff]
    %v2059 = vld [vmem:[#allocation5 + $0x280] sm:$0xff]
    %v2060 = vld [vmem:[#allocation5 + $0x288] sm:$0xff]
    %v2061 = vld [vmem:[#allocation5 + $0x290] sm:$0xff]
    %v2062 = vld [vmem:[#allocation5 + $0x298] sm:$0xff]
    %v2063 = vld [vmem:[#allocation5 + $0x2a0] sm:$0xff]
    %v2064 = vld [vmem:[#allocation5 + $0x2a8] sm:$0xff]
    %v2065 = vld [vmem:[#allocation5 + $0x2b0] sm:$0xff]
    %v2066 = vld [vmem:[#allocation5 + $0x2b8] sm:$0xff]
    %v2067 = vld [vmem:[#allocation5 + $0x2c0] sm:$0xff]
    %v2068 = vld [vmem:[#allocation5 + $0x2c8] sm:$0xff]
    %v2069 = vld [vmem:[#allocation5 + $0x2d0] sm:$0xff]
    %v2070 = vld [vmem:[#allocation5 + $0x2d8] sm:$0xff]
    %v2071 = vld [vmem:[#allocation5 + $0x2e0] sm:$0xff]
    %v2072 = vld [vmem:[#allocation5 + $0x2e8] sm:$0xff]
    %v2073 = vld [vmem:[#allocation5 + $0x2f0] sm:$0xff]
    %v2074 = vld [vmem:[#allocation5 + $0x2f8] sm:$0xff]
    %v2075 = vld [vmem:[#allocation5 + $0x300] sm:$0xff]
    %v2076 = vld [vmem:[#allocation5 + $0x308] sm:$0xff]
    %v2077 = vld [vmem:[#allocation5 + $0x310] sm:$0xff]
    %v2078 = vld [vmem:[#allocation5 + $0x318] sm:$0xff]
    %v2079 = vld [vmem:[#allocation5 + $0x320] sm:$0xff]
    %v2080 = vld [vmem:[#allocation5 + $0x328] sm:$0xff]
    %v2081 = vld [vmem:[#allocation5 + $0x330] sm:$0xff]
    %v2082 = vld [vmem:[#allocation5 + $0x338] sm:$0xff]
    %v2083 = vld [vmem:[#allocation5 + $0x340] sm:$0xff]
    %v2084 = vld [vmem:[#allocation5 + $0x348] sm:$0xff]
    %v2085 = vld [vmem:[#allocation5 + $0x350] sm:$0xff]
    %v2086 = vld [vmem:[#allocation5 + $0x358] sm:$0xff]
    %v2087 = vld [vmem:[#allocation5 + $0x360] sm:$0xff]
    %v2088 = vld [vmem:[#allocation5 + $0x368] sm:$0xff]
    %v2089 = vld [vmem:[#allocation5 + $0x370] sm:$0xff]
    %v2090 = vld [vmem:[#allocation5 + $0x378] sm:$0xff]
    %v2091 = vld [vmem:[#allocation5 + $0x380] sm:$0xff]
    %v2092 = vld [vmem:[#allocation5 + $0x388] sm:$0xff]
    %v2093 = vld [vmem:[#allocation5 + $0x390] sm:$0xff]
    %v2094 = vld [vmem:[#allocation5 + $0x398] sm:$0xff]
    %v2095 = vld [vmem:[#allocation5 + $0x3a0] sm:$0xff]
    %v2096 = vld [vmem:[#allocation5 + $0x3a8] sm:$0xff]
    %v2097 = vld [vmem:[#allocation5 + $0x3b0] sm:$0xff]
    %v2098 = vld [vmem:[#allocation5 + $0x3b8] sm:$0xff]
    %v2099 = vld [vmem:[#allocation5 + $0x3c0] sm:$0xff]
    %v2100 = vld [vmem:[#allocation5 + $0x3c8] sm:$0xff]
    %v2101 = vld [vmem:[#allocation5 + $0x3d0] sm:$0xff]
    %v2102 = vld [vmem:[#allocation5 + $0x3d8] sm:$0xff]
    %v2103 = vld [vmem:[#allocation5 + $0x3e0] sm:$0xff]
    %v2104 = vld [vmem:[#allocation5 + $0x3e8] sm:$0xff]
    %v2105 = vld [vmem:[#allocation5 + $0x3f0] sm:$0xff]
    %v2106 = vld [vmem:[#allocation5 + $0x3f8] sm:$0xff]
    %v2107 = vld [vmem:[%s6] sm:$0xf]
    %v2109 = vlaneseq
    %v2110 = vshrl.u32 %v2109, 7
    %v2111 = vsub.s32 0, %v2110
    %v2112 = vrot.slane %v2107, %v2111
    %v2113 = vlaneseq
    %v2114 = vshrl.u32 %v2113, 7
    %v2115 = vsub.s32 1, %v2114
    %v2116 = vrot.slane %v2107, %v2115
    %v2117 = vlaneseq
    %v2118 = vshrl.u32 %v2117, 7
    %v2119 = vsub.s32 2, %v2118
    %v2120 = vrot.slane %v2107, %v2119
    %v2121 = vlaneseq
    %v2122 = vshrl.u32 %v2121, 7
    %v2123 = vsub.s32 3, %v2122
    %v2124 = vrot.slane %v2107, %v2123
    %v2257 = vunpack.c.l.b16 %v1979
    %v2258 = vunpack.c.h.b16 %v1979
    %v2259 = vunpack.c.l.b16 %v1980
    %v2260 = vunpack.c.h.b16 %v1980
    %v2261 = vunpack.c.l.b16 %v1981
    %v2262 = vunpack.c.h.b16 %v1981
    %v2263 = vunpack.c.l.b16 %v1982
    %v2264 = vunpack.c.h.b16 %v1982
    %v2265 = vunpack.c.l.b16 %v1983
    %v2266 = vunpack.c.h.b16 %v1983
    %v2267 = vunpack.c.l.b16 %v1984
    %v2268 = vunpack.c.h.b16 %v1984
    %v2269 = vunpack.c.l.b16 %v1985
    %v2270 = vunpack.c.h.b16 %v1985
    %v2271 = vunpack.c.l.b16 %v1986
    %v2272 = vunpack.c.h.b16 %v1986
    %v2273 = vunpack.c.l.b16 %v1987
    %v2274 = vunpack.c.h.b16 %v1987
    %v2275 = vunpack.c.l.b16 %v1988
    %v2276 = vunpack.c.h.b16 %v1988
    %v2277 = vunpack.c.l.b16 %v1989
    %v2278 = vunpack.c.h.b16 %v1989
    %v2279 = vunpack.c.l.b16 %v1990
    %v2280 = vunpack.c.h.b16 %v1990
    %v2281 = vunpack.c.l.b16 %v1991
    %v2282 = vunpack.c.h.b16 %v1991
    %v2283 = vunpack.c.l.b16 %v1992
    %v2284 = vunpack.c.h.b16 %v1992
    %v2285 = vunpack.c.l.b16 %v1993
    %v2286 = vunpack.c.h.b16 %v1993
    %v2287 = vunpack.c.l.b16 %v1994
    %v2288 = vunpack.c.h.b16 %v1994
    %v2289 = vunpack.c.l.b16 %v1995
    %v2290 = vunpack.c.h.b16 %v1995
    %v2291 = vunpack.c.l.b16 %v1996
    %v2292 = vunpack.c.h.b16 %v1996
    %v2293 = vunpack.c.l.b16 %v1997
    %v2294 = vunpack.c.h.b16 %v1997
    %v2295 = vunpack.c.l.b16 %v1998
    %v2296 = vunpack.c.h.b16 %v1998
    %v2297 = vunpack.c.l.b16 %v1999
    %v2298 = vunpack.c.h.b16 %v1999
    %v2299 = vunpack.c.l.b16 %v2000
    %v2300 = vunpack.c.h.b16 %v2000
    %v2301 = vunpack.c.l.b16 %v2001
    %v2302 = vunpack.c.h.b16 %v2001
    %v2303 = vunpack.c.l.b16 %v2002
    %v2304 = vunpack.c.h.b16 %v2002
    %v2305 = vunpack.c.l.b16 %v2003
    %v2306 = vunpack.c.h.b16 %v2003
    %v2307 = vunpack.c.l.b16 %v2004
    %v2308 = vunpack.c.h.b16 %v2004
    %v2309 = vunpack.c.l.b16 %v2005
    %v2310 = vunpack.c.h.b16 %v2005
    %v2311 = vunpack.c.l.b16 %v2006
    %v2312 = vunpack.c.h.b16 %v2006
    %v2313 = vunpack.c.l.b16 %v2007
    %v2314 = vunpack.c.h.b16 %v2007
    %v2315 = vunpack.c.l.b16 %v2008
    %v2316 = vunpack.c.h.b16 %v2008
    %v2317 = vunpack.c.l.b16 %v2009
    %v2318 = vunpack.c.h.b16 %v2009
    %v2319 = vunpack.c.l.b16 %v2010
    %v2320 = vunpack.c.h.b16 %v2010
    %v2321 = vunpack.c.l.b16 %v2011
    %v2322 = vunpack.c.h.b16 %v2011
    %v2323 = vunpack.c.l.b16 %v2012
    %v2324 = vunpack.c.h.b16 %v2012
    %v2325 = vunpack.c.l.b16 %v2013
    %v2326 = vunpack.c.h.b16 %v2013
    %v2327 = vunpack.c.l.b16 %v2014
    %v2328 = vunpack.c.h.b16 %v2014
    %v2329 = vunpack.c.l.b16 %v2015
    %v2330 = vunpack.c.h.b16 %v2015
    %v2331 = vunpack.c.l.b16 %v2016
    %v2332 = vunpack.c.h.b16 %v2016
    %v2333 = vunpack.c.l.b16 %v2017
    %v2334 = vunpack.c.h.b16 %v2017
    %v2335 = vunpack.c.l.b16 %v2018
    %v2336 = vunpack.c.h.b16 %v2018
    %v2337 = vunpack.c.l.b16 %v2019
    %v2338 = vunpack.c.h.b16 %v2019
    %v2339 = vunpack.c.l.b16 %v2020
    %v2340 = vunpack.c.h.b16 %v2020
    %v2341 = vunpack.c.l.b16 %v2021
    %v2342 = vunpack.c.h.b16 %v2021
    %v2343 = vunpack.c.l.b16 %v2022
    %v2344 = vunpack.c.h.b16 %v2022
    %v2345 = vunpack.c.l.b16 %v2023
    %v2346 = vunpack.c.h.b16 %v2023
    %v2347 = vunpack.c.l.b16 %v2024
    %v2348 = vunpack.c.h.b16 %v2024
    %v2349 = vunpack.c.l.b16 %v2025
    %v2350 = vunpack.c.h.b16 %v2025
    %v2351 = vunpack.c.l.b16 %v2026
    %v2352 = vunpack.c.h.b16 %v2026
    %v2353 = vunpack.c.l.b16 %v2027
    %v2354 = vunpack.c.h.b16 %v2027
    %v2355 = vunpack.c.l.b16 %v2028
    %v2356 = vunpack.c.h.b16 %v2028
    %v2357 = vunpack.c.l.b16 %v2029
    %v2358 = vunpack.c.h.b16 %v2029
    %v2359 = vunpack.c.l.b16 %v2030
    %v2360 = vunpack.c.h.b16 %v2030
    %v2361 = vunpack.c.l.b16 %v2031
    %v2362 = vunpack.c.h.b16 %v2031
    %v2363 = vunpack.c.l.b16 %v2032
    %v2364 = vunpack.c.h.b16 %v2032
    %v2365 = vunpack.c.l.b16 %v2033
    %v2366 = vunpack.c.h.b16 %v2033
    %v2367 = vunpack.c.l.b16 %v2034
    %v2368 = vunpack.c.h.b16 %v2034
    %v2369 = vunpack.c.l.b16 %v2035
    %v2370 = vunpack.c.h.b16 %v2035
    %v2371 = vunpack.c.l.b16 %v2036
    %v2372 = vunpack.c.h.b16 %v2036
    %v2373 = vunpack.c.l.b16 %v2037
    %v2374 = vunpack.c.h.b16 %v2037
    %v2375 = vunpack.c.l.b16 %v2038
    %v2376 = vunpack.c.h.b16 %v2038
    %v2377 = vunpack.c.l.b16 %v2039
    %v2378 = vunpack.c.h.b16 %v2039
    %v2379 = vunpack.c.l.b16 %v2040
    %v2380 = vunpack.c.h.b16 %v2040
    %v2381 = vunpack.c.l.b16 %v2041
    %v2382 = vunpack.c.h.b16 %v2041
    %v2383 = vunpack.c.l.b16 %v2042
    %v2384 = vunpack.c.h.b16 %v2042
    %v2385 = vunpack.c.l.b16 %v2043
    %v2386 = vunpack.c.h.b16 %v2043
    %v2387 = vunpack.c.l.b16 %v2044
    %v2388 = vunpack.c.h.b16 %v2044
    %v2389 = vunpack.c.l.b16 %v2045
    %v2390 = vunpack.c.h.b16 %v2045
    %v2391 = vunpack.c.l.b16 %v2046
    %v2392 = vunpack.c.h.b16 %v2046
    %v2393 = vunpack.c.l.b16 %v2047
    %v2394 = vunpack.c.h.b16 %v2047
    %v2395 = vunpack.c.l.b16 %v2048
    %v2396 = vunpack.c.h.b16 %v2048
    %v2397 = vunpack.c.l.b16 %v2049
    %v2398 = vunpack.c.h.b16 %v2049
    %v2399 = vunpack.c.l.b16 %v2050
    %v2400 = vunpack.c.h.b16 %v2050
    %v2401 = vunpack.c.l.b16 %v2051
    %v2402 = vunpack.c.h.b16 %v2051
    %v2403 = vunpack.c.l.b16 %v2052
    %v2404 = vunpack.c.h.b16 %v2052
    %v2405 = vunpack.c.l.b16 %v2053
    %v2406 = vunpack.c.h.b16 %v2053
    %v2407 = vunpack.c.l.b16 %v2054
    %v2408 = vunpack.c.h.b16 %v2054
    %v2409 = vunpack.c.l.b16 %v2055
    %v2410 = vunpack.c.h.b16 %v2055
    %v2411 = vunpack.c.l.b16 %v2056
    %v2412 = vunpack.c.h.b16 %v2056
    %v2413 = vunpack.c.l.b16 %v2057
    %v2414 = vunpack.c.h.b16 %v2057
    %v2415 = vunpack.c.l.b16 %v2058
    %v2416 = vunpack.c.h.b16 %v2058
    %v2417 = vunpack.c.l.b16 %v2059
    %v2418 = vunpack.c.h.b16 %v2059
    %v2419 = vunpack.c.l.b16 %v2060
    %v2420 = vunpack.c.h.b16 %v2060
    %v2421 = vunpack.c.l.b16 %v2061
    %v2422 = vunpack.c.h.b16 %v2061
    %v2423 = vunpack.c.l.b16 %v2062
    %v2424 = vunpack.c.h.b16 %v2062
    %v2425 = vunpack.c.l.b16 %v2063
    %v2426 = vunpack.c.h.b16 %v2063
    %v2427 = vunpack.c.l.b16 %v2064
    %v2428 = vunpack.c.h.b16 %v2064
    %v2429 = vunpack.c.l.b16 %v2065
    %v2430 = vunpack.c.h.b16 %v2065
    %v2431 = vunpack.c.l.b16 %v2066
    %v2432 = vunpack.c.h.b16 %v2066
    %v2433 = vunpack.c.l.b16 %v2067
    %v2434 = vunpack.c.h.b16 %v2067
    %v2435 = vunpack.c.l.b16 %v2068
    %v2436 = vunpack.c.h.b16 %v2068
    %v2437 = vunpack.c.l.b16 %v2069
    %v2438 = vunpack.c.h.b16 %v2069
    %v2439 = vunpack.c.l.b16 %v2070
    %v2440 = vunpack.c.h.b16 %v2070
    %v2441 = vunpack.c.l.b16 %v2071
    %v2442 = vunpack.c.h.b16 %v2071
    %v2443 = vunpack.c.l.b16 %v2072
    %v2444 = vunpack.c.h.b16 %v2072
    %v2445 = vunpack.c.l.b16 %v2073
    %v2446 = vunpack.c.h.b16 %v2073
    %v2447 = vunpack.c.l.b16 %v2074
    %v2448 = vunpack.c.h.b16 %v2074
    %v2449 = vunpack.c.l.b16 %v2075
    %v2450 = vunpack.c.h.b16 %v2075
    %v2451 = vunpack.c.l.b16 %v2076
    %v2452 = vunpack.c.h.b16 %v2076
    %v2453 = vunpack.c.l.b16 %v2077
    %v2454 = vunpack.c.h.b16 %v2077
    %v2455 = vunpack.c.l.b16 %v2078
    %v2456 = vunpack.c.h.b16 %v2078
    %v2457 = vunpack.c.l.b16 %v2079
    %v2458 = vunpack.c.h.b16 %v2079
    %v2459 = vunpack.c.l.b16 %v2080
    %v2460 = vunpack.c.h.b16 %v2080
    %v2461 = vunpack.c.l.b16 %v2081
    %v2462 = vunpack.c.h.b16 %v2081
    %v2463 = vunpack.c.l.b16 %v2082
    %v2464 = vunpack.c.h.b16 %v2082
    %v2465 = vunpack.c.l.b16 %v2083
    %v2466 = vunpack.c.h.b16 %v2083
    %v2467 = vunpack.c.l.b16 %v2084
    %v2468 = vunpack.c.h.b16 %v2084
    %v2469 = vunpack.c.l.b16 %v2085
    %v2470 = vunpack.c.h.b16 %v2085
    %v2471 = vunpack.c.l.b16 %v2086
    %v2472 = vunpack.c.h.b16 %v2086
    %v2473 = vunpack.c.l.b16 %v2087
    %v2474 = vunpack.c.h.b16 %v2087
    %v2475 = vunpack.c.l.b16 %v2088
    %v2476 = vunpack.c.h.b16 %v2088
    %v2477 = vunpack.c.l.b16 %v2089
    %v2478 = vunpack.c.h.b16 %v2089
    %v2479 = vunpack.c.l.b16 %v2090
    %v2480 = vunpack.c.h.b16 %v2090
    %v2481 = vunpack.c.l.b16 %v2091
    %v2482 = vunpack.c.h.b16 %v2091
    %v2483 = vunpack.c.l.b16 %v2092
    %v2484 = vunpack.c.h.b16 %v2092
    %v2485 = vunpack.c.l.b16 %v2093
    %v2486 = vunpack.c.h.b16 %v2093
    %v2487 = vunpack.c.l.b16 %v2094
    %v2488 = vunpack.c.h.b16 %v2094
    %v2489 = vunpack.c.l.b16 %v2095
    %v2490 = vunpack.c.h.b16 %v2095
    %v2491 = vunpack.c.l.b16 %v2096
    %v2492 = vunpack.c.h.b16 %v2096
    %v2493 = vunpack.c.l.b16 %v2097
    %v2494 = vunpack.c.h.b16 %v2097
    %v2495 = vunpack.c.l.b16 %v2098
    %v2496 = vunpack.c.h.b16 %v2098
    %v2497 = vunpack.c.l.b16 %v2099
    %v2498 = vunpack.c.h.b16 %v2099
    %v2499 = vunpack.c.l.b16 %v2100
    %v2500 = vunpack.c.h.b16 %v2100
    %v2501 = vunpack.c.l.b16 %v2101
    %v2502 = vunpack.c.h.b16 %v2101
    %v2503 = vunpack.c.l.b16 %v2102
    %v2504 = vunpack.c.h.b16 %v2102
    %v2505 = vunpack.c.l.b16 %v2103
    %v2506 = vunpack.c.h.b16 %v2103
    %v2507 = vunpack.c.l.b16 %v2104
    %v2508 = vunpack.c.h.b16 %v2104
    %v2509 = vunpack.c.l.b16 %v2105
    %v2510 = vunpack.c.h.b16 %v2105
    %v2511 = vunpack.c.l.b16 %v2106
    %v2512 = vunpack.c.h.b16 %v2106
    %v2513 = vpack.c.b16 %v2261, %v2257
    %v2514 = vpack.c.b16 %v2262, %v2258
    %v2515 = vpack.c.b16 %v2263, %v2259
    %v2516 = vpack.c.b16 %v2264, %v2260
    %v2517 = vpack.c.b16 %v2269, %v2265
    %v2518 = vpack.c.b16 %v2270, %v2266
    %v2519 = vpack.c.b16 %v2271, %v2267
    %v2520 = vpack.c.b16 %v2272, %v2268
    %v2521 = vpack.c.b16 %v2277, %v2273
    %v2522 = vpack.c.b16 %v2278, %v2274
    %v2523 = vpack.c.b16 %v2279, %v2275
    %v2524 = vpack.c.b16 %v2280, %v2276
    %v2525 = vpack.c.b16 %v2285, %v2281
    %v2526 = vpack.c.b16 %v2286, %v2282
    %v2527 = vpack.c.b16 %v2287, %v2283
    %v2528 = vpack.c.b16 %v2288, %v2284
    %v2529 = vpack.c.b16 %v2293, %v2289
    %v2530 = vpack.c.b16 %v2294, %v2290
    %v2531 = vpack.c.b16 %v2295, %v2291
    %v2532 = vpack.c.b16 %v2296, %v2292
    %v2533 = vpack.c.b16 %v2301, %v2297
    %v2534 = vpack.c.b16 %v2302, %v2298
    %v2535 = vpack.c.b16 %v2303, %v2299
    %v2536 = vpack.c.b16 %v2304, %v2300
    %v2537 = vpack.c.b16 %v2309, %v2305
    %v2538 = vpack.c.b16 %v2310, %v2306
    %v2539 = vpack.c.b16 %v2311, %v2307
    %v2540 = vpack.c.b16 %v2312, %v2308
    %v2541 = vpack.c.b16 %v2317, %v2313
    %v2542 = vpack.c.b16 %v2318, %v2314
    %v2543 = vpack.c.b16 %v2319, %v2315
    %v2544 = vpack.c.b16 %v2320, %v2316
    %v2545 = vpack.c.b16 %v2325, %v2321
    %v2546 = vpack.c.b16 %v2326, %v2322
    %v2547 = vpack.c.b16 %v2327, %v2323
    %v2548 = vpack.c.b16 %v2328, %v2324
    %v2549 = vpack.c.b16 %v2333, %v2329
    %v2550 = vpack.c.b16 %v2334, %v2330
    %v2551 = vpack.c.b16 %v2335, %v2331
    %v2552 = vpack.c.b16 %v2336, %v2332
    %v2553 = vpack.c.b16 %v2341, %v2337
    %v2554 = vpack.c.b16 %v2342, %v2338
    %v2555 = vpack.c.b16 %v2343, %v2339
    %v2556 = vpack.c.b16 %v2344, %v2340
    %v2557 = vpack.c.b16 %v2349, %v2345
    %v2558 = vpack.c.b16 %v2350, %v2346
    %v2559 = vpack.c.b16 %v2351, %v2347
    %v2560 = vpack.c.b16 %v2352, %v2348
    %v2561 = vpack.c.b16 %v2357, %v2353
    %v2562 = vpack.c.b16 %v2358, %v2354
    %v2563 = vpack.c.b16 %v2359, %v2355
    %v2564 = vpack.c.b16 %v2360, %v2356
    %v2565 = vpack.c.b16 %v2365, %v2361
    %v2566 = vpack.c.b16 %v2366, %v2362
    %v2567 = vpack.c.b16 %v2367, %v2363
    %v2568 = vpack.c.b16 %v2368, %v2364
    %v2569 = vpack.c.b16 %v2373, %v2369
    %v2570 = vpack.c.b16 %v2374, %v2370
    %v2571 = vpack.c.b16 %v2375, %v2371
    %v2572 = vpack.c.b16 %v2376, %v2372
    %v2573 = vpack.c.b16 %v2381, %v2377
    %v2574 = vpack.c.b16 %v2382, %v2378
    %v2575 = vpack.c.b16 %v2383, %v2379
    %v2576 = vpack.c.b16 %v2384, %v2380
    %v2577 = vpack.c.b16 %v2389, %v2385
    %v2578 = vpack.c.b16 %v2390, %v2386
    %v2579 = vpack.c.b16 %v2391, %v2387
    %v2580 = vpack.c.b16 %v2392, %v2388
    %v2581 = vpack.c.b16 %v2397, %v2393
    %v2582 = vpack.c.b16 %v2398, %v2394
    %v2583 = vpack.c.b16 %v2399, %v2395
    %v2584 = vpack.c.b16 %v2400, %v2396
    %v2585 = vpack.c.b16 %v2405, %v2401
    %v2586 = vpack.c.b16 %v2406, %v2402
    %v2587 = vpack.c.b16 %v2407, %v2403
    %v2588 = vpack.c.b16 %v2408, %v2404
    %v2589 = vpack.c.b16 %v2413, %v2409
    %v2590 = vpack.c.b16 %v2414, %v2410
    %v2591 = vpack.c.b16 %v2415, %v2411
    %v2592 = vpack.c.b16 %v2416, %v2412
    %v2593 = vpack.c.b16 %v2421, %v2417
    %v2594 = vpack.c.b16 %v2422, %v2418
    %v2595 = vpack.c.b16 %v2423, %v2419
    %v2596 = vpack.c.b16 %v2424, %v2420
    %v2597 = vpack.c.b16 %v2429, %v2425
    %v2598 = vpack.c.b16 %v2430, %v2426
    %v2599 = vpack.c.b16 %v2431, %v2427
    %v2600 = vpack.c.b16 %v2432, %v2428
    %v2601 = vpack.c.b16 %v2437, %v2433
    %v2602 = vpack.c.b16 %v2438, %v2434
    %v2603 = vpack.c.b16 %v2439, %v2435
    %v2604 = vpack.c.b16 %v2440, %v2436
    %v2605 = vpack.c.b16 %v2445, %v2441
    %v2606 = vpack.c.b16 %v2446, %v2442
    %v2607 = vpack.c.b16 %v2447, %v2443
    %v2608 = vpack.c.b16 %v2448, %v2444
    %v2609 = vpack.c.b16 %v2453, %v2449
    %v2610 = vpack.c.b16 %v2454, %v2450
    %v2611 = vpack.c.b16 %v2455, %v2451
    %v2612 = vpack.c.b16 %v2456, %v2452
    %v2613 = vpack.c.b16 %v2461, %v2457
    %v2614 = vpack.c.b16 %v2462, %v2458
    %v2615 = vpack.c.b16 %v2463, %v2459
    %v2616 = vpack.c.b16 %v2464, %v2460
    %v2617 = vpack.c.b16 %v2469, %v2465
    %v2618 = vpack.c.b16 %v2470, %v2466
    %v2619 = vpack.c.b16 %v2471, %v2467
    %v2620 = vpack.c.b16 %v2472, %v2468
    %v2621 = vpack.c.b16 %v2477, %v2473
    %v2622 = vpack.c.b16 %v2478, %v2474
    %v2623 = vpack.c.b16 %v2479, %v2475
    %v2624 = vpack.c.b16 %v2480, %v2476
    %v2625 = vpack.c.b16 %v2485, %v2481
    %v2626 = vpack.c.b16 %v2486, %v2482
    %v2627 = vpack.c.b16 %v2487, %v2483
    %v2628 = vpack.c.b16 %v2488, %v2484
    %v2629 = vpack.c.b16 %v2493, %v2489
    %v2630 = vpack.c.b16 %v2494, %v2490
    %v2631 = vpack.c.b16 %v2495, %v2491
    %v2632 = vpack.c.b16 %v2496, %v2492
    %v2633 = vpack.c.b16 %v2501, %v2497
    %v2634 = vpack.c.b16 %v2502, %v2498
    %v2635 = vpack.c.b16 %v2503, %v2499
    %v2636 = vpack.c.b16 %v2504, %v2500
    %v2637 = vpack.c.b16 %v2509, %v2505
    %v2638 = vpack.c.b16 %v2510, %v2506
    %v2639 = vpack.c.b16 %v2511, %v2507
    %v2640 = vpack.c.b16 %v2512, %v2508
    %2769 = vmatprep.subr.bf16.mxu0 %v2514
    %2770 = vmatpush1.bf16.msra.mxu0 %v2513
    %2771 = vmatprep.subr.bf16.mxu0 %v2518
    %2772 = vmatpush1.bf16.msra.mxu0 %v2517
    %2773 = vmatprep.subr.bf16.mxu0 %v2522
    %2774 = vmatpush1.bf16.msra.mxu0 %v2521
    %2775 = vmatprep.subr.bf16.mxu0 %v2526
    %2776 = vmatpush1.bf16.msra.mxu0 %v2525
    %2777 = vmatprep.subr.bf16.mxu0 %v2530
    %2778 = vmatpush1.bf16.msra.mxu0 %v2529
    %2779 = vmatprep.subr.bf16.mxu0 %v2534
    %2780 = vmatpush1.bf16.msra.mxu0 %v2533
    %2781 = vmatprep.subr.bf16.mxu0 %v2538
    %2782 = vmatpush1.bf16.msra.mxu0 %v2537
    %2783 = vmatprep.subr.bf16.mxu0 %v2542
    %2784 = vmatpush1.bf16.msra.mxu0 %v2541
    %2785 = vmatprep.subr.bf16.mxu0 %v2546
    %2786 = vmatpush1.bf16.msra.mxu0 %v2545
    %2787 = vmatprep.subr.bf16.mxu0 %v2550
    %2788 = vmatpush1.bf16.msra.mxu0 %v2549
    %2789 = vmatprep.subr.bf16.mxu0 %v2554
    %2790 = vmatpush1.bf16.msra.mxu0 %v2553
    %2791 = vmatprep.subr.bf16.mxu0 %v2558
    %2792 = vmatpush1.bf16.msra.mxu0 %v2557
    %2793 = vmatprep.subr.bf16.mxu0 %v2562
    %2794 = vmatpush1.bf16.msra.mxu0 %v2561
    %2795 = vmatprep.subr.bf16.mxu0 %v2566
    %2796 = vmatpush1.bf16.msra.mxu0 %v2565
    %2797 = vmatprep.subr.bf16.mxu0 %v2570
    %2798 = vmatpush1.bf16.msra.mxu0 %v2569
    %2799 = vmatprep.subr.bf16.mxu0 %v2574
    %2800 = vmatpush1.bf16.msra.mxu0 %v2573
    %2801 = vmatprep.mubr.bf16.mxu0 %v1948
    %2802 = vmatmul.mubr.bf16.gmra.mrb[0].mxu0 %v1947
    %v2803 = vpop.f32.mrb[0].mxu0
    %v2804 = vadd.f32 %v2112, %v2803
    %v2805 = vpop.f32.mrb[0].mxu0
    %v2806 = vadd.f32 %v2116, %v2805
    %v2807 = vpop.f32.mrb[0].mxu0
    %v2808 = vadd.f32 %v2112, %v2807
    %v2809 = vpop.f32.mrb[0].mxu0
    %v2810 = vadd.f32 %v2116, %v2809
    %2811 = vmatprep.mubr.bf16.mxu0 %v1952
    %2812 = vmatmul.mubr.bf16.gmra.mrb[0].mxu0 %v1951
    %v2813 = vpop.f32.mrb[0].mxu0
    %v2814 = vadd.f32 %v2112, %v2813
    %v2815 = vpop.f32.mrb[0].mxu0
    %v2816 = vadd.f32 %v2116, %v2815
    %v2817 = vpop.f32.mrb[0].mxu0
    %v2818 = vadd.f32 %v2112, %v2817
    %v2819 = vpop.f32.mrb[0].mxu0
    %v2820 = vadd.f32 %v2116, %v2819
    %2821 = vmatprep.mubr.bf16.mxu0 %v1956
    %2822 = vmatmul.mubr.bf16.gmra.mrb[0].mxu0 %v1955
    %v2823 = vpop.f32.mrb[0].mxu0
    %v2824 = vadd.f32 %v2112, %v2823
    %v2825 = vpop.f32.mrb[0].mxu0
    %v2826 = vadd.f32 %v2116, %v2825
    %v2827 = vpop.f32.mrb[0].mxu0
    %v2828 = vadd.f32 %v2112, %v2827
    %v2829 = vpop.f32.mrb[0].mxu0
    %v2830 = vadd.f32 %v2116, %v2829
    %2831 = vmatprep.mubr.bf16.mxu0 %v1960
    %2832 = vmatmul.mubr.bf16.gmra.mrb[0].mxu0 %v1959
    %v2833 = vpop.f32.mrb[0].mxu0
    %v2834 = vadd.f32 %v2112, %v2833
    %v2835 = vpop.f32.mrb[0].mxu0
    %v2836 = vadd.f32 %v2116, %v2835
    %v2837 = vpop.f32.mrb[0].mxu0
    %v2838 = vadd.f32 %v2112, %v2837
    %v2839 = vpop.f32.mrb[0].mxu0
    %v2840 = vadd.f32 %v2116, %v2839
    %2841 = vmatprep.mubr.bf16.mxu0 %v1964
    %2842 = vmatmul.mubr.bf16.gmra.mrb[0].mxu0 %v1963
    %v2843 = vpop.f32.mrb[0].mxu0
    %v2844 = vadd.f32 %v2112, %v2843
    %v2845 = vpop.f32.mrb[0].mxu0
    %v2846 = vadd.f32 %v2116, %v2845
    %v2847 = vpop.f32.mrb[0].mxu0
    %v2848 = vadd.f32 %v2112, %v2847
    %v2849 = vpop.f32.mrb[0].mxu0
    %v2850 = vadd.f32 %v2116, %v2849
    %2851 = vmatprep.mubr.bf16.mxu0 %v1968
    %2852 = vmatmul.mubr.bf16.gmra.mrb[0].mxu0 %v1967
    %v2853 = vpop.f32.mrb[0].mxu0
    %v2854 = vadd.f32 %v2112, %v2853
    %v2855 = vpop.f32.mrb[0].mxu0
    %v2856 = vadd.f32 %v2116, %v2855
    %v2857 = vpop.f32.mrb[0].mxu0
    %v2858 = vadd.f32 %v2112, %v2857
    %v2859 = vpop.f32.mrb[0].mxu0
    %v2860 = vadd.f32 %v2116, %v2859
    %2861 = vmatprep.mubr.bf16.mxu0 %v1972
    %2862 = vmatmul.mubr.bf16.gmra.mrb[0].mxu0 %v1971
    %v2863 = vpop.f32.mrb[0].mxu0
    %v2864 = vadd.f32 %v2112, %v2863
    %v2865 = vpop.f32.mrb[0].mxu0
    %v2866 = vadd.f32 %v2116, %v2865
    %v2867 = vpop.f32.mrb[0].mxu0
    %v2868 = vadd.f32 %v2112, %v2867
    %v2869 = vpop.f32.mrb[0].mxu0
    %v2870 = vadd.f32 %v2116, %v2869
    %2871 = vmatprep.mubr.bf16.mxu0 %v1976
    %2872 = vmatmul.mubr.bf16.gmra.mrb[0].mxu0 %v1975
    %v2873 = vpop.f32.mrb[0].mxu0
    %v2874 = vadd.f32 %v2112, %v2873
    %v2875 = vpop.f32.mrb[0].mxu0
    %v2876 = vadd.f32 %v2116, %v2875
    %v2877 = vpop.f32.mrb[0].mxu0
    %v2878 = vadd.f32 %v2112, %v2877
    %v2879 = vpop.f32.mrb[0].mxu0
    %v2880 = vadd.f32 %v2116, %v2879
    %2881 = vdwg.mxu0
    %2882 = vmatprep.subr.bf16.mxu0 %v2578
    %2883 = vmatpush1.bf16.msra.mxu0 %v2577
    %2884 = vmatprep.subr.bf16.mxu0 %v2582
    %2885 = vmatpush1.bf16.msra.mxu0 %v2581
    %2886 = vmatprep.subr.bf16.mxu0 %v2586
    %2887 = vmatpush1.bf16.msra.mxu0 %v2585
    %2888 = vmatprep.subr.bf16.mxu0 %v2590
    %2889 = vmatpush1.bf16.msra.mxu0 %v2589
    %2890 = vmatprep.subr.bf16.mxu0 %v2594
    %2891 = vmatpush1.bf16.msra.mxu0 %v2593
    %2892 = vmatprep.subr.bf16.mxu0 %v2598
    %2893 = vmatpush1.bf16.msra.mxu0 %v2597
    %2894 = vmatprep.subr.bf16.mxu0 %v2602
    %2895 = vmatpush1.bf16.msra.mxu0 %v2601
    %2896 = vmatprep.subr.bf16.mxu0 %v2606
    %2897 = vmatpush1.bf16.msra.mxu0 %v2605
    %2898 = vmatprep.subr.bf16.mxu0 %v2610
    %2899 = vmatpush1.bf16.msra.mxu0 %v2609
    %2900 = vmatprep.subr.bf16.mxu0 %v2614
    %2901 = vmatpush1.bf16.msra.mxu0 %v2613
    %2902 = vmatprep.subr.bf16.mxu0 %v2618
    %2903 = vmatpush1.bf16.msra.mxu0 %v2617
    %2904 = vmatprep.subr.bf16.mxu0 %v2622
    %2905 = vmatpush1.bf16.msra.mxu0 %v2621
    %2906 = vmatprep.subr.bf16.mxu0 %v2626
    %2907 = vmatpush1.bf16.msra.mxu0 %v2625
    %2908 = vmatprep.subr.bf16.mxu0 %v2630
    %2909 = vmatpush1.bf16.msra.mxu0 %v2629
    %2910 = vmatprep.subr.bf16.mxu0 %v2634
    %2911 = vmatpush1.bf16.msra.mxu0 %v2633
    %2912 = vmatprep.subr.bf16.mxu0 %v2638
    %2913 = vmatpush1.bf16.msra.mxu0 %v2637
    %2914 = vmatprep.mubr.bf16.mxu0 %v1950
    %2915 = vmatmul.mubr.bf16.gmra.mrb[0].mxu0 %v1949
    %v2916 = vpop.f32.mrb[0].mxu0
    %v2917 = vadd.f32 %v2804, %v2916
    %v2918 = vpop.f32.mrb[0].mxu0
    %v2919 = vadd.f32 %v2806, %v2918
    %v2920 = vpop.f32.mrb[0].mxu0
    %v2921 = vadd.f32 %v2808, %v2920
    %v2922 = vpop.f32.mrb[0].mxu0
    %v2923 = vadd.f32 %v2810, %v2922
    %2924 = vmatprep.mubr.bf16.mxu0 %v1954
    %2925 = vmatmul.mubr.bf16.gmra.mrb[0].mxu0 %v1953
    %v2926 = vpop.f32.mrb[0].mxu0
    %v2927 = vadd.f32 %v2814, %v2926
    %v2928 = vpop.f32.mrb[0].mxu0
    %v2929 = vadd.f32 %v2816, %v2928
    %v2930 = vpop.f32.mrb[0].mxu0
    %v2931 = vadd.f32 %v2818, %v2930
    %v2932 = vpop.f32.mrb[0].mxu0
    %v2933 = vadd.f32 %v2820, %v2932
    %2934 = vmatprep.mubr.bf16.mxu0 %v1958
    %2935 = vmatmul.mubr.bf16.gmra.mrb[0].mxu0 %v1957
    %v2936 = vpop.f32.mrb[0].mxu0
    %v2937 = vadd.f32 %v2824, %v2936
    %v2938 = vpop.f32.mrb[0].mxu0
    %v2939 = vadd.f32 %v2826, %v2938
    %v2940 = vpop.f32.mrb[0].mxu0
    %v2941 = vadd.f32 %v2828, %v2940
    %v2942 = vpop.f32.mrb[0].mxu0
    %v2943 = vadd.f32 %v2830, %v2942
    %2944 = vmatprep.mubr.bf16.mxu0 %v1962
    %2945 = vmatmul.mubr.bf16.gmra.mrb[0].mxu0 %v1961
    %v2946 = vpop.f32.mrb[0].mxu0
    %v2947 = vadd.f32 %v2834, %v2946
    %v2948 = vpop.f32.mrb[0].mxu0
    %v2949 = vadd.f32 %v2836, %v2948
    %v2950 = vpop.f32.mrb[0].mxu0
    %v2951 = vadd.f32 %v2838, %v2950
    %v2952 = vpop.f32.mrb[0].mxu0
    %v2953 = vadd.f32 %v2840, %v2952
    %2954 = vmatprep.mubr.bf16.mxu0 %v1966
    %2955 = vmatmul.mubr.bf16.gmra.mrb[0].mxu0 %v1965
    %v2956 = vpop.f32.mrb[0].mxu0
    %v2957 = vadd.f32 %v2844, %v2956
    %v2958 = vpop.f32.mrb[0].mxu0
    %v2959 = vadd.f32 %v2846, %v2958
    %v2960 = vpop.f32.mrb[0].mxu0
    %v2961 = vadd.f32 %v2848, %v2960
    %v2962 = vpop.f32.mrb[0].mxu0
    %v2963 = vadd.f32 %v2850, %v2962
    %2964 = vmatprep.mubr.bf16.mxu0 %v1970
    %2965 = vmatmul.mubr.bf16.gmra.mrb[0].mxu0 %v1969
    %v2966 = vpop.f32.mrb[0].mxu0
    %v2967 = vadd.f32 %v2854, %v2966
    %v2968 = vpop.f32.mrb[0].mxu0
    %v2969 = vadd.f32 %v2856, %v2968
    %v2970 = vpop.f32.mrb[0].mxu0
    %v2971 = vadd.f32 %v2858, %v2970
    %v2972 = vpop.f32.mrb[0].mxu0
    %v2973 = vadd.f32 %v2860, %v2972
    %2974 = vmatprep.mubr.bf16.mxu0 %v1974
    %2975 = vmatmul.mubr.bf16.gmra.mrb[0].mxu0 %v1973
    %v2976 = vpop.f32.mrb[0].mxu0
    %v2977 = vadd.f32 %v2864, %v2976
    %v2978 = vpop.f32.mrb[0].mxu0
    %v2979 = vadd.f32 %v2866, %v2978
    %v2980 = vpop.f32.mrb[0].mxu0
    %v2981 = vadd.f32 %v2868, %v2980
    %v2982 = vpop.f32.mrb[0].mxu0
    %v2983 = vadd.f32 %v2870, %v2982
    %2984 = vmatprep.mubr.bf16.mxu0 %v1978
    %2985 = vmatmul.mubr.bf16.gmra.mrb[0].mxu0 %v1977
    %v2986 = vpop.f32.mrb[0].mxu0
    %v2987 = vadd.f32 %v2874, %v2986
    %v2988 = vpop.f32.mrb[0].mxu0
    %v2989 = vadd.f32 %v2876, %v2988
    %v2990 = vpop.f32.mrb[0].mxu0
    %v2991 = vadd.f32 %v2878, %v2990
    %v2992 = vpop.f32.mrb[0].mxu0
    %v2993 = vadd.f32 %v2880, %v2992
    %2994 = vdwg.mxu0
    %2995 = vmatprep.subr.bf16.mxu0 %v2516
    %2996 = vmatpush1.bf16.msra.mxu0 %v2515
    %2997 = vmatprep.subr.bf16.mxu0 %v2520
    %2998 = vmatpush1.bf16.msra.mxu0 %v2519
    %2999 = vmatprep.subr.bf16.mxu0 %v2524
    %3000 = vmatpush1.bf16.msra.mxu0 %v2523
    %3001 = vmatprep.subr.bf16.mxu0 %v2528
    %3002 = vmatpush1.bf16.msra.mxu0 %v2527
    %3003 = vmatprep.subr.bf16.mxu0 %v2532
    %3004 = vmatpush1.bf16.msra.mxu0 %v2531
    %3005 = vmatprep.subr.bf16.mxu0 %v2536
    %3006 = vmatpush1.bf16.msra.mxu0 %v2535
    %3007 = vmatprep.subr.bf16.mxu0 %v2540
    %3008 = vmatpush1.bf16.msra.mxu0 %v2539
    %3009 = vmatprep.subr.bf16.mxu0 %v2544
    %3010 = vmatpush1.bf16.msra.mxu0 %v2543
    %3011 = vmatprep.subr.bf16.mxu0 %v2548
    %3012 = vmatpush1.bf16.msra.mxu0 %v2547
    %3013 = vmatprep.subr.bf16.mxu0 %v2552
    %3014 = vmatpush1.bf16.msra.mxu0 %v2551
    %3015 = vmatprep.subr.bf16.mxu0 %v2556
    %3016 = vmatpush1.bf16.msra.mxu0 %v2555
    %3017 = vmatprep.subr.bf16.mxu0 %v2560
    %3018 = vmatpush1.bf16.msra.mxu0 %v2559
    %3019 = vmatprep.subr.bf16.mxu0 %v2564
    %3020 = vmatpush1.bf16.msra.mxu0 %v2563
    %3021 = vmatprep.subr.bf16.mxu0 %v2568
    %3022 = vmatpush1.bf16.msra.mxu0 %v2567
    %3023 = vmatprep.subr.bf16.mxu0 %v2572
    %3024 = vmatpush1.bf16.msra.mxu0 %v2571
    %3025 = vmatprep.subr.bf16.mxu0 %v2576
    %3026 = vmatpush1.bf16.msra.mxu0 %v2575
    %3027 = vmatprep.mubr.bf16.mxu0 %v1948
    %3028 = vmatmul.mubr.bf16.gmra.mrb[0].mxu0 %v1947
    %v3029 = vpop.f32.mrb[0].mxu0
    %v3030 = vadd.f32 %v2120, %v3029
    %v3031 = vpop.f32.mrb[0].mxu0
    %v3032 = vadd.f32 %v2124, %v3031
    %v3033 = vpop.f32.mrb[0].mxu0
    %v3034 = vadd.f32 %v2120, %v3033
    %v3035 = vpop.f32.mrb[0].mxu0
    %v3036 = vadd.f32 %v2124, %v3035
    %3037 = vmatprep.mubr.bf16.mxu0 %v1952
    %3038 = vmatmul.mubr.bf16.gmra.mrb[0].mxu0 %v1951
    %v3039 = vpop.f32.mrb[0].mxu0
    %v3040 = vadd.f32 %v2120, %v3039
    %v3041 = vpop.f32.mrb[0].mxu0
    %v3042 = vadd.f32 %v2124, %v3041
    %v3043 = vpop.f32.mrb[0].mxu0
    %v3044 = vadd.f32 %v2120, %v3043
    %v3045 = vpop.f32.mrb[0].mxu0
    %v3046 = vadd.f32 %v2124, %v3045
    %3047 = vmatprep.mubr.bf16.mxu0 %v1956
    %3048 = vmatmul.mubr.bf16.gmra.mrb[0].mxu0 %v1955
    %v3049 = vpop.f32.mrb[0].mxu0
    %v3050 = vadd.f32 %v2120, %v3049
    %v3051 = vpop.f32.mrb[0].mxu0
    %v3052 = vadd.f32 %v2124, %v3051
    %v3053 = vpop.f32.mrb[0].mxu0
    %v3054 = vadd.f32 %v2120, %v3053
    %v3055 = vpop.f32.mrb[0].mxu0
    %v3056 = vadd.f32 %v2124, %v3055
    %3057 = vmatprep.mubr.bf16.mxu0 %v1960
    %3058 = vmatmul.mubr.bf16.gmra.mrb[0].mxu0 %v1959
    %v3059 = vpop.f32.mrb[0].mxu0
    %v3060 = vadd.f32 %v2120, %v3059
    %v3061 = vpop.f32.mrb[0].mxu0
    %v3062 = vadd.f32 %v2124, %v3061
    %v3063 = vpop.f32.mrb[0].mxu0
    %v3064 = vadd.f32 %v2120, %v3063
    %v3065 = vpop.f32.mrb[0].mxu0
    %v3066 = vadd.f32 %v2124, %v3065
    %3067 = vmatprep.mubr.bf16.mxu0 %v1964
    %3068 = vmatmul.mubr.bf16.gmra.mrb[0].mxu0 %v1963
    %v3069 = vpop.f32.mrb[0].mxu0
    %v3070 = vadd.f32 %v2120, %v3069
    %v3071 = vpop.f32.mrb[0].mxu0
    %v3072 = vadd.f32 %v2124, %v3071
    %v3073 = vpop.f32.mrb[0].mxu0
    %v3074 = vadd.f32 %v2120, %v3073
    %v3075 = vpop.f32.mrb[0].mxu0
    %v3076 = vadd.f32 %v2124, %v3075
    %3077 = vmatprep.mubr.bf16.mxu0 %v1968
    %3078 = vmatmul.mubr.bf16.gmra.mrb[0].mxu0 %v1967
    %v3079 = vpop.f32.mrb[0].mxu0
    %v3080 = vadd.f32 %v2120, %v3079
    %v3081 = vpop.f32.mrb[0].mxu0
    %v3082 = vadd.f32 %v2124, %v3081
    %v3083 = vpop.f32.mrb[0].mxu0
    %v3084 = vadd.f32 %v2120, %v3083
    %v3085 = vpop.f32.mrb[0].mxu0
    %v3086 = vadd.f32 %v2124, %v3085
    %3087 = vmatprep.mubr.bf16.mxu0 %v1972
    %3088 = vmatmul.mubr.bf16.gmra.mrb[0].mxu0 %v1971
    %v3089 = vpop.f32.mrb[0].mxu0
    %v3090 = vadd.f32 %v2120, %v3089
    %v3091 = vpop.f32.mrb[0].mxu0
    %v3092 = vadd.f32 %v2124, %v3091
    %v3093 = vpop.f32.mrb[0].mxu0
    %v3094 = vadd.f32 %v2120, %v3093
    %v3095 = vpop.f32.mrb[0].mxu0
    %v3096 = vadd.f32 %v2124, %v3095
    %3097 = vmatprep.mubr.bf16.mxu0 %v1976
    %3098 = vmatmul.mubr.bf16.gmra.mrb[0].mxu0 %v1975
    %v3099 = vpop.f32.mrb[0].mxu0
    %v3100 = vadd.f32 %v2120, %v3099
    %v3101 = vpop.f32.mrb[0].mxu0
    %v3102 = vadd.f32 %v2124, %v3101
    %v3103 = vpop.f32.mrb[0].mxu0
    %v3104 = vadd.f32 %v2120, %v3103
    %v3105 = vpop.f32.mrb[0].mxu0
    %v3106 = vadd.f32 %v2124, %v3105
    %3107 = vdwg.mxu0
    %3108 = vmatprep.subr.bf16.mxu0 %v2580
    %3109 = vmatpush1.bf16.msra.mxu0 %v2579
    %3110 = vmatprep.subr.bf16.mxu0 %v2584
    %3111 = vmatpush1.bf16.msra.mxu0 %v2583
    %3112 = vmatprep.subr.bf16.mxu0 %v2588
    %3113 = vmatpush1.bf16.msra.mxu0 %v2587
    %3114 = vmatprep.subr.bf16.mxu0 %v2592
    %3115 = vmatpush1.bf16.msra.mxu0 %v2591
    %3116 = vmatprep.subr.bf16.mxu0 %v2596
    %3117 = vmatpush1.bf16.msra.mxu0 %v2595
    %3118 = vmatprep.subr.bf16.mxu0 %v2600
    %3119 = vmatpush1.bf16.msra.mxu0 %v2599
    %3120 = vmatprep.subr.bf16.mxu0 %v2604
    %3121 = vmatpush1.bf16.msra.mxu0 %v2603
    %3122 = vmatprep.subr.bf16.mxu0 %v2608
    %3123 = vmatpush1.bf16.msra.mxu0 %v2607
    %3124 = vmatprep.subr.bf16.mxu0 %v2612
    %3125 = vmatpush1.bf16.msra.mxu0 %v2611
    %3126 = vmatprep.subr.bf16.mxu0 %v2616
    %3127 = vmatpush1.bf16.msra.mxu0 %v2615
    %3128 = vmatprep.subr.bf16.mxu0 %v2620
    %3129 = vmatpush1.bf16.msra.mxu0 %v2619
    %3130 = vmatprep.subr.bf16.mxu0 %v2624
    %3131 = vmatpush1.bf16.msra.mxu0 %v2623
    %3132 = vmatprep.subr.bf16.mxu0 %v2628
    %3133 = vmatpush1.bf16.msra.mxu0 %v2627
    %3134 = vmatprep.subr.bf16.mxu0 %v2632
    %3135 = vmatpush1.bf16.msra.mxu0 %v2631
    %3136 = vmatprep.subr.bf16.mxu0 %v2636
    %3137 = vmatpush1.bf16.msra.mxu0 %v2635
    %3138 = vmatprep.subr.bf16.mxu0 %v2640
    %3139 = vmatpush1.bf16.msra.mxu0 %v2639
    %3140 = vmatprep.mubr.bf16.mxu0 %v1950
    %3141 = vmatmul.mubr.bf16.gmra.mrb[0].mxu0 %v1949
    %v3142 = vpop.f32.mrb[0].mxu0
    %v3143 = vadd.f32 %v3030, %v3142
    %v3144 = vpop.f32.mrb[0].mxu0
    %v3145 = vadd.f32 %v3032, %v3144
    %v3146 = vpop.f32.mrb[0].mxu0
    %v3147 = vadd.f32 %v3034, %v3146
    %v3148 = vpop.f32.mrb[0].mxu0
    %v3149 = vadd.f32 %v3036, %v3148
    %3150 = vmatprep.mubr.bf16.mxu0 %v1954
    %3151 = vmatmul.mubr.bf16.gmra.mrb[0].mxu0 %v1953
    %v3152 = vpop.f32.mrb[0].mxu0
    %v3153 = vadd.f32 %v3040, %v3152
    %v3154 = vpop.f32.mrb[0].mxu0
    %v3155 = vadd.f32 %v3042, %v3154
    %v3156 = vpop.f32.mrb[0].mxu0
    %v3157 = vadd.f32 %v3044, %v3156
    %v3158 = vpop.f32.mrb[0].mxu0
    %v3159 = vadd.f32 %v3046, %v3158
    %3160 = vmatprep.mubr.bf16.mxu0 %v1958
    %3161 = vmatmul.mubr.bf16.gmra.mrb[0].mxu0 %v1957
    %v3162 = vpop.f32.mrb[0].mxu0
    %v3163 = vadd.f32 %v3050, %v3162
    %v3164 = vpop.f32.mrb[0].mxu0
    %v3165 = vadd.f32 %v3052, %v3164
    %v3166 = vpop.f32.mrb[0].mxu0
    %v3167 = vadd.f32 %v3054, %v3166
    %v3168 = vpop.f32.mrb[0].mxu0
    %v3169 = vadd.f32 %v3056, %v3168
    %3170 = vmatprep.mubr.bf16.mxu0 %v1962
    %3171 = vmatmul.mubr.bf16.gmra.mrb[0].mxu0 %v1961
    %v3172 = vpop.f32.mrb[0].mxu0
    %v3173 = vadd.f32 %v3060, %v3172
    %v3174 = vpop.f32.mrb[0].mxu0
    %v3175 = vadd.f32 %v3062, %v3174
    %v3176 = vpop.f32.mrb[0].mxu0
    %v3177 = vadd.f32 %v3064, %v3176
    %v3178 = vpop.f32.mrb[0].mxu0
    %v3179 = vadd.f32 %v3066, %v3178
    %3180 = vmatprep.mubr.bf16.mxu0 %v1966
    %3181 = vmatmul.mubr.bf16.gmra.mrb[0].mxu0 %v1965
    %v3182 = vpop.f32.mrb[0].mxu0
    %v3183 = vadd.f32 %v3070, %v3182
    %v3184 = vpop.f32.mrb[0].mxu0
    %v3185 = vadd.f32 %v3072, %v3184
    %v3186 = vpop.f32.mrb[0].mxu0
    %v3187 = vadd.f32 %v3074, %v3186
    %v3188 = vpop.f32.mrb[0].mxu0
    %v3189 = vadd.f32 %v3076, %v3188
    %3190 = vmatprep.mubr.bf16.mxu0 %v1970
    %3191 = vmatmul.mubr.bf16.gmra.mrb[0].mxu0 %v1969
    %v3192 = vpop.f32.mrb[0].mxu0
    %v3193 = vadd.f32 %v3080, %v3192
    %v3194 = vpop.f32.mrb[0].mxu0
    %v3195 = vadd.f32 %v3082, %v3194
    %v3196 = vpop.f32.mrb[0].mxu0
    %v3197 = vadd.f32 %v3084, %v3196
    %v3198 = vpop.f32.mrb[0].mxu0
    %v3199 = vadd.f32 %v3086, %v3198
    %3200 = vmatprep.mubr.bf16.mxu0 %v1974
    %3201 = vmatmul.mubr.bf16.gmra.mrb[0].mxu0 %v1973
    %v3202 = vpop.f32.mrb[0].mxu0
    %v3203 = vadd.f32 %v3090, %v3202
    %v3204 = vpop.f32.mrb[0].mxu0
    %v3205 = vadd.f32 %v3092, %v3204
    %v3206 = vpop.f32.mrb[0].mxu0
    %v3207 = vadd.f32 %v3094, %v3206
    %v3208 = vpop.f32.mrb[0].mxu0
    %v3209 = vadd.f32 %v3096, %v3208
    %3210 = vmatprep.mubr.bf16.mxu0 %v1978
    %3211 = vmatmul.mubr.bf16.gmra.mrb[0].mxu0 %v1977
    %v3212 = vpop.f32.mrb[0].mxu0
    %v3213 = vadd.f32 %v3100, %v3212
    %v3214 = vpop.f32.mrb[0].mxu0
    %v3215 = vadd.f32 %v3102, %v3214
    %v3216 = vpop.f32.mrb[0].mxu0
    %v3217 = vadd.f32 %v3104, %v3216
    %v3218 = vpop.f32.mrb[0].mxu0
    %v3219 = vadd.f32 %v3106, %v3218
    %3220 = vdwg.mxu0
    %v3221 = vmax.f32 %v2917, 0.0
    %v3222 = vmax.f32 %v2919, 0.0
    %v3223 = vmax.f32 %v3143, 0.0
    %v3224 = vmax.f32 %v3145, 0.0
    %v3225 = vmax.f32 %v2921, 0.0
    %v3226 = vmax.f32 %v2923, 0.0
    %v3227 = vmax.f32 %v3147, 0.0
    %v3228 = vmax.f32 %v3149, 0.0
    %v3229 = vmax.f32 %v2927, 0.0
    %v3230 = vmax.f32 %v2929, 0.0
    %v3231 = vmax.f32 %v3153, 0.0
    %v3232 = vmax.f32 %v3155, 0.0
    %v3233 = vmax.f32 %v2931, 0.0
    %v3234 = vmax.f32 %v2933, 0.0
    %v3235 = vmax.f32 %v3157, 0.0
    %v3236 = vmax.f32 %v3159, 0.0
    %v3237 = vmax.f32 %v2937, 0.0
    %v3238 = vmax.f32 %v2939, 0.0
    %v3239 = vmax.f32 %v3163, 0.0
    %v3240 = vmax.f32 %v3165, 0.0
    %v3241 = vmax.f32 %v2941, 0.0
    %v3242 = vmax.f32 %v2943, 0.0
    %v3243 = vmax.f32 %v3167, 0.0
    %v3244 = vmax.f32 %v3169, 0.0
    %v3245 = vmax.f32 %v2947, 0.0
    %v3246 = vmax.f32 %v2949, 0.0
    %v3247 = vmax.f32 %v3173, 0.0
    %v3248 = vmax.f32 %v3175, 0.0
    %v3249 = vmax.f32 %v2951, 0.0
    %v3250 = vmax.f32 %v2953, 0.0
    %v3251 = vmax.f32 %v3177, 0.0
    %v3252 = vmax.f32 %v3179, 0.0
    %v3253 = vmax.f32 %v2957, 0.0
    %v3254 = vmax.f32 %v2959, 0.0
    %v3255 = vmax.f32 %v3183, 0.0
    %v3256 = vmax.f32 %v3185, 0.0
    %v3257 = vmax.f32 %v2961, 0.0
    %v3258 = vmax.f32 %v2963, 0.0
    %v3259 = vmax.f32 %v3187, 0.0
    %v3260 = vmax.f32 %v3189, 0.0
    %v3261 = vmax.f32 %v2967, 0.0
    %v3262 = vmax.f32 %v2969, 0.0
    %v3263 = vmax.f32 %v3193, 0.0
    %v3264 = vmax.f32 %v3195, 0.0
    %v3265 = vmax.f32 %v2971, 0.0
    %v3266 = vmax.f32 %v2973, 0.0
    %v3267 = vmax.f32 %v3197, 0.0
    %v3268 = vmax.f32 %v3199, 0.0
    %v3269 = vmax.f32 %v2977, 0.0
    %v3270 = vmax.f32 %v2979, 0.0
    %v3271 = vmax.f32 %v3203, 0.0
    %v3272 = vmax.f32 %v3205, 0.0
    %v3273 = vmax.f32 %v2981, 0.0
    %v3274 = vmax.f32 %v2983, 0.0
    %v3275 = vmax.f32 %v3207, 0.0
    %v3276 = vmax.f32 %v3209, 0.0
    %v3277 = vmax.f32 %v2987, 0.0
    %v3278 = vmax.f32 %v2989, 0.0
    %v3279 = vmax.f32 %v3213, 0.0
    %v3280 = vmax.f32 %v3215, 0.0
    %v3281 = vmax.f32 %v2991, 0.0
    %v3282 = vmax.f32 %v2993, 0.0
    %v3283 = vmax.f32 %v3217, 0.0
    %v3284 = vmax.f32 %v3219, 0.0
    %v3285 = vpack.c.bf16 %v3225, %v3221
    %v3286 = vpack.c.bf16 %v3226, %v3222
    %v3287 = vpack.c.bf16 %v3227, %v3223
    %v3288 = vpack.c.bf16 %v3228, %v3224
    %v3289 = vpack.c.bf16 %v3233, %v3229
    %v3290 = vpack.c.bf16 %v3234, %v3230
    %v3291 = vpack.c.bf16 %v3235, %v3231
    %v3292 = vpack.c.bf16 %v3236, %v3232
    %v3293 = vpack.c.bf16 %v3241, %v3237
    %v3294 = vpack.c.bf16 %v3242, %v3238
    %v3295 = vpack.c.bf16 %v3243, %v3239
    %v3296 = vpack.c.bf16 %v3244, %v3240
    %v3297 = vpack.c.bf16 %v3249, %v3245
    %v3298 = vpack.c.bf16 %v3250, %v3246
    %v3299 = vpack.c.bf16 %v3251, %v3247
    %v3300 = vpack.c.bf16 %v3252, %v3248
    %v3301 = vpack.c.bf16 %v3257, %v3253
    %v3302 = vpack.c.bf16 %v3258, %v3254
    %v3303 = vpack.c.bf16 %v3259, %v3255
    %v3304 = vpack.c.bf16 %v3260, %v3256
    %v3305 = vpack.c.bf16 %v3265, %v3261
    %v3306 = vpack.c.bf16 %v3266, %v3262
    %v3307 = vpack.c.bf16 %v3267, %v3263
    %v3308 = vpack.c.bf16 %v3268, %v3264
    %v3309 = vpack.c.bf16 %v3273, %v3269
    %v3310 = vpack.c.bf16 %v3274, %v3270
    %v3311 = vpack.c.bf16 %v3275, %v3271
    %v3312 = vpack.c.bf16 %v3276, %v3272
    %v3313 = vpack.c.bf16 %v3281, %v3277
    %v3314 = vpack.c.bf16 %v3282, %v3278
    %v3315 = vpack.c.bf16 %v3283, %v3279
    %v3316 = vpack.c.bf16 %v3284, %v3280
    %v3317 = vld [vmem:[%s7] sm:$0xf]
    %v3318 = vld [vmem:[%s7 + $0x4] sm:$0xf]
    %v3319 = vld [vmem:[%s7 + $0x8] sm:$0xf]
    %v3320 = vld [vmem:[%s7 + $0xc] sm:$0xf]
    %v3321 = vld [vmem:[%s7 + $0x10] sm:$0xf]
    %v3322 = vld [vmem:[%s7 + $0x14] sm:$0xf]
    %v3323 = vld [vmem:[%s7 + $0x18] sm:$0xf]
    %v3324 = vld [vmem:[%s7 + $0x1c] sm:$0xf]
    %v3325 = vld [vmem:[%s7 + $0x20] sm:$0xf]
    %v3326 = vld [vmem:[%s7 + $0x24] sm:$0xf]
    %v3327 = vld [vmem:[%s7 + $0x28] sm:$0xf]
    %v3328 = vld [vmem:[%s7 + $0x2c] sm:$0xf]
    %v3329 = vld [vmem:[%s7 + $0x30] sm:$0xf]
    %v3330 = vld [vmem:[%s7 + $0x34] sm:$0xf]
    %v3331 = vld [vmem:[%s7 + $0x38] sm:$0xf]
    %v3332 = vld [vmem:[%s7 + $0x3c] sm:$0xf]
    %v3333 = vld [vmem:[%s7 + $0x40] sm:$0xf]
    %v3334 = vld [vmem:[%s7 + $0x44] sm:$0xf]
    %v3335 = vld [vmem:[%s7 + $0x48] sm:$0xf]
    %v3336 = vld [vmem:[%s7 + $0x4c] sm:$0xf]
    %v3337 = vld [vmem:[%s7 + $0x50] sm:$0xf]
    %v3338 = vld [vmem:[%s7 + $0x54] sm:$0xf]
    %v3339 = vld [vmem:[%s7 + $0x58] sm:$0xf]
    %v3340 = vld [vmem:[%s7 + $0x5c] sm:$0xf]
    %v3341 = vld [vmem:[%s7 + $0x60] sm:$0xf]
    %v3342 = vld [vmem:[%s7 + $0x64] sm:$0xf]
    %v3343 = vld [vmem:[%s7 + $0x68] sm:$0xf]
    %v3344 = vld [vmem:[%s7 + $0x6c] sm:$0xf]
    %v3345 = vld [vmem:[%s7 + $0x70] sm:$0xf]
    %v3346 = vld [vmem:[%s7 + $0x74] sm:$0xf]
    %v3347 = vld [vmem:[%s7 + $0x78] sm:$0xf]
    %v3348 = vld [vmem:[%s7 + $0x7c] sm:$0xf]
    %v3349 = vld [vmem:[%s7 + $0x80] sm:$0xf]
    %v3350 = vld [vmem:[%s7 + $0x84] sm:$0xf]
    %v3351 = vld [vmem:[%s7 + $0x88] sm:$0xf]
    %v3352 = vld [vmem:[%s7 + $0x8c] sm:$0xf]
    %v3353 = vld [vmem:[%s7 + $0x90] sm:$0xf]
    %v3354 = vld [vmem:[%s7 + $0x94] sm:$0xf]
    %v3355 = vld [vmem:[%s7 + $0x98] sm:$0xf]
    %v3356 = vld [vmem:[%s7 + $0x9c] sm:$0xf]
    %v3357 = vld [vmem:[%s7 + $0xa0] sm:$0xf]
    %v3358 = vld [vmem:[%s7 + $0xa4] sm:$0xf]
    %v3359 = vld [vmem:[%s7 + $0xa8] sm:$0xf]
    %v3360 = vld [vmem:[%s7 + $0xac] sm:$0xf]
    %v3361 = vld [vmem:[%s7 + $0xb0] sm:$0xf]
    %v3362 = vld [vmem:[%s7 + $0xb4] sm:$0xf]
    %v3363 = vld [vmem:[%s7 + $0xb8] sm:$0xf]
    %v3364 = vld [vmem:[%s7 + $0xbc] sm:$0xf]
    %v3365 = vld [vmem:[%s7 + $0xc0] sm:$0xf]
    %v3366 = vld [vmem:[%s7 + $0xc4] sm:$0xf]
    %v3367 = vld [vmem:[%s7 + $0xc8] sm:$0xf]
    %v3368 = vld [vmem:[%s7 + $0xcc] sm:$0xf]
    %v3369 = vld [vmem:[%s7 + $0xd0] sm:$0xf]
    %v3370 = vld [vmem:[%s7 + $0xd4] sm:$0xf]
    %v3371 = vld [vmem:[%s7 + $0xd8] sm:$0xf]
    %v3372 = vld [vmem:[%s7 + $0xdc] sm:$0xf]
    %v3373 = vld [vmem:[%s7 + $0xe0] sm:$0xf]
    %v3374 = vld [vmem:[%s7 + $0xe4] sm:$0xf]
    %v3375 = vld [vmem:[%s7 + $0xe8] sm:$0xf]
    %v3376 = vld [vmem:[%s7 + $0xec] sm:$0xf]
    %v3377 = vld [vmem:[%s7 + $0xf0] sm:$0xf]
    %v3378 = vld [vmem:[%s7 + $0xf4] sm:$0xf]
    %v3379 = vld [vmem:[%s7 + $0xf8] sm:$0xf]
    %v3380 = vld [vmem:[%s7 + $0xfc] sm:$0xf]
    %s3381 = sld [smem:[#allocation2]]
    %v3382 = vstv %s3381
    %v3447 = vunpack.c.l.b16 %v3317
    %v3448 = vunpack.c.l.b16 %v3318
    %v3449 = vunpack.c.l.b16 %v3319
    %v3450 = vunpack.c.l.b16 %v3320
    %v3451 = vunpack.c.l.b16 %v3321
    %v3452 = vunpack.c.l.b16 %v3322
    %v3453 = vunpack.c.l.b16 %v3323
    %v3454 = vunpack.c.l.b16 %v3324
    %v3455 = vunpack.c.l.b16 %v3325
    %v3456 = vunpack.c.l.b16 %v3326
    %v3457 = vunpack.c.l.b16 %v3327
    %v3458 = vunpack.c.l.b16 %v3328
    %v3459 = vunpack.c.l.b16 %v3329
    %v3460 = vunpack.c.l.b16 %v3330
    %v3461 = vunpack.c.l.b16 %v3331
    %v3462 = vunpack.c.l.b16 %v3332
    %v3463 = vunpack.c.l.b16 %v3333
    %v3464 = vunpack.c.l.b16 %v3334
    %v3465 = vunpack.c.l.b16 %v3335
    %v3466 = vunpack.c.l.b16 %v3336
    %v3467 = vunpack.c.l.b16 %v3337
    %v3468 = vunpack.c.l.b16 %v3338
    %v3469 = vunpack.c.l.b16 %v3339
    %v3470 = vunpack.c.l.b16 %v3340
    %v3471 = vunpack.c.l.b16 %v3341
    %v3472 = vunpack.c.l.b16 %v3342
    %v3473 = vunpack.c.l.b16 %v3343
    %v3474 = vunpack.c.l.b16 %v3344
    %v3475 = vunpack.c.l.b16 %v3345
    %v3476 = vunpack.c.l.b16 %v3346
    %v3477 = vunpack.c.l.b16 %v3347
    %v3478 = vunpack.c.l.b16 %v3348
    %v3479 = vunpack.c.l.b16 %v3349
    %v3480 = vunpack.c.l.b16 %v3350
    %v3481 = vunpack.c.l.b16 %v3351
    %v3482 = vunpack.c.l.b16 %v3352
    %v3483 = vunpack.c.l.b16 %v3353
    %v3484 = vunpack.c.l.b16 %v3354
    %v3485 = vunpack.c.l.b16 %v3355
    %v3486 = vunpack.c.l.b16 %v3356
    %v3487 = vunpack.c.l.b16 %v3357
    %v3488 = vunpack.c.l.b16 %v3358
    %v3489 = vunpack.c.l.b16 %v3359
    %v3490 = vunpack.c.l.b16 %v3360
    %v3491 = vunpack.c.l.b16 %v3361
    %v3492 = vunpack.c.l.b16 %v3362
    %v3493 = vunpack.c.l.b16 %v3363
    %v3494 = vunpack.c.l.b16 %v3364
    %v3495 = vunpack.c.l.b16 %v3365
    %v3496 = vunpack.c.l.b16 %v3366
    %v3497 = vunpack.c.l.b16 %v3367
    %v3498 = vunpack.c.l.b16 %v3368
    %v3499 = vunpack.c.l.b16 %v3369
    %v3500 = vunpack.c.l.b16 %v3370
    %v3501 = vunpack.c.l.b16 %v3371
    %v3502 = vunpack.c.l.b16 %v3372
    %v3503 = vunpack.c.l.b16 %v3373
    %v3504 = vunpack.c.l.b16 %v3374
    %v3505 = vunpack.c.l.b16 %v3375
    %v3506 = vunpack.c.l.b16 %v3376
    %v3507 = vunpack.c.l.b16 %v3377
    %v3508 = vunpack.c.l.b16 %v3378
    %v3509 = vunpack.c.l.b16 %v3379
    %v3510 = vunpack.c.l.b16 %v3380
    %v3511 = vpack.c.b16 %v3448, %v3447
    %v3512 = vpack.c.b16 %v3450, %v3449
    %v3513 = vpack.c.b16 %v3452, %v3451
    %v3514 = vpack.c.b16 %v3454, %v3453
    %v3515 = vpack.c.b16 %v3456, %v3455
    %v3516 = vpack.c.b16 %v3458, %v3457
    %v3517 = vpack.c.b16 %v3460, %v3459
    %v3518 = vpack.c.b16 %v3462, %v3461
    %v3519 = vpack.c.b16 %v3464, %v3463
    %v3520 = vpack.c.b16 %v3466, %v3465
    %v3521 = vpack.c.b16 %v3468, %v3467
    %v3522 = vpack.c.b16 %v3470, %v3469
    %v3523 = vpack.c.b16 %v3472, %v3471
    %v3524 = vpack.c.b16 %v3474, %v3473
    %v3525 = vpack.c.b16 %v3476, %v3475
    %v3526 = vpack.c.b16 %v3478, %v3477
    %v3527 = vpack.c.b16 %v3480, %v3479
    %v3528 = vpack.c.b16 %v3482, %v3481
    %v3529 = vpack.c.b16 %v3484, %v3483
    %v3530 = vpack.c.b16 %v3486, %v3485
    %v3531 = vpack.c.b16 %v3488, %v3487
    %v3532 = vpack.c.b16 %v3490, %v3489
    %v3533 = vpack.c.b16 %v3492, %v3491
    %v3534 = vpack.c.b16 %v3494, %v3493
    %v3535 = vpack.c.b16 %v3496, %v3495
    %v3536 = vpack.c.b16 %v3498, %v3497
    %v3537 = vpack.c.b16 %v3500, %v3499
    %v3538 = vpack.c.b16 %v3502, %v3501
    %v3539 = vpack.c.b16 %v3504, %v3503
    %v3540 = vpack.c.b16 %v3506, %v3505
    %v3541 = vpack.c.b16 %v3508, %v3507
    %v3542 = vpack.c.b16 %v3510, %v3509
    %3575 = vmatprep.subr.bf16.mxu0 0
    %3576 = vmatpush1.bf16.msra.mxu0 %v3511
    %3577 = vmatprep.subr.bf16.mxu0 0
    %3578 = vmatpush1.bf16.msra.mxu0 %v3512
    %3579 = vmatprep.subr.bf16.mxu0 0
    %3580 = vmatpush1.bf16.msra.mxu0 %v3513
    %3581 = vmatprep.subr.bf16.mxu0 0
    %3582 = vmatpush1.bf16.msra.mxu0 %v3514
    %3583 = vmatprep.subr.bf16.mxu0 0
    %3584 = vmatpush1.bf16.msra.mxu0 %v3515
    %3585 = vmatprep.subr.bf16.mxu0 0
    %3586 = vmatpush1.bf16.msra.mxu0 %v3516
    %3587 = vmatprep.subr.bf16.mxu0 0
    %3588 = vmatpush1.bf16.msra.mxu0 %v3517
    %3589 = vmatprep.subr.bf16.mxu0 0
    %3590 = vmatpush1.bf16.msra.mxu0 %v3518
    %3591 = vmatprep.subr.bf16.mxu0 0
    %3592 = vmatpush1.bf16.msra.mxu0 %v3519
    %3593 = vmatprep.subr.bf16.mxu0 0
    %3594 = vmatpush1.bf16.msra.mxu0 %v3520
    %3595 = vmatprep.subr.bf16.mxu0 0
    %3596 = vmatpush1.bf16.msra.mxu0 %v3521
    %3597 = vmatprep.subr.bf16.mxu0 0
    %3598 = vmatpush1.bf16.msra.mxu0 %v3522
    %3599 = vmatprep.subr.bf16.mxu0 0
    %3600 = vmatpush1.bf16.msra.mxu0 %v3523
    %3601 = vmatprep.subr.bf16.mxu0 0
    %3602 = vmatpush1.bf16.msra.mxu0 %v3524
    %3603 = vmatprep.subr.bf16.mxu0 0
    %3604 = vmatpush1.bf16.msra.mxu0 %v3525
    %3605 = vmatprep.subr.bf16.mxu0 0
    %3606 = vmatpush1.bf16.msra.mxu0 %v3526
    %3607 = vmatprep.mubr.bf16.mxu0 %v3286
    %3608 = vmatmul.mubr.bf16.gmra.mrb[0].mxu0 %v3285
    %v3609 = vpop.f32.mrb[0].mxu0
    %v3610 = vadd.f32 %v3382, %v3609
    %v3611 = vpop.f32.mrb[0].mxu0
    %v3612 = vpop.f32.mrb[0].mxu0
    %v3613 = vadd.f32 %v3382, %v3612
    %v3614 = vpop.f32.mrb[0].mxu0
    %3615 = vmatprep.mubr.bf16.mxu0 %v3290
    %3616 = vmatmul.mubr.bf16.gmra.mrb[0].mxu0 %v3289
    %v3617 = vpop.f32.mrb[0].mxu0
    %v3618 = vadd.f32 %v3382, %v3617
    %v3619 = vpop.f32.mrb[0].mxu0
    %v3620 = vpop.f32.mrb[0].mxu0
    %v3621 = vadd.f32 %v3382, %v3620
    %v3622 = vpop.f32.mrb[0].mxu0
    %3623 = vmatprep.mubr.bf16.mxu0 %v3294
    %3624 = vmatmul.mubr.bf16.gmra.mrb[0].mxu0 %v3293
    %v3625 = vpop.f32.mrb[0].mxu0
    %v3626 = vadd.f32 %v3382, %v3625
    %v3627 = vpop.f32.mrb[0].mxu0
    %v3628 = vpop.f32.mrb[0].mxu0
    %v3629 = vadd.f32 %v3382, %v3628
    %v3630 = vpop.f32.mrb[0].mxu0
    %3631 = vmatprep.mubr.bf16.mxu0 %v3298
    %3632 = vmatmul.mubr.bf16.gmra.mrb[0].mxu0 %v3297
    %v3633 = vpop.f32.mrb[0].mxu0
    %v3634 = vadd.f32 %v3382, %v3633
    %v3635 = vpop.f32.mrb[0].mxu0
    %v3636 = vpop.f32.mrb[0].mxu0
    %v3637 = vadd.f32 %v3382, %v3636
    %v3638 = vpop.f32.mrb[0].mxu0
    %3639 = vmatprep.mubr.bf16.mxu0 %v3302
    %3640 = vmatmul.mubr.bf16.gmra.mrb[0].mxu0 %v3301
    %v3641 = vpop.f32.mrb[0].mxu0
    %v3642 = vadd.f32 %v3382, %v3641
    %v3643 = vpop.f32.mrb[0].mxu0
    %v3644 = vpop.f32.mrb[0].mxu0
    %v3645 = vadd.f32 %v3382, %v3644
    %v3646 = vpop.f32.mrb[0].mxu0
    %3647 = vmatprep.mubr.bf16.mxu0 %v3306
    %3648 = vmatmul.mubr.bf16.gmra.mrb[0].mxu0 %v3305
    %v3649 = vpop.f32.mrb[0].mxu0
    %v3650 = vadd.f32 %v3382, %v3649
    %v3651 = vpop.f32.mrb[0].mxu0
    %v3652 = vpop.f32.mrb[0].mxu0
    %v3653 = vadd.f32 %v3382, %v3652
    %v3654 = vpop.f32.mrb[0].mxu0
    %3655 = vmatprep.mubr.bf16.mxu0 %v3310
    %3656 = vmatmul.mubr.bf16.gmra.mrb[0].mxu0 %v3309
    %v3657 = vpop.f32.mrb[0].mxu0
    %v3658 = vadd.f32 %v3382, %v3657
    %v3659 = vpop.f32.mrb[0].mxu0
    %v3660 = vpop.f32.mrb[0].mxu0
    %v3661 = vadd.f32 %v3382, %v3660
    %v3662 = vpop.f32.mrb[0].mxu0
    %3663 = vmatprep.mubr.bf16.mxu0 %v3314
    %3664 = vmatmul.mubr.bf16.gmra.mrb[0].mxu0 %v3313
    %v3665 = vpop.f32.mrb[0].mxu0
    %v3666 = vadd.f32 %v3382, %v3665
    %v3667 = vpop.f32.mrb[0].mxu0
    %v3668 = vpop.f32.mrb[0].mxu0
    %v3669 = vadd.f32 %v3382, %v3668
    %v3670 = vpop.f32.mrb[0].mxu0
    %3671 = vdwg.mxu0
    %3672 = vmatprep.subr.bf16.mxu0 0
    %3673 = vmatpush1.bf16.msra.mxu0 %v3527
    %3674 = vmatprep.subr.bf16.mxu0 0
    %3675 = vmatpush1.bf16.msra.mxu0 %v3528
    %3676 = vmatprep.subr.bf16.mxu0 0
    %3677 = vmatpush1.bf16.msra.mxu0 %v3529
    %3678 = vmatprep.subr.bf16.mxu0 0
    %3679 = vmatpush1.bf16.msra.mxu0 %v3530
    %3680 = vmatprep.subr.bf16.mxu0 0
    %3681 = vmatpush1.bf16.msra.mxu0 %v3531
    %3682 = vmatprep.subr.bf16.mxu0 0
    %3683 = vmatpush1.bf16.msra.mxu0 %v3532
    %3684 = vmatprep.subr.bf16.mxu0 0
    %3685 = vmatpush1.bf16.msra.mxu0 %v3533
    %3686 = vmatprep.subr.bf16.mxu0 0
    %3687 = vmatpush1.bf16.msra.mxu0 %v3534
    %3688 = vmatprep.subr.bf16.mxu0 0
    %3689 = vmatpush1.bf16.msra.mxu0 %v3535
    %3690 = vmatprep.subr.bf16.mxu0 0
    %3691 = vmatpush1.bf16.msra.mxu0 %v3536
    %3692 = vmatprep.subr.bf16.mxu0 0
    %3693 = vmatpush1.bf16.msra.mxu0 %v3537
    %3694 = vmatprep.subr.bf16.mxu0 0
    %3695 = vmatpush1.bf16.msra.mxu0 %v3538
    %3696 = vmatprep.subr.bf16.mxu0 0
    %3697 = vmatpush1.bf16.msra.mxu0 %v3539
    %3698 = vmatprep.subr.bf16.mxu0 0
    %3699 = vmatpush1.bf16.msra.mxu0 %v3540
    %3700 = vmatprep.subr.bf16.mxu0 0
    %3701 = vmatpush1.bf16.msra.mxu0 %v3541
    %3702 = vmatprep.subr.bf16.mxu0 0
    %3703 = vmatpush1.bf16.msra.mxu0 %v3542
    %3704 = vmatprep.mubr.bf16.mxu0 %v3288
    %3705 = vmatmul.mubr.bf16.gmra.mrb[0].mxu0 %v3287
    %v3706 = vpop.f32.mrb[0].mxu0
    %v3707 = vadd.f32 %v3610, %v3706
    %v3708 = vpop.f32.mrb[0].mxu0
    %v3709 = vpop.f32.mrb[0].mxu0
    %v3710 = vadd.f32 %v3613, %v3709
    %v3711 = vpop.f32.mrb[0].mxu0
    %3712 = vmatprep.mubr.bf16.mxu0 %v3292
    %3713 = vmatmul.mubr.bf16.gmra.mrb[0].mxu0 %v3291
    %v3714 = vpop.f32.mrb[0].mxu0
    %v3715 = vadd.f32 %v3618, %v3714
    %v3716 = vpop.f32.mrb[0].mxu0
    %v3717 = vpop.f32.mrb[0].mxu0
    %v3718 = vadd.f32 %v3621, %v3717
    %v3719 = vpop.f32.mrb[0].mxu0
    %3720 = vmatprep.mubr.bf16.mxu0 %v3296
    %3721 = vmatmul.mubr.bf16.gmra.mrb[0].mxu0 %v3295
    %v3722 = vpop.f32.mrb[0].mxu0
    %v3723 = vadd.f32 %v3626, %v3722
    %v3724 = vpop.f32.mrb[0].mxu0
    %v3725 = vpop.f32.mrb[0].mxu0
    %v3726 = vadd.f32 %v3629, %v3725
    %v3727 = vpop.f32.mrb[0].mxu0
    %3728 = vmatprep.mubr.bf16.mxu0 %v3300
    %3729 = vmatmul.mubr.bf16.gmra.mrb[0].mxu0 %v3299
    %v3730 = vpop.f32.mrb[0].mxu0
    %v3731 = vadd.f32 %v3634, %v3730
    %v3732 = vpop.f32.mrb[0].mxu0
    %v3733 = vpop.f32.mrb[0].mxu0
    %v3734 = vadd.f32 %v3637, %v3733
    %v3735 = vpop.f32.mrb[0].mxu0
    %3736 = vmatprep.mubr.bf16.mxu0 %v3304
    %3737 = vmatmul.mubr.bf16.gmra.mrb[0].mxu0 %v3303
    %v3738 = vpop.f32.mrb[0].mxu0
    %v3739 = vadd.f32 %v3642, %v3738
    %v3740 = vpop.f32.mrb[0].mxu0
    %v3741 = vpop.f32.mrb[0].mxu0
    %v3742 = vadd.f32 %v3645, %v3741
    %v3743 = vpop.f32.mrb[0].mxu0
    %3744 = vmatprep.mubr.bf16.mxu0 %v3308
    %3745 = vmatmul.mubr.bf16.gmra.mrb[0].mxu0 %v3307
    %v3746 = vpop.f32.mrb[0].mxu0
    %v3747 = vadd.f32 %v3650, %v3746
    %v3748 = vpop.f32.mrb[0].mxu0
    %v3749 = vpop.f32.mrb[0].mxu0
    %v3750 = vadd.f32 %v3653, %v3749
    %v3751 = vpop.f32.mrb[0].mxu0
    %3752 = vmatprep.mubr.bf16.mxu0 %v3312
    %3753 = vmatmul.mubr.bf16.gmra.mrb[0].mxu0 %v3311
    %v3754 = vpop.f32.mrb[0].mxu0
    %v3755 = vadd.f32 %v3658, %v3754
    %v3756 = vpop.f32.mrb[0].mxu0
    %v3757 = vpop.f32.mrb[0].mxu0
    %v3758 = vadd.f32 %v3661, %v3757
    %v3759 = vpop.f32.mrb[0].mxu0
    %3760 = vmatprep.mubr.bf16.mxu0 %v3316
    %3761 = vmatmul.mubr.bf16.gmra.mrb[0].mxu0 %v3315
    %v3762 = vpop.f32.mrb[0].mxu0
    %v3763 = vadd.f32 %v3666, %v3762
    %v3764 = vpop.f32.mrb[0].mxu0
    %v3765 = vpop.f32.mrb[0].mxu0
    %v3766 = vadd.f32 %v3669, %v3765
    %v3767 = vpop.f32.mrb[0].mxu0
    %3768 = vdwg.mxu0
    %v3769 = vtanh.pop %v3707
    %v3770 = vtanh.pop %v3710
    %v3771 = vtanh.pop %v3715
    %v3772 = vtanh.pop %v3718
    %v3773 = vtanh.pop %v3723
    %v3774 = vtanh.pop %v3726
    %v3775 = vtanh.pop %v3731
    %v3776 = vtanh.pop %v3734
    %v3777 = vtanh.pop %v3739
    %v3778 = vtanh.pop %v3742
    %v3779 = vtanh.pop %v3747
    %v3780 = vtanh.pop %v3750
    %v3781 = vtanh.pop %v3755
    %v3782 = vtanh.pop %v3758
    %v3783 = vtanh.pop %v3763
    %v3784 = vtanh.pop %v3766
    %vm3785 = vcmask 7168
    %3786 = vst.msk [vmem:[%s9] sm:$0xff] %vm3785, %v3769
    %3787 = vst.msk [vmem:[%s9 + $0x8] sm:$0xff] %vm3785, %v3770
    %3788 = vst.msk [vmem:[%s9 + $0x10] sm:$0xff] %vm3785, %v3771
    %3789 = vst.msk [vmem:[%s9 + $0x18] sm:$0xff] %vm3785, %v3772
    %3790 = vst.msk [vmem:[%s9 + $0x20] sm:$0xff] %vm3785, %v3773
    %3791 = vst.msk [vmem:[%s9 + $0x28] sm:$0xff] %vm3785, %v3774
    %3792 = vst.msk [vmem:[%s9 + $0x30] sm:$0xff] %vm3785, %v3775
    %3793 = vst.msk [vmem:[%s9 + $0x38] sm:$0xff] %vm3785, %v3776
    %3794 = vst.msk [vmem:[%s9 + $0x40] sm:$0xff] %vm3785, %v3777
    %3795 = vst.msk [vmem:[%s9 + $0x48] sm:$0xff] %vm3785, %v3778
    %3796 = vst.msk [vmem:[%s9 + $0x50] sm:$0xff] %vm3785, %v3779
    %3797 = vst.msk [vmem:[%s9 + $0x58] sm:$0xff] %vm3785, %v3780
    %3798 = vst.msk [vmem:[%s9 + $0x60] sm:$0xff] %vm3785, %v3781
    %3799 = vst.msk [vmem:[%s9 + $0x68] sm:$0xff] %vm3785, %v3782
    %3800 = vst.msk [vmem:[%s9 + $0x70] sm:$0xff] %vm3785, %v3783
    %3801 = vst.msk [vmem:[%s9 + $0x78] sm:$0xff] %vm3785, %v3784
    // Predicated region
    $region46: #{tpu_custom_call.1} parent=1 // pred_check
      _
    $region47: #{tpu_custom_call.1} parent=1 // pred_check_branch
      %3803 = sbr.rel (0) target = $region49
    $region48: #{tpu_custom_call.1} parent=1 // pred_region
      _
    $region49: #{tpu_custom_call.1} parent=1 // pred_fallthru
      _
    // Predicated region
    $region50: #{tpu_custom_call.1} parent=1 // pred_check
      _
    $region51: #{tpu_custom_call.1} parent=1 // pred_check_branch
      %3805 = sbr.rel (0) target = $region53
    $region52: #{tpu_custom_call.1} parent=1 // pred_region
      _
    $region53: #{tpu_custom_call.1} parent=1 // pred_fallthru
      _
    %3806 = vsyncpa [#allocation4], 1
    %3807 = vsyncpa [#allocation6], 1

</llo_original>
